<compile_context>
chip_gen: v6e
topology: v6e:2x2x1
jax: 0.10.0
libtpu: 0.0.40
codegen_flags: <defaults>
</compile_context>

<pallas_src>
import functools

import jax
import jax.numpy as jnp
from jax import lax
from jax.experimental import pallas as pl
from jax.experimental.pallas import tpu as pltpu


# Explicit scoped-VMEM budget: safe on v5e/v6e (128 MiB phys) and v7x
# (64 MiB phys / 32 MiB scoped default).
_VMEM_LIMIT_BYTES = 32 * 1024 * 1024


# ----------------------------------------------------------------------------
# Fused kernel: QKV projections + dual-branch multi-head attention + to_out
# ----------------------------------------------------------------------------
def _fused_attn_kernel(x3_ref, x4_ref, x5_ref, wq_ref, wkv1_ref, wkv2_ref,
                       ow_ref, ob_ref, o_ref, kv1_s, kv2_s, *,
                       heads, dim_head, scale):
    # x3_ref:  (1, tq,  dim)      q-branch input tile
    # x4_ref:  (1, Nk1, dim)      branch-1 kv input (full)
    # x5_ref:  (1, Nk2, dim)      branch-2 kv input (full)
    # wq_ref:  (dim, 2*inner)  = [Wq1 | Wq2]
    # wkvX:    (dim, 2*inner)  = [WkX | WvX]
    # ow_ref:  (2*inner, dim), ob_ref: (1, dim)
    # o_ref:   (1, tq, dim)
    # kvX_s:   (NkX, 2*inner)  VMEM scratch, resident across q tiles
    inner = heads * dim_head

    # KV projections depend only on the batch index -> compute once per batch
    # element (first q tile) and keep them VMEM-resident for the other tiles.
    @pl.when(pl.program_id(1) == 0)
    def _():
        kv1_s[...] = jnp.dot(x4_ref[0], wkv1_ref[...],
                             preferred_element_type=jnp.float32)
        kv2_s[...] = jnp.dot(x5_ref[0], wkv2_ref[...],
                             preferred_element_type=jnp.float32)

    # Q projection for this (batch, q-tile); scale folded into q
    # (Nq*2*inner multiplies instead of 2*heads*Nq*Nk).
    q = jnp.dot(x3_ref[0], wq_ref[...],
                preferred_element_type=jnp.float32) * scale  # (tq, 2*inner)

    nq = q.shape[0]
    dim_out = o_ref.shape[-1]
    # TODO(synk): for Nk beyond ~1-2K, switch to an online-softmax loop over
    # Nk tiles instead of materializing the full (tq, Nk) score matrix.
    acc = jnp.zeros((nq, dim_out), jnp.float32)
    kvs = (kv1_s[...], kv2_s[...])
    for branch in range(2):
        kv = kvs[branch]
        for h in range(heads):
            lo = h * dim_head
            qh = q[:, branch * inner + lo: branch * inner + lo + dim_head]
            kh = kv[:, lo: lo + dim_head]
            vh = kv[:, inner + lo: inner + lo + dim_head]
            # Contract last dims directly -> no in-kernel k.T / XLU transpose.
            s = lax.dot_general(
                qh, kh, (((1,), (1,)), ((), ())),
                preferred_element_type=jnp.float32,
            )  # (tq, Nk)
            m = jnp.max(s, axis=-1, keepdims=True)
            p = jnp.exp(s - m)
            l = jnp.sum(p, axis=-1, keepdims=True)
            # Normalize after PV: divide the small (tq, d) output, not (tq, Nk).
            oh = jnp.dot(p, vh, preferred_element_type=jnp.float32) / l
            # Fold this head's slice of the to_out projection directly into the
            # accumulator: equivalent to concat(branches/heads) @ out_w.
            piece = branch * heads + h
            w_rows = ow_ref[piece * dim_head:(piece + 1) * dim_head, :]  # (d, dim)
            acc = acc + jnp.dot(oh, w_rows, preferred_element_type=jnp.float32)
    o_ref[0] = (acc + ob_ref[...]).astype(o_ref.dtype)


def attention_global_forward(fused, x5, x4, x3, heads, dim_head):
    """x5: (B, Nk2, dim), x4: (B, Nk1, dim), x3: (B, Nq, dim) -> (B, Nq, dim)."""
    scale = dim_head ** (-0.5)
    B, Nq, dim = x3.shape
    Nk1 = x4.shape[1]
    Nk2 = x5.shape[1]
    inner = heads * dim_head
    two_inner = 2 * inner
    dim_out = fused["out_w"].shape[1]

    # q tile: full Nq when it is small / not evenly tileable, else 256 rows.
    # TODO(synk): for very large, non-256-divisible Nq this falls back to a
    # single full-Nq tile (VMEM pressure); add ragged-edge handling if needed.
    tq = Nq if (Nq <= 256 or Nq % 256 != 0) else 256
    grid_q = pl.cdiv(Nq, tq)

    ob2d = fused["out_b"].reshape(1, dim_out).astype(x3.dtype)
    kernel = functools.partial(
        _fused_attn_kernel, heads=heads, dim_head=dim_head, scale=scale
    )

    return pl.pallas_call(
        kernel,
        out_shape=jax.ShapeDtypeStruct((B, Nq, dim_out), x3.dtype),
        grid=(B, grid_q),
        in_specs=[
            pl.BlockSpec((1, tq, dim), lambda b, qi: (b, qi, 0)),    # x3 tile
            pl.BlockSpec((1, Nk1, dim), lambda b, qi: (b, 0, 0)),    # x4 (full)
            pl.BlockSpec((1, Nk2, dim), lambda b, qi: (b, 0, 0)),    # x5 (full)
            pl.BlockSpec((dim, two_inner), lambda b, qi: (0, 0)),    # [Wq1|Wq2]
            pl.BlockSpec((dim, two_inner), lambda b, qi: (0, 0)),    # [Wk1|Wv1]
            pl.BlockSpec((dim, two_inner), lambda b, qi: (0, 0)),    # [Wk2|Wv2]
            pl.BlockSpec((two_inner, dim_out), lambda b, qi: (0, 0)),  # out_w
            pl.BlockSpec((1, dim_out), lambda b, qi: (0, 0)),        # out_b
        ],
        out_specs=pl.BlockSpec((1, tq, dim_out), lambda b, qi: (b, qi, 0)),
        scratch_shapes=[
            pltpu.VMEM((Nk1, two_inner), jnp.float32),
            pltpu.VMEM((Nk2, two_inner), jnp.float32),
        ],
        compiler_params=pltpu.CompilerParams(
            dimension_semantics=("parallel", "arbitrary"),
            vmem_limit_bytes=_VMEM_LIMIT_BYTES,
        ),
    )(x3, x4, x5, fused["w_q"], fused["w_kv1"], fused["w_kv2"],
      fused["out_w"], ob2d)


# ----------------------------------------------------------------------------
# Attention_global parameters (+ one-time weight fusion)
# ----------------------------------------------------------------------------
def init_attention_global_params(key, dim, heads, dim_head):
    inner_dim = dim_head * heads
    keys = jax.random.split(key, 8)
    scale_init = 0.02

    def w(k, shape):
        return jax.random.normal(k, shape, dtype=jnp.float32) * scale_init

    return {
        # weights stored as (in_dim, out_dim), i.e. pre-transposed vs nn.Linear
        "to_q1": w(keys[0], (dim, inner_dim)),
        "to_k1": w(keys[1], (dim, inner_dim)),
        "to_v1": w(keys[2], (dim, inner_dim)),
        "to_q2": w(keys[3], (dim, inner_dim)),
        "to_k2": w(keys[4], (dim, inner_dim)),
        "to_v2": w(keys[5], (dim, inner_dim)),
        "out_w": w(keys[6], (inner_dim * 2, dim)),
        "out_b": w(keys[7], (dim,)),
    }


def fuse_attention_params(params):
    """One-time weight fusion: projections sharing an input are concatenated
    along the output axis so each activation is read exactly once."""
    return {
        "w_q": jnp.concatenate([params["to_q1"], params["to_q2"]], axis=1),
        "w_kv1": jnp.concatenate([params["to_k1"], params["to_v1"]], axis=1),
        "w_kv2": jnp.concatenate([params["to_k2"], params["to_v2"]], axis=1),
        "out_w": params["out_w"],
        "out_b": params["out_b"],
    }


# ----------------------------------------------------------------------------
# Pure-JAX reference (mirrors the PyTorch module, for verification)
# ----------------------------------------------------------------------------
def reference_forward(params, x5, x4, x3, heads, dim_head):
    scale = dim_head ** (-0.5)
    B, Nq, dim = x3.shape

    def proj(x, w):
        y = x @ w
        Bn, N, _ = x.shape
        return y.reshape(Bn, N, heads, dim_head).transpose(0, 2, 1, 3)

    q1, q2 = proj(x3, params["to_q1"]), proj(x3, params["to_q2"])
    k1, v1 = proj(x4, params["to_k1"]), proj(x4, params["to_v1"])
    k2, v2 = proj(x5, params["to_k2"]), proj(x5, params["to_v2"])

    def attn(q, k, v):
        s = jnp.einsum("bhnd,bhmd->bhnm", q, k) * scale
        p = jax.nn.softmax(s, axis=-1)
        o = jnp.einsum("bhnm,bhmd->bhnd", p, v)
        return o.transpose(0, 2, 1, 3).reshape(B, Nq, heads * dim_head)

    out = jnp.concatenate([attn(q1, k1, v1), attn(q2, k2, v2)], axis=-1)
    return out @ params["out_w"] + params["out_b"]


# ----------------------------------------------------------------------------
if __name__ == "__main__":
    # small shapes: dim=32, heads=4, dim_head=8 (inner_dim=32)
    dim, heads, dim_head = 32, 4, 8
    B, Nq, Nkv = 2, 8, 16

    key = jax.random.PRNGKey(0)
    kp, k5, k4, k3 = jax.random.split(key, 4)
    params = init_attention_global_params(kp, dim, heads, dim_head)
    fused = fuse_attention_params(params)

    x5 = jax.random.normal(k5, (B, Nkv, dim), dtype=jnp.float32)
    x4 = jax.random.normal(k4, (B, Nkv, dim), dtype=jnp.float32)
    x3 = jax.random.normal(k3, (B, Nq, dim), dtype=jnp.float32)

    fwd = jax.jit(attention_global_forward, static_argnames=("heads", "dim_head"))
    out = fwd(fused, x5, x4, x3, heads=heads, dim_head=dim_head)
    out = jax.block_until_ready(out)

    ref = reference_forward(params, x5, x4, x3, heads, dim_head)
    assert out.shape == (B, Nq, dim), out.shape
    assert jnp.allclose(out, ref, rtol=1e-4, atol=1e-5), float(
        jnp.max(jnp.abs(out - ref))
    )

    print("KERNEL_OK")
</pallas_src>

<mosaic_0001>
module attributes {stable_mosaic.version = 11 : i64} {
  func.func @_fused_attn_kernel(%arg0: i32, %arg1: i32, %arg2: memref<1x8x32xf32, #tpu.memory_space<vmem>>, %arg3: memref<1x16x32xf32, #tpu.memory_space<vmem>>, %arg4: memref<1x16x32xf32, #tpu.memory_space<vmem>>, %arg5: memref<32x64xf32, #tpu.memory_space<vmem>>, %arg6: memref<32x64xf32, #tpu.memory_space<vmem>>, %arg7: memref<32x64xf32, #tpu.memory_space<vmem>>, %arg8: memref<64x32xf32, #tpu.memory_space<vmem>>, %arg9: memref<1x32xf32, #tpu.memory_space<vmem>>, %arg10: memref<1x8x32xf32, #tpu.memory_space<vmem>>, %arg11: memref<16x64xf32, #tpu.memory_space<vmem>>, %arg12: memref<16x64xf32, #tpu.memory_space<vmem>>) attributes {dimension_semantics = [#tpu.dimension_semantics<parallel>, #tpu.dimension_semantics<arbitrary>], iteration_bounds = array<i64: 2, 1>, scalar_prefetch = 0 : i64, scratch_operands = 2 : i64, tpu.core_type = #tpu.core_type<tc>, window_params = [{transform_indices = @transform_0, window_bounds = array<i64: 1, 8, 32>}, {transform_indices = @transform_1, window_bounds = array<i64: 1, 16, 32>}, {transform_indices = @transform_2, window_bounds = array<i64: 1, 16, 32>}, {pipeline_mode = #tpu.pipeline_mode<synchronous>, transform_indices = @transform_3, window_bounds = array<i64: 32, 64>}, {pipeline_mode = #tpu.pipeline_mode<synchronous>, transform_indices = @transform_4, window_bounds = array<i64: 32, 64>}, {pipeline_mode = #tpu.pipeline_mode<synchronous>, transform_indices = @transform_5, window_bounds = array<i64: 32, 64>}, {pipeline_mode = #tpu.pipeline_mode<synchronous>, transform_indices = @transform_6, window_bounds = array<i64: 64, 32>}, {pipeline_mode = #tpu.pipeline_mode<synchronous>, transform_indices = @transform_7, window_bounds = array<i64: 1, 32>}, {transform_indices = @transform_8, window_bounds = array<i64: 1, 8, 32>}]} {
    %c0_i32 = arith.constant 0 : i32
    %0 = arith.cmpi eq, %arg1, %c0_i32 : i32
    %1 = arith.extui %0 : i1 to i32
    %c0_i32_0 = arith.constant 0 : i32
    %2 = arith.cmpi ne, %1, %c0_i32_0 : i32
    scf.if %2 {
      %c0_65 = arith.constant 0 : index
      %c0_66 = arith.constant 0 : index
      %c0_67 = arith.constant 0 : index
      %154 = vector.load %arg3[%c0_65, %c0_66, %c0_67] : memref<1x16x32xf32, #tpu.memory_space<vmem>>, vector<1x16x32xf32>
      %155 = vector.shape_cast %154 : vector<1x16x32xf32> to vector<16x32xf32>
      %c0_68 = arith.constant 0 : index
      %c0_69 = arith.constant 0 : index
      %156 = vector.load %arg6[%c0_68, %c0_69] : memref<32x64xf32, #tpu.memory_space<vmem>>, vector<32x64xf32>
      %cst_70 = arith.constant dense<0.000000e+00> : vector<16x64xf32>
      %157 = tpu.matmul %155, %156, %cst_70 {dimension_numbers = #tpu.dot_dimension_numbers<[1], [0], [0], [1], [0, 0, 1, 1], [], []>} : vector<16x32xf32>, vector<32x64xf32>, vector<16x64xf32> -> vector<16x64xf32>
      %c0_71 = arith.constant 0 : index
      %c0_72 = arith.constant 0 : index
      %158 = vector.load %arg11[%c0_71, %c0_72] : memref<16x64xf32, #tpu.memory_space<vmem>>, vector<16x64xf32>
      tpu.vector_store %arg11[%c0_71, %c0_72], %157 {strides = array<i32>} : memref<16x64xf32, #tpu.memory_space<vmem>>, vector<16x64xf32>,
      %c0_73 = arith.constant 0 : index
      %c0_74 = arith.constant 0 : index
      %c0_75 = arith.constant 0 : index
      %159 = vector.load %arg4[%c0_73, %c0_74, %c0_75] : memref<1x16x32xf32, #tpu.memory_space<vmem>>, vector<1x16x32xf32>
      %160 = vector.shape_cast %159 : vector<1x16x32xf32> to vector<16x32xf32>
      %c0_76 = arith.constant 0 : index
      %c0_77 = arith.constant 0 : index
      %161 = vector.load %arg7[%c0_76, %c0_77] : memref<32x64xf32, #tpu.memory_space<vmem>>, vector<32x64xf32>
      %cst_78 = arith.constant dense<0.000000e+00> : vector<16x64xf32>
      %162 = tpu.matmul %160, %161, %cst_78 {dimension_numbers = #tpu.dot_dimension_numbers<[1], [0], [0], [1], [0, 0, 1, 1], [], []>} : vector<16x32xf32>, vector<32x64xf32>, vector<16x64xf32> -> vector<16x64xf32>
      %c0_79 = arith.constant 0 : index
      %c0_80 = arith.constant 0 : index
      %163 = vector.load %arg12[%c0_79, %c0_80] : memref<16x64xf32, #tpu.memory_space<vmem>>, vector<16x64xf32>
      tpu.vector_store %arg12[%c0_79, %c0_80], %162 {strides = array<i32>} : memref<16x64xf32, #tpu.memory_space<vmem>>, vector<16x64xf32>,
    } else {
    }
    %c0 = arith.constant 0 : index
    %c0_1 = arith.constant 0 : index
    %c0_2 = arith.constant 0 : index
    %3 = vector.load %arg2[%c0, %c0_1, %c0_2] : memref<1x8x32xf32, #tpu.memory_space<vmem>>, vector<1x8x32xf32>
    %4 = vector.shape_cast %3 : vector<1x8x32xf32> to vector<8x32xf32>
    %c0_3 = arith.constant 0 : index
    %c0_4 = arith.constant 0 : index
    %5 = vector.load %arg5[%c0_3, %c0_4] : memref<32x64xf32, #tpu.memory_space<vmem>>, vector<32x64xf32>
    %cst = arith.constant dense<0.000000e+00> : vector<8x64xf32>
    %6 = tpu.matmul %4, %5, %cst {dimension_numbers = #tpu.dot_dimension_numbers<[1], [0], [0], [1], [0, 0, 1, 1], [], []>} : vector<8x32xf32>, vector<32x64xf32>, vector<8x64xf32> -> vector<8x64xf32>
    %cst_5 = arith.constant 0.353553385 : f32
    %7 = vector.broadcast %cst_5 : f32 to vector<8x64xf32>
    %8 = arith.mulf %6, %7 : vector<8x64xf32>
    %cst_6 = arith.constant 0.000000e+00 : f32
    %9 = vector.broadcast %cst_6 : f32 to vector<8x32xf32>
    %c0_7 = arith.constant 0 : index
    %c0_8 = arith.constant 0 : index
    %10 = vector.load %arg11[%c0_7, %c0_8] : memref<16x64xf32, #tpu.memory_space<vmem>>, vector<16x64xf32>
    %c0_9 = arith.constant 0 : index
    %c0_10 = arith.constant 0 : index
    %11 = vector.load %arg12[%c0_9, %c0_10] : memref<16x64xf32, #tpu.memory_space<vmem>>, vector<16x64xf32>
    %12 = vector.extract_strided_slice %8 {offsets = [0, 0], sizes = [8, 8], strides = [1, 1]} : vector<8x64xf32> to vector<8x8xf32>
    %13 = vector.extract_strided_slice %10 {offsets = [0, 0], sizes = [16, 8], strides = [1, 1]} : vector<16x64xf32> to vector<16x8xf32>
    %14 = vector.extract_strided_slice %10 {offsets = [0, 32], sizes = [16, 8], strides = [1, 1]} : vector<16x64xf32> to vector<16x8xf32>
    %cst_11 = arith.constant dense<0.000000e+00> : vector<8x16xf32>
    %15 = tpu.matmul %12, %13, %cst_11 {dimension_numbers = #tpu.dot_dimension_numbers<[1], [1], [0], [0], [0, 0, 1, 0], [], []>} : vector<8x8xf32>, vector<16x8xf32>, vector<8x16xf32> -> vector<8x16xf32>
    %cst_12 = arith.constant dense<0xFF800000> : vector<8xf32>
    %16 = vector.multi_reduction <maximumf>, %15, %cst_12 [1] : vector<8x16xf32> to vector<8xf32>
    %17 = vector.shape_cast %16 : vector<8xf32> to vector<8x1xf32>
    %18 = vector.broadcast %17 : vector<8x1xf32> to vector<8x16xf32>
    %19 = arith.subf %15, %18 : vector<8x16xf32>
    %20 = math.exp %19 : vector<8x16xf32>
    %cst_13 = arith.constant dense<0.000000e+00> : vector<8xf32>
    %21 = vector.multi_reduction <add>, %20, %cst_13 [1] : vector<8x16xf32> to vector<8xf32>
    %22 = vector.shape_cast %21 : vector<8xf32> to vector<8x1xf32>
    %cst_14 = arith.constant dense<0.000000e+00> : vector<8x8xf32>
    %23 = tpu.matmul %20, %14, %cst_14 {dimension_numbers = #tpu.dot_dimension_numbers<[1], [0], [0], [1], [0, 0, 1, 1], [], []>} : vector<8x16xf32>, vector<16x8xf32>, vector<8x8xf32> -> vector<8x8xf32>
    %24 = vector.broadcast %22 : vector<8x1xf32> to vector<8x8xf32>
    %25 = arith.divf %23, %24 : vector<8x8xf32>
    %c0_15 = arith.constant 0 : index
    %c0_16 = arith.constant 0 : index
    %26 = vector.load %arg8[%c0_15, %c0_16] : memref<64x32xf32, #tpu.memory_space<vmem>>, vector<8x32xf32>
    %cst_17 = arith.constant dense<0.000000e+00> : vector<8x32xf32>
    %27 = tpu.matmul %25, %26, %cst_17 {dimension_numbers = #tpu.dot_dimension_numbers<[1], [0], [0], [1], [0, 0, 1, 1], [], []>} : vector<8x8xf32>, vector<8x32xf32>, vector<8x32xf32> -> vector<8x32xf32>
    %28 = arith.addf %9, %27 : vector<8x32xf32>
    %29 = vector.extract_strided_slice %8 {offsets = [0, 8], sizes = [8, 8], strides = [1, 1]} : vector<8x64xf32> to vector<8x8xf32>
    %30 = vector.extract_strided_slice %10 {offsets = [0, 8], sizes = [16, 8], strides = [1, 1]} : vector<16x64xf32> to vector<16x8xf32>
    %31 = vector.extract_strided_slice %10 {offsets = [0, 40], sizes = [16, 8], strides = [1, 1]} : vector<16x64xf32> to vector<16x8xf32>
    %cst_18 = arith.constant dense<0.000000e+00> : vector<8x16xf32>
    %32 = tpu.matmul %29, %30, %cst_18 {dimension_numbers = #tpu.dot_dimension_numbers<[1], [1], [0], [0], [0, 0, 1, 0], [], []>} : vector<8x8xf32>, vector<16x8xf32>, vector<8x16xf32> -> vector<8x16xf32>
    %cst_19 = arith.constant dense<0xFF800000> : vector<8xf32>
    %33 = vector.multi_reduction <maximumf>, %32, %cst_19 [1] : vector<8x16xf32> to vector<8xf32>
    %34 = vector.shape_cast %33 : vector<8xf32> to vector<8x1xf32>
    %35 = vector.broadcast %34 : vector<8x1xf32> to vector<8x16xf32>
    %36 = arith.subf %32, %35 : vector<8x16xf32>
    %37 = math.exp %36 : vector<8x16xf32>
    %cst_20 = arith.constant dense<0.000000e+00> : vector<8xf32>
    %38 = vector.multi_reduction <add>, %37, %cst_20 [1] : vector<8x16xf32> to vector<8xf32>
    %39 = vector.shape_cast %38 : vector<8xf32> to vector<8x1xf32>
    %cst_21 = arith.constant dense<0.000000e+00> : vector<8x8xf32>
    %40 = tpu.matmul %37, %31, %cst_21 {dimension_numbers = #tpu.dot_dimension_numbers<[1], [0], [0], [1], [0, 0, 1, 1], [], []>} : vector<8x16xf32>, vector<16x8xf32>, vector<8x8xf32> -> vector<8x8xf32>
    %41 = vector.broadcast %39 : vector<8x1xf32> to vector<8x8xf32>
    %42 = arith.divf %40, %41 : vector<8x8xf32>
    %c8 = arith.constant 8 : index
    %c0_22 = arith.constant 0 : index
    %43 = vector.load %arg8[%c8, %c0_22] : memref<64x32xf32, #tpu.memory_space<vmem>>, vector<8x32xf32>
    %cst_23 = arith.constant dense<0.000000e+00> : vector<8x32xf32>
    %44 = tpu.matmul %42, %43, %cst_23 {dimension_numbers = #tpu.dot_dimension_numbers<[1], [0], [0], [1], [0, 0, 1, 1], [], []>} : vector<8x8xf32>, vector<8x32xf32>, vector<8x32xf32> -> vector<8x32xf32>
    %45 = arith.addf %28, %44 : vector<8x32xf32>
    %46 = vector.extract_strided_slice %8 {offsets = [0, 16], sizes = [8, 8], strides = [1, 1]} : vector<8x64xf32> to vector<8x8xf32>
    %47 = vector.extract_strided_slice %10 {offsets = [0, 16], sizes = [16, 8], strides = [1, 1]} : vector<16x64xf32> to vector<16x8xf32>
    %48 = vector.extract_strided_slice %10 {offsets = [0, 48], sizes = [16, 8], strides = [1, 1]} : vector<16x64xf32> to vector<16x8xf32>
    %cst_24 = arith.constant dense<0.000000e+00> : vector<8x16xf32>
    %49 = tpu.matmul %46, %47, %cst_24 {dimension_numbers = #tpu.dot_dimension_numbers<[1], [1], [0], [0], [0, 0, 1, 0], [], []>} : vector<8x8xf32>, vector<16x8xf32>, vector<8x16xf32> -> vector<8x16xf32>
    %cst_25 = arith.constant dense<0xFF800000> : vector<8xf32>
    %50 = vector.multi_reduction <maximumf>, %49, %cst_25 [1] : vector<8x16xf32> to vector<8xf32>
    %51 = vector.shape_cast %50 : vector<8xf32> to vector<8x1xf32>
    %52 = vector.broadcast %51 : vector<8x1xf32> to vector<8x16xf32>
    %53 = arith.subf %49, %52 : vector<8x16xf32>
    %54 = math.exp %53 : vector<8x16xf32>
    %cst_26 = arith.constant dense<0.000000e+00> : vector<8xf32>
    %55 = vector.multi_reduction <add>, %54, %cst_26 [1] : vector<8x16xf32> to vector<8xf32>
    %56 = vector.shape_cast %55 : vector<8xf32> to vector<8x1xf32>
    %cst_27 = arith.constant dense<0.000000e+00> : vector<8x8xf32>
    %57 = tpu.matmul %54, %48, %cst_27 {dimension_numbers = #tpu.dot_dimension_numbers<[1], [0], [0], [1], [0, 0, 1, 1], [], []>} : vector<8x16xf32>, vector<16x8xf32>, vector<8x8xf32> -> vector<8x8xf32>
    %58 = vector.broadcast %56 : vector<8x1xf32> to vector<8x8xf32>
    %59 = arith.divf %57, %58 : vector<8x8xf32>
    %c16 = arith.constant 16 : index
    %c0_28 = arith.constant 0 : index
    %60 = vector.load %arg8[%c16, %c0_28] : memref<64x32xf32, #tpu.memory_space<vmem>>, vector<8x32xf32>
    %cst_29 = arith.constant dense<0.000000e+00> : vector<8x32xf32>
    %61 = tpu.matmul %59, %60, %cst_29 {dimension_numbers = #tpu.dot_dimension_numbers<[1], [0], [0], [1], [0, 0, 1, 1], [], []>} : vector<8x8xf32>, vector<8x32xf32>, vector<8x32xf32> -> vector<8x32xf32>
    %62 = arith.addf %45, %61 : vector<8x32xf32>
    %63 = vector.extract_strided_slice %8 {offsets = [0, 24], sizes = [8, 8], strides = [1, 1]} : vector<8x64xf32> to vector<8x8xf32>
    %64 = vector.extract_strided_slice %10 {offsets = [0, 24], sizes = [16, 8], strides = [1, 1]} : vector<16x64xf32> to vector<16x8xf32>
    %65 = vector.extract_strided_slice %10 {offsets = [0, 56], sizes = [16, 8], strides = [1, 1]} : vector<16x64xf32> to vector<16x8xf32>
    %cst_30 = arith.constant dense<0.000000e+00> : vector<8x16xf32>
    %66 = tpu.matmul %63, %64, %cst_30 {dimension_numbers = #tpu.dot_dimension_numbers<[1], [1], [0], [0], [0, 0, 1, 0], [], []>} : vector<8x8xf32>, vector<16x8xf32>, vector<8x16xf32> -> vector<8x16xf32>
    %cst_31 = arith.constant dense<0xFF800000> : vector<8xf32>
    %67 = vector.multi_reduction <maximumf>, %66, %cst_31 [1] : vector<8x16xf32> to vector<8xf32>
    %68 = vector.shape_cast %67 : vector<8xf32> to vector<8x1xf32>
    %69 = vector.broadcast %68 : vector<8x1xf32> to vector<8x16xf32>
    %70 = arith.subf %66, %69 : vector<8x16xf32>
    %71 = math.exp %70 : vector<8x16xf32>
    %cst_32 = arith.constant dense<0.000000e+00> : vector<8xf32>
    %72 = vector.multi_reduction <add>, %71, %cst_32 [1] : vector<8x16xf32> to vector<8xf32>
    %73 = vector.shape_cast %72 : vector<8xf32> to vector<8x1xf32>
    %cst_33 = arith.constant dense<0.000000e+00> : vector<8x8xf32>
    %74 = tpu.matmul %71, %65, %cst_33 {dimension_numbers = #tpu.dot_dimension_numbers<[1], [0], [0], [1], [0, 0, 1, 1], [], []>} : vector<8x16xf32>, vector<16x8xf32>, vector<8x8xf32> -> vector<8x8xf32>
    %75 = vector.broadcast %73 : vector<8x1xf32> to vector<8x8xf32>
    %76 = arith.divf %74, %75 : vector<8x8xf32>
    %c24 = arith.constant 24 : index
    %c0_34 = arith.constant 0 : index
    %77 = vector.load %arg8[%c24, %c0_34] : memref<64x32xf32, #tpu.memory_space<vmem>>, vector<8x32xf32>
    %cst_35 = arith.constant dense<0.000000e+00> : vector<8x32xf32>
    %78 = tpu.matmul %76, %77, %cst_35 {dimension_numbers = #tpu.dot_dimension_numbers<[1], [0], [0], [1], [0, 0, 1, 1], [], []>} : vector<8x8xf32>, vector<8x32xf32>, vector<8x32xf32> -> vector<8x32xf32>
    %79 = arith.addf %62, %78 : vector<8x32xf32>
    %80 = vector.extract_strided_slice %8 {offsets = [0, 32], sizes = [8, 8], strides = [1, 1]} : vector<8x64xf32> to vector<8x8xf32>
    %81 = vector.extract_strided_slice %11 {offsets = [0, 0], sizes = [16, 8], strides = [1, 1]} : vector<16x64xf32> to vector<16x8xf32>
    %82 = vector.extract_strided_slice %11 {offsets = [0, 32], sizes = [16, 8], strides = [1, 1]} : vector<16x64xf32> to vector<16x8xf32>
    %cst_36 = arith.constant dense<0.000000e+00> : vector<8x16xf32>
    %83 = tpu.matmul %80, %81, %cst_36 {dimension_numbers = #tpu.dot_dimension_numbers<[1], [1], [0], [0], [0, 0, 1, 0], [], []>} : vector<8x8xf32>, vector<16x8xf32>, vector<8x16xf32> -> vector<8x16xf32>
    %cst_37 = arith.constant dense<0xFF800000> : vector<8xf32>
    %84 = vector.multi_reduction <maximumf>, %83, %cst_37 [1] : vector<8x16xf32> to vector<8xf32>
    %85 = vector.shape_cast %84 : vector<8xf32> to vector<8x1xf32>
    %86 = vector.broadcast %85 : vector<8x1xf32> to vector<8x16xf32>
    %87 = arith.subf %83, %86 : vector<8x16xf32>
    %88 = math.exp %87 : vector<8x16xf32>
    %cst_38 = arith.constant dense<0.000000e+00> : vector<8xf32>
    %89 = vector.multi_reduction <add>, %88, %cst_38 [1] : vector<8x16xf32> to vector<8xf32>
    %90 = vector.shape_cast %89 : vector<8xf32> to vector<8x1xf32>
    %cst_39 = arith.constant dense<0.000000e+00> : vector<8x8xf32>
    %91 = tpu.matmul %88, %82, %cst_39 {dimension_numbers = #tpu.dot_dimension_numbers<[1], [0], [0], [1], [0, 0, 1, 1], [], []>} : vector<8x16xf32>, vector<16x8xf32>, vector<8x8xf32> -> vector<8x8xf32>
    %92 = vector.broadcast %90 : vector<8x1xf32> to vector<8x8xf32>
    %93 = arith.divf %91, %92 : vector<8x8xf32>
    %c32 = arith.constant 32 : index
    %c0_40 = arith.constant 0 : index
    %94 = vector.load %arg8[%c32, %c0_40] : memref<64x32xf32, #tpu.memory_space<vmem>>, vector<8x32xf32>
    %cst_41 = arith.constant dense<0.000000e+00> : vector<8x32xf32>
    %95 = tpu.matmul %93, %94, %cst_41 {dimension_numbers = #tpu.dot_dimension_numbers<[1], [0], [0], [1], [0, 0, 1, 1], [], []>} : vector<8x8xf32>, vector<8x32xf32>, vector<8x32xf32> -> vector<8x32xf32>
    %96 = arith.addf %79, %95 : vector<8x32xf32>
    %97 = vector.extract_strided_slice %8 {offsets = [0, 40], sizes = [8, 8], strides = [1, 1]} : vector<8x64xf32> to vector<8x8xf32>
    %98 = vector.extract_strided_slice %11 {offsets = [0, 8], sizes = [16, 8], strides = [1, 1]} : vector<16x64xf32> to vector<16x8xf32>
    %99 = vector.extract_strided_slice %11 {offsets = [0, 40], sizes = [16, 8], strides = [1, 1]} : vector<16x64xf32> to vector<16x8xf32>
    %cst_42 = arith.constant dense<0.000000e+00> : vector<8x16xf32>
    %100 = tpu.matmul %97, %98, %cst_42 {dimension_numbers = #tpu.dot_dimension_numbers<[1], [1], [0], [0], [0, 0, 1, 0], [], []>} : vector<8x8xf32>, vector<16x8xf32>, vector<8x16xf32> -> vector<8x16xf32>
    %cst_43 = arith.constant dense<0xFF800000> : vector<8xf32>
    %101 = vector.multi_reduction <maximumf>, %100, %cst_43 [1] : vector<8x16xf32> to vector<8xf32>
    %102 = vector.shape_cast %101 : vector<8xf32> to vector<8x1xf32>
    %103 = vector.broadcast %102 : vector<8x1xf32> to vector<8x16xf32>
    %104 = arith.subf %100, %103 : vector<8x16xf32>
    %105 = math.exp %104 : vector<8x16xf32>
    %cst_44 = arith.constant dense<0.000000e+00> : vector<8xf32>
    %106 = vector.multi_reduction <add>, %105, %cst_44 [1] : vector<8x16xf32> to vector<8xf32>
    %107 = vector.shape_cast %106 : vector<8xf32> to vector<8x1xf32>
    %cst_45 = arith.constant dense<0.000000e+00> : vector<8x8xf32>
    %108 = tpu.matmul %105, %99, %cst_45 {dimension_numbers = #tpu.dot_dimension_numbers<[1], [0], [0], [1], [0, 0, 1, 1], [], []>} : vector<8x16xf32>, vector<16x8xf32>, vector<8x8xf32> -> vector<8x8xf32>
    %109 = vector.broadcast %107 : vector<8x1xf32> to vector<8x8xf32>
    %110 = arith.divf %108, %109 : vector<8x8xf32>
    %c40 = arith.constant 40 : index
    %c0_46 = arith.constant 0 : index
    %111 = vector.load %arg8[%c40, %c0_46] : memref<64x32xf32, #tpu.memory_space<vmem>>, vector<8x32xf32>
    %cst_47 = arith.constant dense<0.000000e+00> : vector<8x32xf32>
    %112 = tpu.matmul %110, %111, %cst_47 {dimension_numbers = #tpu.dot_dimension_numbers<[1], [0], [0], [1], [0, 0, 1, 1], [], []>} : vector<8x8xf32>, vector<8x32xf32>, vector<8x32xf32> -> vector<8x32xf32>
    %113 = arith.addf %96, %112 : vector<8x32xf32>
    %114 = vector.extract_strided_slice %8 {offsets = [0, 48], sizes = [8, 8], strides = [1, 1]} : vector<8x64xf32> to vector<8x8xf32>
    %115 = vector.extract_strided_slice %11 {offsets = [0, 16], sizes = [16, 8], strides = [1, 1]} : vector<16x64xf32> to vector<16x8xf32>
    %116 = vector.extract_strided_slice %11 {offsets = [0, 48], sizes = [16, 8], strides = [1, 1]} : vector<16x64xf32> to vector<16x8xf32>
    %cst_48 = arith.constant dense<0.000000e+00> : vector<8x16xf32>
    %117 = tpu.matmul %114, %115, %cst_48 {dimension_numbers = #tpu.dot_dimension_numbers<[1], [1], [0], [0], [0, 0, 1, 0], [], []>} : vector<8x8xf32>, vector<16x8xf32>, vector<8x16xf32> -> vector<8x16xf32>
    %cst_49 = arith.constant dense<0xFF800000> : vector<8xf32>
    %118 = vector.multi_reduction <maximumf>, %117, %cst_49 [1] : vector<8x16xf32> to vector<8xf32>
    %119 = vector.shape_cast %118 : vector<8xf32> to vector<8x1xf32>
    %120 = vector.broadcast %119 : vector<8x1xf32> to vector<8x16xf32>
    %121 = arith.subf %117, %120 : vector<8x16xf32>
    %122 = math.exp %121 : vector<8x16xf32>
    %cst_50 = arith.constant dense<0.000000e+00> : vector<8xf32>
    %123 = vector.multi_reduction <add>, %122, %cst_50 [1] : vector<8x16xf32> to vector<8xf32>
    %124 = vector.shape_cast %123 : vector<8xf32> to vector<8x1xf32>
    %cst_51 = arith.constant dense<0.000000e+00> : vector<8x8xf32>
    %125 = tpu.matmul %122, %116, %cst_51 {dimension_numbers = #tpu.dot_dimension_numbers<[1], [0], [0], [1], [0, 0, 1, 1], [], []>} : vector<8x16xf32>, vector<16x8xf32>, vector<8x8xf32> -> vector<8x8xf32>
    %126 = vector.broadcast %124 : vector<8x1xf32> to vector<8x8xf32>
    %127 = arith.divf %125, %126 : vector<8x8xf32>
    %c48 = arith.constant 48 : index
    %c0_52 = arith.constant 0 : index
    %128 = vector.load %arg8[%c48, %c0_52] : memref<64x32xf32, #tpu.memory_space<vmem>>, vector<8x32xf32>
    %cst_53 = arith.constant dense<0.000000e+00> : vector<8x32xf32>
    %129 = tpu.matmul %127, %128, %cst_53 {dimension_numbers = #tpu.dot_dimension_numbers<[1], [0], [0], [1], [0, 0, 1, 1], [], []>} : vector<8x8xf32>, vector<8x32xf32>, vector<8x32xf32> -> vector<8x32xf32>
    %130 = arith.addf %113, %129 : vector<8x32xf32>
    %131 = vector.extract_strided_slice %8 {offsets = [0, 56], sizes = [8, 8], strides = [1, 1]} : vector<8x64xf32> to vector<8x8xf32>
    %132 = vector.extract_strided_slice %11 {offsets = [0, 24], sizes = [16, 8], strides = [1, 1]} : vector<16x64xf32> to vector<16x8xf32>
    %133 = vector.extract_strided_slice %11 {offsets = [0, 56], sizes = [16, 8], strides = [1, 1]} : vector<16x64xf32> to vector<16x8xf32>
    %cst_54 = arith.constant dense<0.000000e+00> : vector<8x16xf32>
    %134 = tpu.matmul %131, %132, %cst_54 {dimension_numbers = #tpu.dot_dimension_numbers<[1], [1], [0], [0], [0, 0, 1, 0], [], []>} : vector<8x8xf32>, vector<16x8xf32>, vector<8x16xf32> -> vector<8x16xf32>
    %cst_55 = arith.constant dense<0xFF800000> : vector<8xf32>
    %135 = vector.multi_reduction <maximumf>, %134, %cst_55 [1] : vector<8x16xf32> to vector<8xf32>
    %136 = vector.shape_cast %135 : vector<8xf32> to vector<8x1xf32>
    %137 = vector.broadcast %136 : vector<8x1xf32> to vector<8x16xf32>
    %138 = arith.subf %134, %137 : vector<8x16xf32>
    %139 = math.exp %138 : vector<8x16xf32>
    %cst_56 = arith.constant dense<0.000000e+00> : vector<8xf32>
    %140 = vector.multi_reduction <add>, %139, %cst_56 [1] : vector<8x16xf32> to vector<8xf32>
    %141 = vector.shape_cast %140 : vector<8xf32> to vector<8x1xf32>
    %cst_57 = arith.constant dense<0.000000e+00> : vector<8x8xf32>
    %142 = tpu.matmul %139, %133, %cst_57 {dimension_numbers = #tpu.dot_dimension_numbers<[1], [0], [0], [1], [0, 0, 1, 1], [], []>} : vector<8x16xf32>, vector<16x8xf32>, vector<8x8xf32> -> vector<8x8xf32>
    %143 = vector.broadcast %141 : vector<8x1xf32> to vector<8x8xf32>
    %144 = arith.divf %142, %143 : vector<8x8xf32>
    %c56 = arith.constant 56 : index
    %c0_58 = arith.constant 0 : index
    %145 = vector.load %arg8[%c56, %c0_58] : memref<64x32xf32, #tpu.memory_space<vmem>>, vector<8x32xf32>
    %cst_59 = arith.constant dense<0.000000e+00> : vector<8x32xf32>
    %146 = tpu.matmul %144, %145, %cst_59 {dimension_numbers = #tpu.dot_dimension_numbers<[1], [0], [0], [1], [0, 0, 1, 1], [], []>} : vector<8x8xf32>, vector<8x32xf32>, vector<8x32xf32> -> vector<8x32xf32>
    %147 = arith.addf %130, %146 : vector<8x32xf32>
    %c0_60 = arith.constant 0 : index
    %c0_61 = arith.constant 0 : index
    %148 = vector.load %arg9[%c0_60, %c0_61] : memref<1x32xf32, #tpu.memory_space<vmem>>, vector<1x32xf32>
    %149 = vector.broadcast %148 : vector<1x32xf32> to vector<8x32xf32>
    %150 = arith.addf %147, %149 : vector<8x32xf32>
    %c0_62 = arith.constant 0 : index
    %c0_63 = arith.constant 0 : index
    %c0_64 = arith.constant 0 : index
    %151 = vector.load %arg10[%c0_62, %c0_63, %c0_64] : memref<1x8x32xf32, #tpu.memory_space<vmem>>, vector<1x8x32xf32>
    %152 = vector.shape_cast %151 : vector<1x8x32xf32> to vector<8x32xf32>
    %153 = vector.shape_cast %150 : vector<8x32xf32> to vector<1x8x32xf32>
    tpu.vector_store %arg10[%c0_62, %c0_63, %c0_64], %153 {strides = array<i32>} : memref<1x8x32xf32, #tpu.memory_space<vmem>>, vector<1x8x32xf32>,
    return
  }
  func.func @transform_0(%arg0: i32, %arg1: i32) -> (i32, i32, i32) {
    %c0_i32 = arith.constant 0 : i32
    %c0_i32_0 = arith.constant 0 : i32
    return %arg0, %arg1, %c0_i32 : i32, i32, i32
  }
  func.func @transform_1(%arg0: i32, %arg1: i32) -> (i32, i32, i32) {
    %c0_i32 = arith.constant 0 : i32
    %c0_i32_0 = arith.constant 0 : i32
    %c0_i32_1 = arith.constant 0 : i32
    return %arg0, %c0_i32, %c0_i32_0 : i32, i32, i32
  }
  func.func @transform_2(%arg0: i32, %arg1: i32) -> (i32, i32, i32) {
    %c0_i32 = arith.constant 0 : i32
    %c0_i32_0 = arith.constant 0 : i32
    %c0_i32_1 = arith.constant 0 : i32
    return %arg0, %c0_i32, %c0_i32_0 : i32, i32, i32
  }
  func.func @transform_3(%arg0: i32, %arg1: i32) -> (i32, i32) {
    %c0_i32 = arith.constant 0 : i32
    %c0_i32_0 = arith.constant 0 : i32
    %c0_i32_1 = arith.constant 0 : i32
    return %c0_i32, %c0_i32_0 : i32, i32
  }
  func.func @transform_4(%arg0: i32, %arg1: i32) -> (i32, i32) {
    %c0_i32 = arith.constant 0 : i32
    %c0_i32_0 = arith.constant 0 : i32
    %c0_i32_1 = arith.constant 0 : i32
    return %c0_i32, %c0_i32_0 : i32, i32
  }
  func.func @transform_5(%arg0: i32, %arg1: i32) -> (i32, i32) {
    %c0_i32 = arith.constant 0 : i32
    %c0_i32_0 = arith.constant 0 : i32
    %c0_i32_1 = arith.constant 0 : i32
    return %c0_i32, %c0_i32_0 : i32, i32
  }
  func.func @transform_6(%arg0: i32, %arg1: i32) -> (i32, i32) {
    %c0_i32 = arith.constant 0 : i32
    %c0_i32_0 = arith.constant 0 : i32
    %c0_i32_1 = arith.constant 0 : i32
    return %c0_i32, %c0_i32_0 : i32, i32
  }
  func.func @transform_7(%arg0: i32, %arg1: i32) -> (i32, i32) {
    %c0_i32 = arith.constant 0 : i32
    %c0_i32_0 = arith.constant 0 : i32
    %c0_i32_1 = arith.constant 0 : i32
    return %c0_i32, %c0_i32_0 : i32, i32
  }
  func.func @transform_8(%arg0: i32, %arg1: i32) -> (i32, i32, i32) {
    %c0_i32 = arith.constant 0 : i32
    %c0_i32_0 = arith.constant 0 : i32
    return %arg0, %arg1, %c0_i32 : i32, i32, i32
  }
}

</mosaic_0001>

<llo_original>
// kernel: attention_global_forward.1
$region0: #{attention_global_forward.1}
  #allocation0 [shape = 'u32[]', space=smem, size = 0x4, offset = 0x4, fixed_abs, tag = 'smem constant byte address 0x4 - core index']
  #allocation1 [shape = 'u32[144,128]{1,0:T(1,128)}', space=vmem, size = 0x12000, scoped, tag = 'internal scratch']
  #allocation2 [shape = 'f32[16,64]{1,0:T(8,128)}', space=vmem, size = 0x2000, scoped, tag = 'scratch operand']
  #allocation3 [shape = 'f32[16,64]{1,0:T(8,128)}', space=vmem, size = 0x2000, scoped, tag = 'scratch operand']
  %s0 = inlined_call_operand.hbm [shape: f32[2,8,32], index: 0, kind: input, shape index: {}]
  %s1 = inlined_call_operand.vmem [shape: f32[2,16,32], index: 1, kind: input, shape index: {}]
  %s2 = inlined_call_operand.vmem [shape: f32[2,16,32], index: 2, kind: input, shape index: {}]
  %s3 = inlined_call_operand.vmem [shape: f32[32,64], index: 3, kind: input, shape index: {}]
  %s4 = inlined_call_operand.hbm [shape: f32[32,64], index: 4, kind: input, shape index: {}]
  %s5 = inlined_call_operand.hbm [shape: f32[32,64], index: 5, kind: input, shape index: {}]
  %s6 = inlined_call_operand.vmem [shape: f32[64,32], index: 6, kind: input, shape index: {}]
  %s7 = inlined_call_operand.vmem [shape: f32[1,32], index: 7, kind: input, shape index: {}]
  %s8 = inlined_call_operand.hbm [shape: f32[2,8,32], index: 8, kind: output, shape index: {}]
  %s9 = sld [smem:[#allocation0]]
  $region81: #{attention_global_forward.1} parent=0
    _
  %s11 = ssub.s32 1, %s9
  %s12 = scalar_select 0, %s11, %s9
  $region1: #{attention_global_forward.1} parent=0
    #allocation4 [shape = 'u8[8192]{0}', space=vmem, size = 0x2000, scoped, tag = 'input window, operand 0']
    #allocation5 [shape = 's32[2]{0}', space=sflag, size = 0x8, scoped, tag = 'scoped memory for attention_global_forward.1']
    #allocation6 [shape = 's32[2]{0}', space=sflag, size = 0x8, scoped, tag = 'scoped memory for attention_global_forward.1']
    #allocation7 [shape = 'u8[16384]{0}', space=vmem, size = 0x4000, scoped, tag = 'input window, operand 4, single buffered']
    #allocation8 [shape = 's32[1]{0}', space=sflag, size = 0x4, scoped, tag = 'scoped memory for attention_global_forward.1']
    #allocation9 [shape = 'u8[16384]{0}', space=vmem, size = 0x4000, scoped, tag = 'input window, operand 5, single buffered']
    #allocation10 [shape = 'u8[8192]{0}', space=vmem, size = 0x2000, scoped, tag = 'output window, operand 0']
    %13 = vsyncpa [#allocation5], 0
    %s14 = scalar_lea.sflag [#allocation5], 1
    %15 = vsyncpa %s14, 0
    %16 = vsyncpa [#allocation8], 0
    %17 = vsyncpa [#allocation6], 0
    %s18 = scalar_lea.sflag [#allocation6], 1
    %19 = vsyncpa %s18, 0
    loop: start=0, step=1, limit=4
    $region2: #{attention_global_forward.1} parent=1 // loop_pre_header
      _
    $region3: #{attention_global_forward.1} parent=1 // loop_header
      %s21 = sphi 0, %s25
      %p22 = scmp.ge.s32.totalorder %s21, 4
      %s28 = sphi 0, %s40
      %s29 = sphi 0, %s36
      %s30 = sphi 0, %s28
      %s31 = sphi 0, %s29
      %s32 = sphi 0, %s30
      %s33 = sphi 0, %s31
      %s45 = sphi 0, %s47
      %s48 = sphi 0, %s45
      %s49 = sphi 0, %s48
      %s65 = sphi 0, %s49
      %s71 = sphi 0, %s73
      %s74 = sphi 0, %s71
      %s75 = sphi 0, %s74
      %s91 = sphi 0, %s75
      %s97 = sphi 0, %s99
      %s100 = sphi 0, %s97
      %s101 = sphi 0, %s100
      %s117 = sphi 0, %s101
      %s121 = sphi 0, %s121
      %s123 = sphi 0, %s121
      %s124 = sphi 0, %s123
      %s138 = sphi 0, %s124
      %s142 = sphi 0, %s142
      %s144 = sphi 0, %s142
      %s145 = sphi 0, %s144
      %s159 = sphi 0, %s145
      %s163 = sphi 0, %s163
      %s165 = sphi 0, %s163
      %s166 = sphi 0, %s165
      %s180 = sphi 0, %s166
      %s184 = sphi 0, %s184
      %s186 = sphi 0, %s184
      %s187 = sphi 0, %s186
      %s201 = sphi 0, %s187
      %s205 = sphi 0, %s205
      %s207 = sphi 0, %s205
      %s208 = sphi 0, %s207
      %s222 = sphi 0, %s208
      %s230 = sphi 0, %s232
      %s233 = sphi 0, %s230
      %s234 = sphi 0, %s233
      %s250 = sphi 0, %s234
    $region4: #{attention_global_forward.1} parent=1 // loop_header_branch
      %24 = sbr.rel (%p22) target = $region8
    $region5: #{attention_global_forward.1} parent=1 // loop_body
      %s26 = ssub.s32 %s21, 1
      %s27 = ssub.s32 %s21, 2
      %s34 = sadd.s32 1, %s29
      %p35 = scmp.ge.s32.totalorder %s34, 1
      %s36 = scalar_select %p35, 0, %s34
      %s37 = sadd.s32 1, %s28
      %s38 = scalar_select %p35, %s37, %s28
      %p39 = scmp.ge.s32.totalorder %s38, 2
      %s40 = scalar_select %p39, 0, %s38
      %s41 = ssub.s32 %s28, %s40
      %s42 = ssub.s32 %s29, %s36
      %s43 = sor.u32 %s41, %s42
      %p44 = scmp.eq.s32.totalorder %s43, 0
      %s46 = sadd.s32 %s45, 1
      %s47 = scalar_select %p44, %s45, %s46
      %p50 = pneg %p44
      %p51 = scmp.eq.s32.totalorder %s21, 1
      %p52 = por %p50, %p51
      %p53 = scmp.ne.s32.totalorder %s45, %s48
      %p54 = scmp.eq.s32.totalorder %s21, 0
      %p55 = por %p53, %p54
      %p56 = scmp.ne.s32.totalorder %s45, %s48
      %p57 = scmp.eq.s32.totalorder %s26, 1
      %p58 = por %p56, %p57
      %p59 = scmp.ne.s32.totalorder %s48, %s49
      %p60 = scmp.eq.s32.totalorder %s26, 0
      %p61 = por %p59, %p60
      %p62 = scmp.ne.s32.totalorder %s48, %s49
      %p63 = scmp.eq.s32.totalorder %s27, 1
      %p64 = por %p62, %p63
      %p66 = scmp.ne.s32.totalorder %s49, %s65
      %p67 = scmp.eq.s32.totalorder %s27, 0
      %p68 = por %p66, %p67
      %s69 = ssub.s32 %s28, %s40
      %p70 = scmp.eq.s32.totalorder %s69, 0
      %s72 = sadd.s32 %s71, 1
      %s73 = scalar_select %p70, %s71, %s72
      %p76 = pneg %p70
      %p77 = scmp.eq.s32.totalorder %s21, 1
      %p78 = por %p76, %p77
      %p79 = scmp.ne.s32.totalorder %s71, %s74
      %p80 = scmp.eq.s32.totalorder %s21, 0
      %p81 = por %p79, %p80
      %p82 = scmp.ne.s32.totalorder %s71, %s74
      %p83 = scmp.eq.s32.totalorder %s26, 1
      %p84 = por %p82, %p83
      %p85 = scmp.ne.s32.totalorder %s74, %s75
      %p86 = scmp.eq.s32.totalorder %s26, 0
      %p87 = por %p85, %p86
      %p88 = scmp.ne.s32.totalorder %s74, %s75
      %p89 = scmp.eq.s32.totalorder %s27, 1
      %p90 = por %p88, %p89
      %p92 = scmp.ne.s32.totalorder %s75, %s91
      %p93 = scmp.eq.s32.totalorder %s27, 0
      %p94 = por %p92, %p93
      %s95 = ssub.s32 %s28, %s40
      %p96 = scmp.eq.s32.totalorder %s95, 0
      %s98 = sadd.s32 %s97, 1
      %s99 = scalar_select %p96, %s97, %s98
      %p102 = pneg %p96
      %p103 = scmp.eq.s32.totalorder %s21, 1
      %p104 = por %p102, %p103
      %p105 = scmp.ne.s32.totalorder %s97, %s100
      %p106 = scmp.eq.s32.totalorder %s21, 0
      %p107 = por %p105, %p106
      %p108 = scmp.ne.s32.totalorder %s97, %s100
      %p109 = scmp.eq.s32.totalorder %s26, 1
      %p110 = por %p108, %p109
      %p111 = scmp.ne.s32.totalorder %s100, %s101
      %p112 = scmp.eq.s32.totalorder %s26, 0
      %p113 = por %p111, %p112
      %p114 = scmp.ne.s32.totalorder %s100, %s101
      %p115 = scmp.eq.s32.totalorder %s27, 1
      %p116 = por %p114, %p115
      %p118 = scmp.ne.s32.totalorder %s101, %s117
      %p119 = scmp.eq.s32.totalorder %s27, 0
      %p120 = por %p118, %p119
      %s122 = sadd.s32 %s121, 1
      %p125 = scmp.eq.s32.totalorder %s21, 1
      %p126 = scmp.ne.s32.totalorder %s121, %s123
      %p127 = scmp.eq.s32.totalorder %s21, 0
      %p128 = por %p126, %p127
      %p129 = scmp.ne.s32.totalorder %s121, %s123
      %p130 = scmp.eq.s32.totalorder %s26, 1
      %p131 = por %p129, %p130
      %p132 = scmp.ne.s32.totalorder %s123, %s124
      %p133 = scmp.eq.s32.totalorder %s26, 0
      %p134 = por %p132, %p133
      %p135 = scmp.ne.s32.totalorder %s123, %s124
      %p136 = scmp.eq.s32.totalorder %s27, 1
      %p137 = por %p135, %p136
      %p139 = scmp.ne.s32.totalorder %s124, %s138
      %p140 = scmp.eq.s32.totalorder %s27, 0
      %p141 = por %p139, %p140
      %s143 = sadd.s32 %s142, 1
      %p146 = scmp.eq.s32.totalorder %s21, 1
      %p147 = scmp.ne.s32.totalorder %s142, %s144
      %p148 = scmp.eq.s32.totalorder %s21, 0
      %p149 = por %p147, %p148
      %p150 = scmp.ne.s32.totalorder %s142, %s144
      %p151 = scmp.eq.s32.totalorder %s26, 1
      %p152 = por %p150, %p151
      %p153 = scmp.ne.s32.totalorder %s144, %s145
      %p154 = scmp.eq.s32.totalorder %s26, 0
      %p155 = por %p153, %p154
      %p156 = scmp.ne.s32.totalorder %s144, %s145
      %p157 = scmp.eq.s32.totalorder %s27, 1
      %p158 = por %p156, %p157
      %p160 = scmp.ne.s32.totalorder %s145, %s159
      %p161 = scmp.eq.s32.totalorder %s27, 0
      %p162 = por %p160, %p161
      %s164 = sadd.s32 %s163, 1
      %p167 = scmp.eq.s32.totalorder %s21, 1
      %p168 = scmp.ne.s32.totalorder %s163, %s165
      %p169 = scmp.eq.s32.totalorder %s21, 0
      %p170 = por %p168, %p169
      %p171 = scmp.ne.s32.totalorder %s163, %s165
      %p172 = scmp.eq.s32.totalorder %s26, 1
      %p173 = por %p171, %p172
      %p174 = scmp.ne.s32.totalorder %s165, %s166
      %p175 = scmp.eq.s32.totalorder %s26, 0
      %p176 = por %p174, %p175
      %p177 = scmp.ne.s32.totalorder %s165, %s166
      %p178 = scmp.eq.s32.totalorder %s27, 1
      %p179 = por %p177, %p178
      %p181 = scmp.ne.s32.totalorder %s166, %s180
      %p182 = scmp.eq.s32.totalorder %s27, 0
      %p183 = por %p181, %p182
      %s185 = sadd.s32 %s184, 1
      %p188 = scmp.eq.s32.totalorder %s21, 1
      %p189 = scmp.ne.s32.totalorder %s184, %s186
      %p190 = scmp.eq.s32.totalorder %s21, 0
      %p191 = por %p189, %p190
      %p192 = scmp.ne.s32.totalorder %s184, %s186
      %p193 = scmp.eq.s32.totalorder %s26, 1
      %p194 = por %p192, %p193
      %p195 = scmp.ne.s32.totalorder %s186, %s187
      %p196 = scmp.eq.s32.totalorder %s26, 0
      %p197 = por %p195, %p196
      %p198 = scmp.ne.s32.totalorder %s186, %s187
      %p199 = scmp.eq.s32.totalorder %s27, 1
      %p200 = por %p198, %p199
      %p202 = scmp.ne.s32.totalorder %s187, %s201
      %p203 = scmp.eq.s32.totalorder %s27, 0
      %p204 = por %p202, %p203
      %s206 = sadd.s32 %s205, 1
      %p209 = scmp.eq.s32.totalorder %s21, 1
      %p210 = scmp.ne.s32.totalorder %s205, %s207
      %p211 = scmp.eq.s32.totalorder %s21, 0
      %p212 = por %p210, %p211
      %p213 = scmp.ne.s32.totalorder %s205, %s207
      %p214 = scmp.eq.s32.totalorder %s26, 1
      %p215 = por %p213, %p214
      %p216 = scmp.ne.s32.totalorder %s207, %s208
      %p217 = scmp.eq.s32.totalorder %s26, 0
      %p218 = por %p216, %p217
      %p219 = scmp.ne.s32.totalorder %s207, %s208
      %p220 = scmp.eq.s32.totalorder %s27, 1
      %p221 = por %p219, %p220
      %p223 = scmp.ne.s32.totalorder %s208, %s222
      %p224 = scmp.eq.s32.totalorder %s27, 0
      %p225 = por %p223, %p224
      %s226 = ssub.s32 %s28, %s40
      %s227 = ssub.s32 %s29, %s36
      %s228 = sor.u32 %s226, %s227
      %p229 = scmp.eq.s32.totalorder %s228, 0
      %s231 = sadd.s32 %s230, 1
      %s232 = scalar_select %p229, %s230, %s231
      %p235 = pneg %p229
      %p236 = scmp.eq.s32.totalorder %s21, 1
      %p237 = por %p235, %p236
      %p238 = scmp.ne.s32.totalorder %s230, %s233
      %p239 = scmp.eq.s32.totalorder %s21, 0
      %p240 = por %p238, %p239
      %p241 = scmp.ne.s32.totalorder %s230, %s233
      %p242 = scmp.eq.s32.totalorder %s26, 1
      %p243 = por %p241, %p242
      %p244 = scmp.ne.s32.totalorder %s233, %s234
      %p245 = scmp.eq.s32.totalorder %s26, 0
      %p246 = por %p244, %p245
      %p247 = scmp.ne.s32.totalorder %s233, %s234
      %p248 = scmp.eq.s32.totalorder %s27, 1
      %p249 = por %p247, %p248
      %p251 = scmp.ne.s32.totalorder %s234, %s250
      %p252 = scmp.eq.s32.totalorder %s27, 0
      %p253 = por %p251, %p252
      %p254 = scmp.le.s32.totalorder 1, %s21
      %p255 = scmp.lt.s32.totalorder %s21, 3
      %p256 = pnand %p254, %p255
      %p257 = pneg %p256
      // Predicated region
      $region9: #{attention_global_forward.1} parent=5 // pred_check
        _
      $region10: #{attention_global_forward.1} parent=5 // pred_check_branch
        %259 = sbr.rel (%p256) target = $region12
      $region11: #{attention_global_forward.1} parent=5 // pred_region
        %s260 = ssub.s32 %s21, 1
        // Predicated region
        $region13: #{attention_global_forward.1} parent=11 // pred_check
          %p261 = pneg %p134
        $region14: #{attention_global_forward.1} parent=11 // pred_check_branch
          %263 = sbr.rel (%p261) target = $region16
        $region15: #{attention_global_forward.1} parent=11 // pred_region
          _
        $region16: #{attention_global_forward.1} parent=11 // pred_fallthru
          _
        // Predicated region
        $region17: #{attention_global_forward.1} parent=11 // pred_check
          %p264 = pneg %p155
        $region18: #{attention_global_forward.1} parent=11 // pred_check_branch
          %266 = sbr.rel (%p264) target = $region20
        $region19: #{attention_global_forward.1} parent=11 // pred_region
          %s268 = ssub.s32 512, 512
          %269 = vsyncadd [#allocation8], %s268
          %s270 = sshll.u32 [#allocation7], 4
          %s271 = int_to_ptr.vmem [resolvable:$true] %s270
          %276 = dma.hbm_to_vmem [thread:$0]  %s4, 512, %s271, [#allocation8], 128, 128, 8
        $region20: #{attention_global_forward.1} parent=11 // pred_fallthru
          _
        // Predicated region
        $region21: #{attention_global_forward.1} parent=11 // pred_check
          %p277 = pneg %p176
        $region22: #{attention_global_forward.1} parent=11 // pred_check_branch
          %279 = sbr.rel (%p277) target = $region24
        $region23: #{attention_global_forward.1} parent=11 // pred_region
          %s281 = ssub.s32 512, 512
          %282 = vsyncadd [#allocation8], %s281
          %s283 = sshll.u32 [#allocation9], 4
          %s284 = int_to_ptr.vmem [resolvable:$true] %s283
          %289 = dma.hbm_to_vmem [thread:$0]  %s5, 512, %s284, [#allocation8], 128, 128, 8
        $region24: #{attention_global_forward.1} parent=11 // pred_fallthru
          _
        // Predicated region
        $region25: #{attention_global_forward.1} parent=11 // pred_check
          %p290 = pneg %p197
        $region26: #{attention_global_forward.1} parent=11 // pred_check_branch
          %292 = sbr.rel (%p290) target = $region28
        $region27: #{attention_global_forward.1} parent=11 // pred_region
          _
        $region28: #{attention_global_forward.1} parent=11 // pred_fallthru
          _
        // Predicated region
        $region29: #{attention_global_forward.1} parent=11 // pred_check
          %p293 = pneg %p218
        $region30: #{attention_global_forward.1} parent=11 // pred_check_branch
          %295 = sbr.rel (%p293) target = $region32
        $region31: #{attention_global_forward.1} parent=11 // pred_region
          _
        $region32: #{attention_global_forward.1} parent=11 // pred_fallthru
          _
      $region12: #{attention_global_forward.1} parent=5 // pred_fallthru
        _
      %p296 = scmp.lt.s32.totalorder %s21, 2
      // Predicated region
      $region33: #{attention_global_forward.1} parent=5 // pred_check
        %p297 = pneg %p296
      $region34: #{attention_global_forward.1} parent=5 // pred_check_branch
        %299 = sbr.rel (%p297) target = $region36
      $region35: #{attention_global_forward.1} parent=5 // pred_region
        // Predicated region
        $region37: #{attention_global_forward.1} parent=35 // pred_check
          %p300 = pneg %p55
        $region38: #{attention_global_forward.1} parent=35 // pred_check_branch
          %302 = sbr.rel (%p300) target = $region40
        $region39: #{attention_global_forward.1} parent=35 // pred_region
          %s303 = sand.u32 %s45, 1
          %s304 = scalar_lea.sflag [#allocation5], %s303
          %s305 = sand.u32 %s45, 1
          %s306 = smul.addr %s305, 8
          %s307 = scalar_lea.vmem [#allocation4], %s306
          %s309 = ssub.s32 128, 128
          %310 = vsyncadd %s304, %s309
          %s311 = sadd.s32 %s29, %s28
          %s312 = smul.addr %s311, 128
          %s313 = scalar_lea.hbm %s0, %s312
          %s315 = sshll.u32 %s307, 4
          %s316 = int_to_ptr.vmem [resolvable:$true] %s315
          %318 = dma.hbm_to_vmem [thread:$0]  %s313, 128, %s316, %s304
        $region40: #{attention_global_forward.1} parent=35 // pred_fallthru
          _
        // Predicated region
        $region41: #{attention_global_forward.1} parent=35 // pred_check
          %p319 = pneg %p81
        $region42: #{attention_global_forward.1} parent=35 // pred_check_branch
          %321 = sbr.rel (%p319) target = $region44
        $region43: #{attention_global_forward.1} parent=35 // pred_region
          %p322 = scmp.lt.s32.totalorder %s28, 1
          %s323 = scalar_select %p322, %s28, 1
          %s324 = smul.addr %s323, 2
          %s325 = smul.addr %s324, 8
          %s326 = scalar_lea.vmem %s1, %s325
        $region44: #{attention_global_forward.1} parent=35 // pred_fallthru
          _
        // Predicated region
        $region45: #{attention_global_forward.1} parent=35 // pred_check
          %p327 = pneg %p107
        $region46: #{attention_global_forward.1} parent=35 // pred_check_branch
          %329 = sbr.rel (%p327) target = $region48
        $region47: #{attention_global_forward.1} parent=35 // pred_region
          %p330 = scmp.lt.s32.totalorder %s28, 1
          %s331 = scalar_select %p330, %s28, 1
          %s332 = smul.addr %s331, 2
          %s333 = smul.addr %s332, 8
          %s334 = scalar_lea.vmem %s2, %s333
        $region48: #{attention_global_forward.1} parent=35 // pred_fallthru
          _
      $region36: #{attention_global_forward.1} parent=5 // pred_fallthru
        _
      %p335 = scmp.le.s32.totalorder 1, %s21
      %p336 = scmp.lt.s32.totalorder %s21, 3
      %p337 = pnand %p335, %p336
      %p338 = pneg %p337
      // Predicated region
      $region49: #{attention_global_forward.1} parent=5 // pred_check
        _
      $region50: #{attention_global_forward.1} parent=5 // pred_check_branch
        %340 = sbr.rel (%p337) target = $region52
      $region51: #{attention_global_forward.1} parent=5 // pred_region
        %s341 = ssub.s32 %s21, 1
        %s342 = sand.u32 %s48, 1
        %s343 = scalar_lea.sflag [#allocation5], %s342
        %s344 = sand.u32 %s48, 1
        %s345 = smul.addr %s344, 8
        %s346 = scalar_lea.vmem [#allocation4], %s345
        // Predicated region
        $region53: #{attention_global_forward.1} parent=51 // pred_check
          %p347 = pneg %p61
        $region54: #{attention_global_forward.1} parent=51 // pred_check_branch
          %349 = sbr.rel (%p347) target = $region56
        $region55: #{attention_global_forward.1} parent=51 // pred_region
          %350 = dma.done %s343, 128
        $region56: #{attention_global_forward.1} parent=51 // pred_fallthru
          _
        // Predicated region
        $region57: #{attention_global_forward.1} parent=51 // pred_check
          %p351 = pneg %p155
        $region58: #{attention_global_forward.1} parent=51 // pred_check_branch
          %353 = sbr.rel (%p351) target = $region60
        $region59: #{attention_global_forward.1} parent=51 // pred_region
          %354 = dma.done [#allocation8], 512
        $region60: #{attention_global_forward.1} parent=51 // pred_fallthru
          _
        // Predicated region
        $region61: #{attention_global_forward.1} parent=51 // pred_check
          %p355 = pneg %p176
        $region62: #{attention_global_forward.1} parent=51 // pred_check_branch
          %357 = sbr.rel (%p355) target = $region64
        $region63: #{attention_global_forward.1} parent=51 // pred_region
          %358 = dma.done [#allocation8], 512
        $region64: #{attention_global_forward.1} parent=51 // pred_fallthru
          _
        %s359 = sand.u32 %s48, 1
        %s360 = scalar_lea.sflag [#allocation5], %s359
        %s361 = sand.u32 %s48, 1
        %s362 = smul.addr %s361, 8
        %s363 = scalar_lea.vmem [#allocation4], %s362
        %p364 = pneg %p61
        %p365 = pneg %p58
        %p366 = scmp.lt.s32.totalorder %s30, 1
        %s367 = scalar_select %p366, %s30, 1
        %s368 = smul.addr %s367, 2
        %s369 = smul.addr %s368, 8
        %s370 = scalar_lea.vmem %s1, %s369
        %p371 = pneg %p87
        %p372 = pneg %p84
        %p373 = scmp.lt.s32.totalorder %s30, 1
        %s374 = scalar_select %p373, %s30, 1
        %s375 = smul.addr %s374, 2
        %s376 = smul.addr %s375, 8
        %s377 = scalar_lea.vmem %s2, %s376
        %p378 = pneg %p113
        %p379 = pneg %p110
        %p380 = pneg %p134
        %p381 = pneg %p131
        %p382 = pneg %p155
        %p383 = pneg %p152
        %p384 = pneg %p176
        %p385 = pneg %p173
        %p386 = pneg %p197
        %p387 = pneg %p194
        %p388 = pneg %p218
        %p389 = pneg %p215
        %p390 = pneg %p246
        %p391 = pneg %p243
        %s392 = sand.u32 %s233, 1
        %s393 = scalar_lea.sflag [#allocation6], %s392
        %s394 = sand.u32 %s233, 1
        %s395 = smul.addr %s394, 8
        %s396 = scalar_lea.vmem [#allocation10], %s395
        %p397 = scmp.lt.s32.totalorder %s30, 1
        %s398 = scalar_select %p397, %s30, 1
        %s399 = smul.addr %s398, 2
        %s400 = smul.addr %s399, 8
        %s401 = scalar_lea.vmem %s1, %s400
        %p402 = scmp.lt.s32.totalorder %s30, 1
        %s403 = scalar_select %p402, %s30, 1
        %s404 = smul.addr %s403, 2
        %s405 = smul.addr %s404, 8
        %s406 = scalar_lea.vmem %s2, %s405
        %p407 = scmp.eq.s32.totalorder %s31, 0
        // Predicated region
        $region65: #{attention_global_forward.1} parent=51 // pred_check
          %p408 = pneg %p407
        $region66: #{attention_global_forward.1} parent=51 // pred_check_branch
          %410 = sbr.rel (%p408) target = $region68
        $region67: #{attention_global_forward.1} parent=51 // pred_region
          %v411 = vld [vmem:[%s401] sm:$0xff]
          %v412 = vld [vmem:[%s401 + $0x8] sm:$0xff]
          %v413 = vld [vmem:[#allocation7] sm:$0xff]
          %v414 = vld [vmem:[#allocation7 + $0x8] sm:$0xff]
          %v415 = vld [vmem:[#allocation7 + $0x10] sm:$0xff]
          %v416 = vld [vmem:[#allocation7 + $0x18] sm:$0xff]
          %vm417 = vcmask 261120
          %v419 = vsel %vm417, %v411, 0
          %v422 = vsel %vm417, %v412, 0
          %424 = vmatprep.subr.mxu0 0.0
          %425 = vmatpush1.msra.mxu0 0.0
          %426 = vmatprep.subr.mxu0 0.0
          %427 = vmatpush1.msra.mxu0 0.0
          %428 = vmatprep.subr.mxu0 0.0
          %429 = vmatpush1.msra.mxu0 0.0
          %430 = vmatprep.subr.mxu0 0.0
          %431 = vmatpush1.msra.mxu0 0.0
          %432 = vmatprep.subr.mxu0 0.0
          %433 = vmatpush1.msra.mxu0 0.0
          %434 = vmatprep.subr.mxu0 0.0
          %435 = vmatpush1.msra.mxu0 0.0
          %436 = vmatprep.subr.mxu0 0.0
          %437 = vmatpush1.msra.mxu0 0.0
          %438 = vmatprep.subr.mxu0 0.0
          %439 = vmatpush1.msra.mxu0 0.0
          %440 = vmatprep.subr.mxu0 0.0
          %441 = vmatpush1.msra.mxu0 0.0
          %442 = vmatprep.subr.mxu0 0.0
          %443 = vmatpush1.msra.mxu0 0.0
          %444 = vmatprep.subr.mxu0 0.0
          %445 = vmatpush1.msra.mxu0 0.0
          %446 = vmatprep.subr.mxu0 0.0
          %447 = vmatpush1.msra.mxu0 0.0
          %448 = vmatprep.subr.mxu0 0.0
          %449 = vmatpush1.msra.mxu0 %v416
          %450 = vmatprep.subr.mxu0 0.0
          %451 = vmatpush1.msra.mxu0 %v415
          %452 = vmatprep.subr.mxu0 0.0
          %453 = vmatpush1.msra.mxu0 %v414
          %454 = vmatprep.subr.mxu0 0.0
          %455 = vmatpush1.msra.mxu0 %v413
          %456 = vmatprep.subr.mxu0 0.0
          %457 = vmatpush2.msra.mxu0 0.0
          %458 = vmatprep.subr.mxu0 0.0
          %459 = vmatpush2.msra.mxu0 0.0
          %460 = vmatprep.subr.mxu0 0.0
          %461 = vmatpush2.msra.mxu0 0.0
          %462 = vmatprep.subr.mxu0 0.0
          %463 = vmatpush2.msra.mxu0 0.0
          %464 = vmatprep.subr.mxu0 0.0
          %465 = vmatpush2.msra.mxu0 0.0
          %466 = vmatprep.subr.mxu0 0.0
          %467 = vmatpush2.msra.mxu0 0.0
          %468 = vmatprep.subr.mxu0 0.0
          %469 = vmatpush2.msra.mxu0 0.0
          %470 = vmatprep.subr.mxu0 0.0
          %471 = vmatpush2.msra.mxu0 0.0
          %472 = vmatprep.subr.mxu0 0.0
          %473 = vmatpush2.msra.mxu0 0.0
          %474 = vmatprep.subr.mxu0 0.0
          %475 = vmatpush2.msra.mxu0 0.0
          %476 = vmatprep.subr.mxu0 0.0
          %477 = vmatpush2.msra.mxu0 0.0
          %478 = vmatprep.subr.mxu0 0.0
          %479 = vmatpush2.msra.mxu0 0.0
          %480 = vmatprep.subr.mxu0 0.0
          %481 = vmatpush2.msra.mxu0 0.0
          %482 = vmatprep.subr.mxu0 0.0
          %483 = vmatpush2.msra.mxu0 0.0
          %484 = vmatprep.subr.mxu0 0.0
          %485 = vmatpush2.msra.mxu0 0.0
          %486 = vmatprep.subr.mxu0 0.0
          %487 = vmatpush2.msra.mxu0 0.0
          %488 = vmatprep.mubr.f32.mxu0 0.0
          %489 = vmatmul.mubr.f32.gmra.mxu0 %v419
          %v490 = vpop.f32.mrf.mxu0
          %v491 = vadd.f32 0.0, %v490
          %v492 = vpop.f32.mrf.mxu0
          %493 = vmatprep.mubr.f32.mxu0 0.0
          %494 = vmatmul.mubr.f32.gmra.mxu0 %v422
          %v495 = vpop.f32.mrf.mxu0
          %v496 = vadd.f32 0.0, %v495
          %v497 = vpop.f32.mrf.mxu0
          %498 = vdwg.mxu0
          %vm499 = vcmask 523264
          %500 = vst.msk [vmem:[#allocation2] sm:$0xff] %vm499, %v491
          %501 = vst.msk [vmem:[#allocation2 + $0x8] sm:$0xff] %vm499, %v496
          %v502 = vld [vmem:[%s406] sm:$0xff]
          %v503 = vld [vmem:[%s406 + $0x8] sm:$0xff]
          %v504 = vld [vmem:[#allocation9] sm:$0xff]
          %v505 = vld [vmem:[#allocation9 + $0x8] sm:$0xff]
          %v506 = vld [vmem:[#allocation9 + $0x10] sm:$0xff]
          %v507 = vld [vmem:[#allocation9 + $0x18] sm:$0xff]
          %v509 = vsel %vm417, %v502, 0
          %v512 = vsel %vm417, %v503, 0
          %514 = vmatprep.subr.mxu0 0.0
          %515 = vmatpush1.msra.mxu0 0.0
          %516 = vmatprep.subr.mxu0 0.0
          %517 = vmatpush1.msra.mxu0 0.0
          %518 = vmatprep.subr.mxu0 0.0
          %519 = vmatpush1.msra.mxu0 0.0
          %520 = vmatprep.subr.mxu0 0.0
          %521 = vmatpush1.msra.mxu0 0.0
          %522 = vmatprep.subr.mxu0 0.0
          %523 = vmatpush1.msra.mxu0 0.0
          %524 = vmatprep.subr.mxu0 0.0
          %525 = vmatpush1.msra.mxu0 0.0
          %526 = vmatprep.subr.mxu0 0.0
          %527 = vmatpush1.msra.mxu0 0.0
          %528 = vmatprep.subr.mxu0 0.0
          %529 = vmatpush1.msra.mxu0 0.0
          %530 = vmatprep.subr.mxu0 0.0
          %531 = vmatpush1.msra.mxu0 0.0
          %532 = vmatprep.subr.mxu0 0.0
          %533 = vmatpush1.msra.mxu0 0.0
          %534 = vmatprep.subr.mxu0 0.0
          %535 = vmatpush1.msra.mxu0 0.0
          %536 = vmatprep.subr.mxu0 0.0
          %537 = vmatpush1.msra.mxu0 0.0
          %538 = vmatprep.subr.mxu0 0.0
          %539 = vmatpush1.msra.mxu0 %v507
          %540 = vmatprep.subr.mxu0 0.0
          %541 = vmatpush1.msra.mxu0 %v506
          %542 = vmatprep.subr.mxu0 0.0
          %543 = vmatpush1.msra.mxu0 %v505
          %544 = vmatprep.subr.mxu0 0.0
          %545 = vmatpush1.msra.mxu0 %v504
          %546 = vmatprep.subr.mxu0 0.0
          %547 = vmatpush2.msra.mxu0 0.0
          %548 = vmatprep.subr.mxu0 0.0
          %549 = vmatpush2.msra.mxu0 0.0
          %550 = vmatprep.subr.mxu0 0.0
          %551 = vmatpush2.msra.mxu0 0.0
          %552 = vmatprep.subr.mxu0 0.0
          %553 = vmatpush2.msra.mxu0 0.0
          %554 = vmatprep.subr.mxu0 0.0
          %555 = vmatpush2.msra.mxu0 0.0
          %556 = vmatprep.subr.mxu0 0.0
          %557 = vmatpush2.msra.mxu0 0.0
          %558 = vmatprep.subr.mxu0 0.0
          %559 = vmatpush2.msra.mxu0 0.0
          %560 = vmatprep.subr.mxu0 0.0
          %561 = vmatpush2.msra.mxu0 0.0
          %562 = vmatprep.subr.mxu0 0.0
          %563 = vmatpush2.msra.mxu0 0.0
          %564 = vmatprep.subr.mxu0 0.0
          %565 = vmatpush2.msra.mxu0 0.0
          %566 = vmatprep.subr.mxu0 0.0
          %567 = vmatpush2.msra.mxu0 0.0
          %568 = vmatprep.subr.mxu0 0.0
          %569 = vmatpush2.msra.mxu0 0.0
          %570 = vmatprep.subr.mxu0 0.0
          %571 = vmatpush2.msra.mxu0 0.0
          %572 = vmatprep.subr.mxu0 0.0
          %573 = vmatpush2.msra.mxu0 0.0
          %574 = vmatprep.subr.mxu0 0.0
          %575 = vmatpush2.msra.mxu0 0.0
          %576 = vmatprep.subr.mxu0 0.0
          %577 = vmatpush2.msra.mxu0 0.0
          %578 = vmatprep.mubr.f32.mxu0 0.0
          %579 = vmatmul.mubr.f32.gmra.mxu0 %v509
          %v580 = vpop.f32.mrf.mxu0
          %v581 = vadd.f32 0.0, %v580
          %v582 = vpop.f32.mrf.mxu0
          %583 = vmatprep.mubr.f32.mxu0 0.0
          %584 = vmatmul.mubr.f32.gmra.mxu0 %v512
          %v585 = vpop.f32.mrf.mxu0
          %v586 = vadd.f32 0.0, %v585
          %v587 = vpop.f32.mrf.mxu0
          %588 = vdwg.mxu0
          %589 = vst.msk [vmem:[#allocation3] sm:$0xff] %vm499, %v581
          %590 = vst.msk [vmem:[#allocation3 + $0x8] sm:$0xff] %vm499, %v586
        $region68: #{attention_global_forward.1} parent=51 // pred_fallthru
          _
        %v591 = vld [vmem:[%s346] sm:$0xff]
        %v592 = vld [vmem:[%s3] sm:$0xff]
        %v593 = vld [vmem:[%s3 + $0x8] sm:$0xff]
        %v594 = vld [vmem:[%s3 + $0x10] sm:$0xff]
        %v595 = vld [vmem:[%s3 + $0x18] sm:$0xff]
        %vm596 = vcmask 261120
        %v598 = vsel %vm596, %v591, 0
        %600 = vmatprep.subr.mxu0 0.0
        %601 = vmatpush1.msra.mxu0 0.0
        %602 = vmatprep.subr.mxu0 0.0
        %603 = vmatpush1.msra.mxu0 0.0
        %604 = vmatprep.subr.mxu0 0.0
        %605 = vmatpush1.msra.mxu0 0.0
        %606 = vmatprep.subr.mxu0 0.0
        %607 = vmatpush1.msra.mxu0 0.0
        %608 = vmatprep.subr.mxu0 0.0
        %609 = vmatpush1.msra.mxu0 0.0
        %610 = vmatprep.subr.mxu0 0.0
        %611 = vmatpush1.msra.mxu0 0.0
        %612 = vmatprep.subr.mxu0 0.0
        %613 = vmatpush1.msra.mxu0 0.0
        %614 = vmatprep.subr.mxu0 0.0
        %615 = vmatpush1.msra.mxu0 0.0
        %616 = vmatprep.subr.mxu0 0.0
        %617 = vmatpush1.msra.mxu0 0.0
        %618 = vmatprep.subr.mxu0 0.0
        %619 = vmatpush1.msra.mxu0 0.0
        %620 = vmatprep.subr.mxu0 0.0
        %621 = vmatpush1.msra.mxu0 0.0
        %622 = vmatprep.subr.mxu0 0.0
        %623 = vmatpush1.msra.mxu0 0.0
        %624 = vmatprep.subr.mxu0 0.0
        %625 = vmatpush1.msra.mxu0 %v595
        %626 = vmatprep.subr.mxu0 0.0
        %627 = vmatpush1.msra.mxu0 %v594
        %628 = vmatprep.subr.mxu0 0.0
        %629 = vmatpush1.msra.mxu0 %v593
        %630 = vmatprep.subr.mxu0 0.0
        %631 = vmatpush1.msra.mxu0 %v592
        %632 = vmatprep.subr.mxu0 0.0
        %633 = vmatpush2.msra.mxu0 0.0
        %634 = vmatprep.subr.mxu0 0.0
        %635 = vmatpush2.msra.mxu0 0.0
        %636 = vmatprep.subr.mxu0 0.0
        %637 = vmatpush2.msra.mxu0 0.0
        %638 = vmatprep.subr.mxu0 0.0
        %639 = vmatpush2.msra.mxu0 0.0
        %640 = vmatprep.subr.mxu0 0.0
        %641 = vmatpush2.msra.mxu0 0.0
        %642 = vmatprep.subr.mxu0 0.0
        %643 = vmatpush2.msra.mxu0 0.0
        %644 = vmatprep.subr.mxu0 0.0
        %645 = vmatpush2.msra.mxu0 0.0
        %646 = vmatprep.subr.mxu0 0.0
        %647 = vmatpush2.msra.mxu0 0.0
        %648 = vmatprep.subr.mxu0 0.0
        %649 = vmatpush2.msra.mxu0 0.0
        %650 = vmatprep.subr.mxu0 0.0
        %651 = vmatpush2.msra.mxu0 0.0
        %652 = vmatprep.subr.mxu0 0.0
        %653 = vmatpush2.msra.mxu0 0.0
        %654 = vmatprep.subr.mxu0 0.0
        %655 = vmatpush2.msra.mxu0 0.0
        %656 = vmatprep.subr.mxu0 0.0
        %657 = vmatpush2.msra.mxu0 0.0
        %658 = vmatprep.subr.mxu0 0.0
        %659 = vmatpush2.msra.mxu0 0.0
        %660 = vmatprep.subr.mxu0 0.0
        %661 = vmatpush2.msra.mxu0 0.0
        %662 = vmatprep.subr.mxu0 0.0
        %663 = vmatpush2.msra.mxu0 0.0
        %664 = vmatprep.mubr.f32.mxu0 0.0
        %665 = vmatmul.mubr.f32.gmra.mxu0 %v598
        %v666 = vpop.f32.mrf.mxu0
        %v667 = vadd.f32 0.0, %v666
        %v668 = vpop.f32.mrf.mxu0
        %669 = vdwg.mxu0
        %v670 = vmul.f32 %v667, 0.35355338
        %v671 = vld [vmem:[#allocation2] sm:$0xff]
        %v672 = vld [vmem:[#allocation2 + $0x8] sm:$0xff]
        %v673 = vld [vmem:[#allocation3] sm:$0xff]
        %v674 = vld [vmem:[#allocation3 + $0x8] sm:$0xff]
        %vm675 = vcmask 64512
        %v677 = vsel %vm675, %v670, 0
        %v680 = vsel %vm675, %v671, 0
        %v683 = vsel %vm675, %v672, 0
        %685 = vmatprep.subr.mxu0 0.0
        %686 = vmatpush1.xpose.msra.mxu0 0.0
        %687 = vmatprep.subr.mxu0 0.0
        %688 = vmatpush1.xpose.msra.mxu0 0.0
        %689 = vmatprep.subr.mxu0 0.0
        %690 = vmatpush1.xpose.msra.mxu0 0.0
        %691 = vmatprep.subr.mxu0 0.0
        %692 = vmatpush1.xpose.msra.mxu0 0.0
        %693 = vmatprep.subr.mxu0 0.0
        %694 = vmatpush1.xpose.msra.mxu0 0.0
        %695 = vmatprep.subr.mxu0 0.0
        %696 = vmatpush1.xpose.msra.mxu0 0.0
        %697 = vmatprep.subr.mxu0 0.0
        %698 = vmatpush1.xpose.msra.mxu0 0.0
        %699 = vmatprep.subr.mxu0 0.0
        %700 = vmatpush1.xpose.msra.mxu0 0.0
        %701 = vmatprep.subr.mxu0 0.0
        %702 = vmatpush1.xpose.msra.mxu0 0.0
        %703 = vmatprep.subr.mxu0 0.0
        %704 = vmatpush1.xpose.msra.mxu0 0.0
        %705 = vmatprep.subr.mxu0 0.0
        %706 = vmatpush1.xpose.msra.mxu0 0.0
        %707 = vmatprep.subr.mxu0 0.0
        %708 = vmatpush1.xpose.msra.mxu0 0.0
        %709 = vmatprep.subr.mxu0 0.0
        %710 = vmatpush1.xpose.msra.mxu0 0.0
        %711 = vmatprep.subr.mxu0 0.0
        %712 = vmatpush1.xpose.msra.mxu0 0.0
        %713 = vmatprep.subr.mxu0 0.0
        %714 = vmatpush1.xpose.msra.mxu0 %v683
        %715 = vmatprep.subr.mxu0 0.0
        %716 = vmatpush1.xpose.msra.mxu0 %v680
        %717 = vmatprep.subr.mxu0 0.0
        %718 = vmatpush2.xpose.msra.mxu0 0.0
        %719 = vmatprep.subr.mxu0 0.0
        %720 = vmatpush2.xpose.msra.mxu0 0.0
        %721 = vmatprep.subr.mxu0 0.0
        %722 = vmatpush2.xpose.msra.mxu0 0.0
        %723 = vmatprep.subr.mxu0 0.0
        %724 = vmatpush2.xpose.msra.mxu0 0.0
        %725 = vmatprep.subr.mxu0 0.0
        %726 = vmatpush2.xpose.msra.mxu0 0.0
        %727 = vmatprep.subr.mxu0 0.0
        %728 = vmatpush2.xpose.msra.mxu0 0.0
        %729 = vmatprep.subr.mxu0 0.0
        %730 = vmatpush2.xpose.msra.mxu0 0.0
        %731 = vmatprep.subr.mxu0 0.0
        %732 = vmatpush2.xpose.msra.mxu0 0.0
        %733 = vmatprep.subr.mxu0 0.0
        %734 = vmatpush2.xpose.msra.mxu0 0.0
        %735 = vmatprep.subr.mxu0 0.0
        %736 = vmatpush2.xpose.msra.mxu0 0.0
        %737 = vmatprep.subr.mxu0 0.0
        %738 = vmatpush2.xpose.msra.mxu0 0.0
        %739 = vmatprep.subr.mxu0 0.0
        %740 = vmatpush2.xpose.msra.mxu0 0.0
        %741 = vmatprep.subr.mxu0 0.0
        %742 = vmatpush2.xpose.msra.mxu0 0.0
        %743 = vmatprep.subr.mxu0 0.0
        %744 = vmatpush2.xpose.msra.mxu0 0.0
        %745 = vmatprep.subr.mxu0 0.0
        %746 = vmatpush2.xpose.msra.mxu0 0.0
        %747 = vmatprep.subr.mxu0 0.0
        %748 = vmatpush2.xpose.msra.mxu0 0.0
        %749 = vmatprep.mubr.f32.mxu0 0.0
        %750 = vmatmul.mubr.f32.gmra.mxu0 %v677
        %v751 = vpop.f32.mrf.mxu0
        %v752 = vadd.f32 0.0, %v751
        %v753 = vpop.f32.mrf.mxu0
        %754 = vdwg.mxu0
        %vm755 = vcmask 130048
        %v756 = vsel %vm755, %v752, -inf
        %757 = vmax.xlane.f32.xlu0 %v756
        %v758 = vpop.xlane.xlu0 %757
        %v759 = vsub.f32 %v752, %v758
        %v760 = vmul.f32 %v759, 1.442695
        %v761 = vpow.pop %v760
        %v762 = vsel %vm755, %v761, 0.0
        %763 = vadd.xlane.f32.xlu0 %v762
        %v764 = vpop.xlane.xlu0 %763
        %765 = vrot.lane.b32.xlu0 %v671, 96
        %v766 = vpop.permute.xlu0 %765
        %767 = vrot.lane.b32.xlu0 %v672, 96
        %v768 = vpop.permute.xlu0 %767
        %v772 = vsel %vm755, %v761, 0
        %774 = vmatprep.subr.mxu0 0.0
        %775 = vmatpush1.msra.mxu0 0.0
        %776 = vmatprep.subr.mxu0 0.0
        %777 = vmatpush1.msra.mxu0 0.0
        %778 = vmatprep.subr.mxu0 0.0
        %779 = vmatpush1.msra.mxu0 0.0
        %780 = vmatprep.subr.mxu0 0.0
        %781 = vmatpush1.msra.mxu0 0.0
        %782 = vmatprep.subr.mxu0 0.0
        %783 = vmatpush1.msra.mxu0 0.0
        %784 = vmatprep.subr.mxu0 0.0
        %785 = vmatpush1.msra.mxu0 0.0
        %786 = vmatprep.subr.mxu0 0.0
        %787 = vmatpush1.msra.mxu0 0.0
        %788 = vmatprep.subr.mxu0 0.0
        %789 = vmatpush1.msra.mxu0 0.0
        %790 = vmatprep.subr.mxu0 0.0
        %791 = vmatpush1.msra.mxu0 0.0
        %792 = vmatprep.subr.mxu0 0.0
        %793 = vmatpush1.msra.mxu0 0.0
        %794 = vmatprep.subr.mxu0 0.0
        %795 = vmatpush1.msra.mxu0 0.0
        %796 = vmatprep.subr.mxu0 0.0
        %797 = vmatpush1.msra.mxu0 0.0
        %798 = vmatprep.subr.mxu0 0.0
        %799 = vmatpush1.msra.mxu0 0.0
        %800 = vmatprep.subr.mxu0 0.0
        %801 = vmatpush1.msra.mxu0 0.0
        %802 = vmatprep.subr.mxu0 0.0
        %803 = vmatpush1.msra.mxu0 %v768
        %804 = vmatprep.subr.mxu0 0.0
        %805 = vmatpush1.msra.mxu0 %v766
        %806 = vmatprep.subr.mxu0 0.0
        %807 = vmatpush2.msra.mxu0 0.0
        %808 = vmatprep.subr.mxu0 0.0
        %809 = vmatpush2.msra.mxu0 0.0
        %810 = vmatprep.subr.mxu0 0.0
        %811 = vmatpush2.msra.mxu0 0.0
        %812 = vmatprep.subr.mxu0 0.0
        %813 = vmatpush2.msra.mxu0 0.0
        %814 = vmatprep.subr.mxu0 0.0
        %815 = vmatpush2.msra.mxu0 0.0
        %816 = vmatprep.subr.mxu0 0.0
        %817 = vmatpush2.msra.mxu0 0.0
        %818 = vmatprep.subr.mxu0 0.0
        %819 = vmatpush2.msra.mxu0 0.0
        %820 = vmatprep.subr.mxu0 0.0
        %821 = vmatpush2.msra.mxu0 0.0
        %822 = vmatprep.subr.mxu0 0.0
        %823 = vmatpush2.msra.mxu0 0.0
        %824 = vmatprep.subr.mxu0 0.0
        %825 = vmatpush2.msra.mxu0 0.0
        %826 = vmatprep.subr.mxu0 0.0
        %827 = vmatpush2.msra.mxu0 0.0
        %828 = vmatprep.subr.mxu0 0.0
        %829 = vmatpush2.msra.mxu0 0.0
        %830 = vmatprep.subr.mxu0 0.0
        %831 = vmatpush2.msra.mxu0 0.0
        %832 = vmatprep.subr.mxu0 0.0
        %833 = vmatpush2.msra.mxu0 0.0
        %834 = vmatprep.subr.mxu0 0.0
        %835 = vmatpush2.msra.mxu0 0.0
        %836 = vmatprep.subr.mxu0 0.0
        %837 = vmatpush2.msra.mxu0 0.0
        %838 = vmatprep.mubr.f32.mxu0 0.0
        %839 = vmatmul.mubr.f32.gmra.mxu0 %v772
        %v840 = vpop.f32.mrf.mxu0
        %v841 = vadd.f32 0.0, %v840
        %v842 = vpop.f32.mrf.mxu0
        %843 = vdwg.mxu0
        %v844 = vrcp.pop %v764
        %v845 = vmul.f32 %v841, %v844
        %v846 = vld [vmem:[%s6] sm:$0xff]
        %847 = vrot.lane.b32.xlu0 %v670, 120
        %v848 = vpop.permute.xlu0 %847
        %849 = vrot.lane.b32.xlu0 %v671, 120
        %v850 = vpop.permute.xlu0 %849
        %851 = vrot.lane.b32.xlu0 %v672, 120
        %v852 = vpop.permute.xlu0 %851
        %v853 = vsel %vm675, %v848, 0
        %v855 = vsel %vm675, %v850, 0
        %v857 = vsel %vm675, %v852, 0
        %859 = vmatprep.subr.mxu0 0.0
        %860 = vmatpush1.xpose.msra.mxu0 0.0
        %861 = vmatprep.subr.mxu0 0.0
        %862 = vmatpush1.xpose.msra.mxu0 0.0
        %863 = vmatprep.subr.mxu0 0.0
        %864 = vmatpush1.xpose.msra.mxu0 0.0
        %865 = vmatprep.subr.mxu0 0.0
        %866 = vmatpush1.xpose.msra.mxu0 0.0
        %867 = vmatprep.subr.mxu0 0.0
        %868 = vmatpush1.xpose.msra.mxu0 0.0
        %869 = vmatprep.subr.mxu0 0.0
        %870 = vmatpush1.xpose.msra.mxu0 0.0
        %871 = vmatprep.subr.mxu0 0.0
        %872 = vmatpush1.xpose.msra.mxu0 0.0
        %873 = vmatprep.subr.mxu0 0.0
        %874 = vmatpush1.xpose.msra.mxu0 0.0
        %875 = vmatprep.subr.mxu0 0.0
        %876 = vmatpush1.xpose.msra.mxu0 0.0
        %877 = vmatprep.subr.mxu0 0.0
        %878 = vmatpush1.xpose.msra.mxu0 0.0
        %879 = vmatprep.subr.mxu0 0.0
        %880 = vmatpush1.xpose.msra.mxu0 0.0
        %881 = vmatprep.subr.mxu0 0.0
        %882 = vmatpush1.xpose.msra.mxu0 0.0
        %883 = vmatprep.subr.mxu0 0.0
        %884 = vmatpush1.xpose.msra.mxu0 0.0
        %885 = vmatprep.subr.mxu0 0.0
        %886 = vmatpush1.xpose.msra.mxu0 0.0
        %887 = vmatprep.subr.mxu0 0.0
        %888 = vmatpush1.xpose.msra.mxu0 %v857
        %889 = vmatprep.subr.mxu0 0.0
        %890 = vmatpush1.xpose.msra.mxu0 %v855
        %891 = vmatprep.subr.mxu0 0.0
        %892 = vmatpush2.xpose.msra.mxu0 0.0
        %893 = vmatprep.subr.mxu0 0.0
        %894 = vmatpush2.xpose.msra.mxu0 0.0
        %895 = vmatprep.subr.mxu0 0.0
        %896 = vmatpush2.xpose.msra.mxu0 0.0
        %897 = vmatprep.subr.mxu0 0.0
        %898 = vmatpush2.xpose.msra.mxu0 0.0
        %899 = vmatprep.subr.mxu0 0.0
        %900 = vmatpush2.xpose.msra.mxu0 0.0
        %901 = vmatprep.subr.mxu0 0.0
        %902 = vmatpush2.xpose.msra.mxu0 0.0
        %903 = vmatprep.subr.mxu0 0.0
        %904 = vmatpush2.xpose.msra.mxu0 0.0
        %905 = vmatprep.subr.mxu0 0.0
        %906 = vmatpush2.xpose.msra.mxu0 0.0
        %907 = vmatprep.subr.mxu0 0.0
        %908 = vmatpush2.xpose.msra.mxu0 0.0
        %909 = vmatprep.subr.mxu0 0.0
        %910 = vmatpush2.xpose.msra.mxu0 0.0
        %911 = vmatprep.subr.mxu0 0.0
        %912 = vmatpush2.xpose.msra.mxu0 0.0
        %913 = vmatprep.subr.mxu0 0.0
        %914 = vmatpush2.xpose.msra.mxu0 0.0
        %915 = vmatprep.subr.mxu0 0.0
        %916 = vmatpush2.xpose.msra.mxu0 0.0
        %917 = vmatprep.subr.mxu0 0.0
        %918 = vmatpush2.xpose.msra.mxu0 0.0
        %919 = vmatprep.subr.mxu0 0.0
        %920 = vmatpush2.xpose.msra.mxu0 0.0
        %921 = vmatprep.subr.mxu0 0.0
        %922 = vmatpush2.xpose.msra.mxu0 0.0
        %923 = vmatprep.mubr.f32.mxu0 0.0
        %924 = vmatmul.mubr.f32.gmra.mxu0 %v853
        %v925 = vpop.f32.mrf.mxu0
        %v926 = vadd.f32 0.0, %v925
        %v927 = vpop.f32.mrf.mxu0
        %928 = vdwg.mxu0
        %v929 = vsel %vm755, %v926, -inf
        %930 = vmax.xlane.f32.xlu0 %v929
        %v931 = vpop.xlane.xlu0 %930
        %v932 = vsub.f32 %v926, %v931
        %v933 = vmul.f32 %v932, 1.442695
        %v934 = vpow.pop %v933
        %v935 = vsel %vm755, %v934, 0.0
        %936 = vadd.xlane.f32.xlu0 %v935
        %v937 = vpop.xlane.xlu0 %936
        %938 = vrot.lane.b32.xlu0 %v671, 88
        %v939 = vpop.permute.xlu0 %938
        %940 = vrot.lane.b32.xlu0 %v672, 88
        %v941 = vpop.permute.xlu0 %940
        %v945 = vsel %vm755, %v934, 0
        %947 = vmatprep.subr.mxu0 0.0
        %948 = vmatpush1.msra.mxu0 0.0
        %949 = vmatprep.subr.mxu0 0.0
        %950 = vmatpush1.msra.mxu0 0.0
        %951 = vmatprep.subr.mxu0 0.0
        %952 = vmatpush1.msra.mxu0 0.0
        %953 = vmatprep.subr.mxu0 0.0
        %954 = vmatpush1.msra.mxu0 0.0
        %955 = vmatprep.subr.mxu0 0.0
        %956 = vmatpush1.msra.mxu0 0.0
        %957 = vmatprep.subr.mxu0 0.0
        %958 = vmatpush1.msra.mxu0 0.0
        %959 = vmatprep.subr.mxu0 0.0
        %960 = vmatpush1.msra.mxu0 0.0
        %961 = vmatprep.subr.mxu0 0.0
        %962 = vmatpush1.msra.mxu0 0.0
        %963 = vmatprep.subr.mxu0 0.0
        %964 = vmatpush1.msra.mxu0 0.0
        %965 = vmatprep.subr.mxu0 0.0
        %966 = vmatpush1.msra.mxu0 0.0
        %967 = vmatprep.subr.mxu0 0.0
        %968 = vmatpush1.msra.mxu0 0.0
        %969 = vmatprep.subr.mxu0 0.0
        %970 = vmatpush1.msra.mxu0 0.0
        %971 = vmatprep.subr.mxu0 0.0
        %972 = vmatpush1.msra.mxu0 0.0
        %973 = vmatprep.subr.mxu0 0.0
        %974 = vmatpush1.msra.mxu0 0.0
        %975 = vmatprep.subr.mxu0 0.0
        %976 = vmatpush1.msra.mxu0 %v941
        %977 = vmatprep.subr.mxu0 0.0
        %978 = vmatpush1.msra.mxu0 %v939
        %979 = vmatprep.subr.mxu0 0.0
        %980 = vmatpush2.msra.mxu0 0.0
        %981 = vmatprep.subr.mxu0 0.0
        %982 = vmatpush2.msra.mxu0 0.0
        %983 = vmatprep.subr.mxu0 0.0
        %984 = vmatpush2.msra.mxu0 0.0
        %985 = vmatprep.subr.mxu0 0.0
        %986 = vmatpush2.msra.mxu0 0.0
        %987 = vmatprep.subr.mxu0 0.0
        %988 = vmatpush2.msra.mxu0 0.0
        %989 = vmatprep.subr.mxu0 0.0
        %990 = vmatpush2.msra.mxu0 0.0
        %991 = vmatprep.subr.mxu0 0.0
        %992 = vmatpush2.msra.mxu0 0.0
        %993 = vmatprep.subr.mxu0 0.0
        %994 = vmatpush2.msra.mxu0 0.0
        %995 = vmatprep.subr.mxu0 0.0
        %996 = vmatpush2.msra.mxu0 0.0
        %997 = vmatprep.subr.mxu0 0.0
        %998 = vmatpush2.msra.mxu0 0.0
        %999 = vmatprep.subr.mxu0 0.0
        %1000 = vmatpush2.msra.mxu0 0.0
        %1001 = vmatprep.subr.mxu0 0.0
        %1002 = vmatpush2.msra.mxu0 0.0
        %1003 = vmatprep.subr.mxu0 0.0
        %1004 = vmatpush2.msra.mxu0 0.0
        %1005 = vmatprep.subr.mxu0 0.0
        %1006 = vmatpush2.msra.mxu0 0.0
        %1007 = vmatprep.subr.mxu0 0.0
        %1008 = vmatpush2.msra.mxu0 0.0
        %1009 = vmatprep.subr.mxu0 0.0
        %1010 = vmatpush2.msra.mxu0 0.0
        %1011 = vmatprep.mubr.f32.mxu0 0.0
        %1012 = vmatmul.mubr.f32.gmra.mxu0 %v945
        %v1013 = vpop.f32.mrf.mxu0
        %v1014 = vadd.f32 0.0, %v1013
        %v1015 = vpop.f32.mrf.mxu0
        %1016 = vdwg.mxu0
        %v1017 = vrcp.pop %v937
        %v1018 = vmul.f32 %v1014, %v1017
        %v1019 = vld [vmem:[%s6 + $0x8] sm:$0xff]
        %v1021 = vsel %vm675, %v1018, 0
        %1023 = vmatprep.subr.mxu0 0.0
        %1024 = vmatpush1.msra.mxu0 0.0
        %1025 = vmatprep.subr.mxu0 0.0
        %1026 = vmatpush1.msra.mxu0 0.0
        %1027 = vmatprep.subr.mxu0 0.0
        %1028 = vmatpush1.msra.mxu0 0.0
        %1029 = vmatprep.subr.mxu0 0.0
        %1030 = vmatpush1.msra.mxu0 0.0
        %1031 = vmatprep.subr.mxu0 0.0
        %1032 = vmatpush1.msra.mxu0 0.0
        %1033 = vmatprep.subr.mxu0 0.0
        %1034 = vmatpush1.msra.mxu0 0.0
        %1035 = vmatprep.subr.mxu0 0.0
        %1036 = vmatpush1.msra.mxu0 0.0
        %1037 = vmatprep.subr.mxu0 0.0
        %1038 = vmatpush1.msra.mxu0 0.0
        %1039 = vmatprep.subr.mxu0 0.0
        %1040 = vmatpush1.msra.mxu0 0.0
        %1041 = vmatprep.subr.mxu0 0.0
        %1042 = vmatpush1.msra.mxu0 0.0
        %1043 = vmatprep.subr.mxu0 0.0
        %1044 = vmatpush1.msra.mxu0 0.0
        %1045 = vmatprep.subr.mxu0 0.0
        %1046 = vmatpush1.msra.mxu0 0.0
        %1047 = vmatprep.subr.mxu0 0.0
        %1048 = vmatpush1.msra.mxu0 0.0
        %1049 = vmatprep.subr.mxu0 0.0
        %1050 = vmatpush1.msra.mxu0 0.0
        %1051 = vmatprep.subr.mxu0 0.0
        %1052 = vmatpush1.msra.mxu0 0.0
        %1053 = vmatprep.subr.mxu0 0.0
        %1054 = vmatpush1.msra.mxu0 %v1019
        %1055 = vmatprep.subr.mxu0 0.0
        %1056 = vmatpush2.msra.mxu0 0.0
        %1057 = vmatprep.subr.mxu0 0.0
        %1058 = vmatpush2.msra.mxu0 0.0
        %1059 = vmatprep.subr.mxu0 0.0
        %1060 = vmatpush2.msra.mxu0 0.0
        %1061 = vmatprep.subr.mxu0 0.0
        %1062 = vmatpush2.msra.mxu0 0.0
        %1063 = vmatprep.subr.mxu0 0.0
        %1064 = vmatpush2.msra.mxu0 0.0
        %1065 = vmatprep.subr.mxu0 0.0
        %1066 = vmatpush2.msra.mxu0 0.0
        %1067 = vmatprep.subr.mxu0 0.0
        %1068 = vmatpush2.msra.mxu0 0.0
        %1069 = vmatprep.subr.mxu0 0.0
        %1070 = vmatpush2.msra.mxu0 0.0
        %1071 = vmatprep.subr.mxu0 0.0
        %1072 = vmatpush2.msra.mxu0 0.0
        %1073 = vmatprep.subr.mxu0 0.0
        %1074 = vmatpush2.msra.mxu0 0.0
        %1075 = vmatprep.subr.mxu0 0.0
        %1076 = vmatpush2.msra.mxu0 0.0
        %1077 = vmatprep.subr.mxu0 0.0
        %1078 = vmatpush2.msra.mxu0 0.0
        %1079 = vmatprep.subr.mxu0 0.0
        %1080 = vmatpush2.msra.mxu0 0.0
        %1081 = vmatprep.subr.mxu0 0.0
        %1082 = vmatpush2.msra.mxu0 0.0
        %1083 = vmatprep.subr.mxu0 0.0
        %1084 = vmatpush2.msra.mxu0 0.0
        %1085 = vmatprep.subr.mxu0 0.0
        %1086 = vmatpush2.msra.mxu0 0.0
        %1087 = vmatprep.mubr.f32.mxu0 0.0
        %1088 = vmatmul.mubr.f32.gmra.mxu0 %v1021
        %v1089 = vpop.f32.mrf.mxu0
        %v1090 = vadd.f32 0.0, %v1089
        %v1091 = vpop.f32.mrf.mxu0
        %1092 = vdwg.mxu0
        %v1094 = vsel %vm675, %v845, 0
        %1096 = vmatprep.subr.mxu0 0.0
        %1097 = vmatpush1.msra.mxu0 0.0
        %1098 = vmatprep.subr.mxu0 0.0
        %1099 = vmatpush1.msra.mxu0 0.0
        %1100 = vmatprep.subr.mxu0 0.0
        %1101 = vmatpush1.msra.mxu0 0.0
        %1102 = vmatprep.subr.mxu0 0.0
        %1103 = vmatpush1.msra.mxu0 0.0
        %1104 = vmatprep.subr.mxu0 0.0
        %1105 = vmatpush1.msra.mxu0 0.0
        %1106 = vmatprep.subr.mxu0 0.0
        %1107 = vmatpush1.msra.mxu0 0.0
        %1108 = vmatprep.subr.mxu0 0.0
        %1109 = vmatpush1.msra.mxu0 0.0
        %1110 = vmatprep.subr.mxu0 0.0
        %1111 = vmatpush1.msra.mxu0 0.0
        %1112 = vmatprep.subr.mxu0 0.0
        %1113 = vmatpush1.msra.mxu0 0.0
        %1114 = vmatprep.subr.mxu0 0.0
        %1115 = vmatpush1.msra.mxu0 0.0
        %1116 = vmatprep.subr.mxu0 0.0
        %1117 = vmatpush1.msra.mxu0 0.0
        %1118 = vmatprep.subr.mxu0 0.0
        %1119 = vmatpush1.msra.mxu0 0.0
        %1120 = vmatprep.subr.mxu0 0.0
        %1121 = vmatpush1.msra.mxu0 0.0
        %1122 = vmatprep.subr.mxu0 0.0
        %1123 = vmatpush1.msra.mxu0 0.0
        %1124 = vmatprep.subr.mxu0 0.0
        %1125 = vmatpush1.msra.mxu0 0.0
        %1126 = vmatprep.subr.mxu0 0.0
        %1127 = vmatpush1.msra.mxu0 %v846
        %1128 = vmatprep.subr.mxu0 0.0
        %1129 = vmatpush2.msra.mxu0 0.0
        %1130 = vmatprep.subr.mxu0 0.0
        %1131 = vmatpush2.msra.mxu0 0.0
        %1132 = vmatprep.subr.mxu0 0.0
        %1133 = vmatpush2.msra.mxu0 0.0
        %1134 = vmatprep.subr.mxu0 0.0
        %1135 = vmatpush2.msra.mxu0 0.0
        %1136 = vmatprep.subr.mxu0 0.0
        %1137 = vmatpush2.msra.mxu0 0.0
        %1138 = vmatprep.subr.mxu0 0.0
        %1139 = vmatpush2.msra.mxu0 0.0
        %1140 = vmatprep.subr.mxu0 0.0
        %1141 = vmatpush2.msra.mxu0 0.0
        %1142 = vmatprep.subr.mxu0 0.0
        %1143 = vmatpush2.msra.mxu0 0.0
        %1144 = vmatprep.subr.mxu0 0.0
        %1145 = vmatpush2.msra.mxu0 0.0
        %1146 = vmatprep.subr.mxu0 0.0
        %1147 = vmatpush2.msra.mxu0 0.0
        %1148 = vmatprep.subr.mxu0 0.0
        %1149 = vmatpush2.msra.mxu0 0.0
        %1150 = vmatprep.subr.mxu0 0.0
        %1151 = vmatpush2.msra.mxu0 0.0
        %1152 = vmatprep.subr.mxu0 0.0
        %1153 = vmatpush2.msra.mxu0 0.0
        %1154 = vmatprep.subr.mxu0 0.0
        %1155 = vmatpush2.msra.mxu0 0.0
        %1156 = vmatprep.subr.mxu0 0.0
        %1157 = vmatpush2.msra.mxu0 0.0
        %1158 = vmatprep.subr.mxu0 0.0
        %1159 = vmatpush2.msra.mxu0 0.0
        %1160 = vmatprep.mubr.f32.mxu0 0.0
        %1161 = vmatmul.mubr.f32.gmra.mxu0 %v1094
        %v1162 = vpop.f32.mrf.mxu0
        %v1163 = vadd.f32 %v1090, %v1162
        %v1164 = vpop.f32.mrf.mxu0
        %1165 = vdwg.mxu0
        %1166 = vrot.lane.b32.xlu0 %v670, 112
        %v1167 = vpop.permute.xlu0 %1166
        %1168 = vrot.lane.b32.xlu0 %v671, 112
        %v1169 = vpop.permute.xlu0 %1168
        %1170 = vrot.lane.b32.xlu0 %v672, 112
        %v1171 = vpop.permute.xlu0 %1170
        %v1172 = vsel %vm675, %v1167, 0
        %v1174 = vsel %vm675, %v1169, 0
        %v1176 = vsel %vm675, %v1171, 0
        %1178 = vmatprep.subr.mxu0 0.0
        %1179 = vmatpush1.xpose.msra.mxu0 0.0
        %1180 = vmatprep.subr.mxu0 0.0
        %1181 = vmatpush1.xpose.msra.mxu0 0.0
        %1182 = vmatprep.subr.mxu0 0.0
        %1183 = vmatpush1.xpose.msra.mxu0 0.0
        %1184 = vmatprep.subr.mxu0 0.0
        %1185 = vmatpush1.xpose.msra.mxu0 0.0
        %1186 = vmatprep.subr.mxu0 0.0
        %1187 = vmatpush1.xpose.msra.mxu0 0.0
        %1188 = vmatprep.subr.mxu0 0.0
        %1189 = vmatpush1.xpose.msra.mxu0 0.0
        %1190 = vmatprep.subr.mxu0 0.0
        %1191 = vmatpush1.xpose.msra.mxu0 0.0
        %1192 = vmatprep.subr.mxu0 0.0
        %1193 = vmatpush1.xpose.msra.mxu0 0.0
        %1194 = vmatprep.subr.mxu0 0.0
        %1195 = vmatpush1.xpose.msra.mxu0 0.0
        %1196 = vmatprep.subr.mxu0 0.0
        %1197 = vmatpush1.xpose.msra.mxu0 0.0
        %1198 = vmatprep.subr.mxu0 0.0
        %1199 = vmatpush1.xpose.msra.mxu0 0.0
        %1200 = vmatprep.subr.mxu0 0.0
        %1201 = vmatpush1.xpose.msra.mxu0 0.0
        %1202 = vmatprep.subr.mxu0 0.0
        %1203 = vmatpush1.xpose.msra.mxu0 0.0
        %1204 = vmatprep.subr.mxu0 0.0
        %1205 = vmatpush1.xpose.msra.mxu0 0.0
        %1206 = vmatprep.subr.mxu0 0.0
        %1207 = vmatpush1.xpose.msra.mxu0 %v1176
        %1208 = vmatprep.subr.mxu0 0.0
        %1209 = vmatpush1.xpose.msra.mxu0 %v1174
        %1210 = vmatprep.subr.mxu0 0.0
        %1211 = vmatpush2.xpose.msra.mxu0 0.0
        %1212 = vmatprep.subr.mxu0 0.0
        %1213 = vmatpush2.xpose.msra.mxu0 0.0
        %1214 = vmatprep.subr.mxu0 0.0
        %1215 = vmatpush2.xpose.msra.mxu0 0.0
        %1216 = vmatprep.subr.mxu0 0.0
        %1217 = vmatpush2.xpose.msra.mxu0 0.0
        %1218 = vmatprep.subr.mxu0 0.0
        %1219 = vmatpush2.xpose.msra.mxu0 0.0
        %1220 = vmatprep.subr.mxu0 0.0
        %1221 = vmatpush2.xpose.msra.mxu0 0.0
        %1222 = vmatprep.subr.mxu0 0.0
        %1223 = vmatpush2.xpose.msra.mxu0 0.0
        %1224 = vmatprep.subr.mxu0 0.0
        %1225 = vmatpush2.xpose.msra.mxu0 0.0
        %1226 = vmatprep.subr.mxu0 0.0
        %1227 = vmatpush2.xpose.msra.mxu0 0.0
        %1228 = vmatprep.subr.mxu0 0.0
        %1229 = vmatpush2.xpose.msra.mxu0 0.0
        %1230 = vmatprep.subr.mxu0 0.0
        %1231 = vmatpush2.xpose.msra.mxu0 0.0
        %1232 = vmatprep.subr.mxu0 0.0
        %1233 = vmatpush2.xpose.msra.mxu0 0.0
        %1234 = vmatprep.subr.mxu0 0.0
        %1235 = vmatpush2.xpose.msra.mxu0 0.0
        %1236 = vmatprep.subr.mxu0 0.0
        %1237 = vmatpush2.xpose.msra.mxu0 0.0
        %1238 = vmatprep.subr.mxu0 0.0
        %1239 = vmatpush2.xpose.msra.mxu0 0.0
        %1240 = vmatprep.subr.mxu0 0.0
        %1241 = vmatpush2.xpose.msra.mxu0 0.0
        %1242 = vmatprep.mubr.f32.mxu0 0.0
        %1243 = vmatmul.mubr.f32.gmra.mxu0 %v1172
        %v1244 = vpop.f32.mrf.mxu0
        %v1245 = vadd.f32 0.0, %v1244
        %v1246 = vpop.f32.mrf.mxu0
        %1247 = vdwg.mxu0
        %v1248 = vsel %vm755, %v1245, -inf
        %1249 = vmax.xlane.f32.xlu0 %v1248
        %v1250 = vpop.xlane.xlu0 %1249
        %v1251 = vsub.f32 %v1245, %v1250
        %v1252 = vmul.f32 %v1251, 1.442695
        %v1253 = vpow.pop %v1252
        %v1254 = vsel %vm755, %v1253, 0.0
        %1255 = vadd.xlane.f32.xlu0 %v1254
        %v1256 = vpop.xlane.xlu0 %1255
        %1257 = vrot.lane.b32.xlu0 %v671, 80
        %v1258 = vpop.permute.xlu0 %1257
        %1259 = vrot.lane.b32.xlu0 %v672, 80
        %v1260 = vpop.permute.xlu0 %1259
        %v1264 = vsel %vm755, %v1253, 0
        %1266 = vmatprep.subr.mxu0 0.0
        %1267 = vmatpush1.msra.mxu0 0.0
        %1268 = vmatprep.subr.mxu0 0.0
        %1269 = vmatpush1.msra.mxu0 0.0
        %1270 = vmatprep.subr.mxu0 0.0
        %1271 = vmatpush1.msra.mxu0 0.0
        %1272 = vmatprep.subr.mxu0 0.0
        %1273 = vmatpush1.msra.mxu0 0.0
        %1274 = vmatprep.subr.mxu0 0.0
        %1275 = vmatpush1.msra.mxu0 0.0
        %1276 = vmatprep.subr.mxu0 0.0
        %1277 = vmatpush1.msra.mxu0 0.0
        %1278 = vmatprep.subr.mxu0 0.0
        %1279 = vmatpush1.msra.mxu0 0.0
        %1280 = vmatprep.subr.mxu0 0.0
        %1281 = vmatpush1.msra.mxu0 0.0
        %1282 = vmatprep.subr.mxu0 0.0
        %1283 = vmatpush1.msra.mxu0 0.0
        %1284 = vmatprep.subr.mxu0 0.0
        %1285 = vmatpush1.msra.mxu0 0.0
        %1286 = vmatprep.subr.mxu0 0.0
        %1287 = vmatpush1.msra.mxu0 0.0
        %1288 = vmatprep.subr.mxu0 0.0
        %1289 = vmatpush1.msra.mxu0 0.0
        %1290 = vmatprep.subr.mxu0 0.0
        %1291 = vmatpush1.msra.mxu0 0.0
        %1292 = vmatprep.subr.mxu0 0.0
        %1293 = vmatpush1.msra.mxu0 0.0
        %1294 = vmatprep.subr.mxu0 0.0
        %1295 = vmatpush1.msra.mxu0 %v1260
        %1296 = vmatprep.subr.mxu0 0.0
        %1297 = vmatpush1.msra.mxu0 %v1258
        %1298 = vmatprep.subr.mxu0 0.0
        %1299 = vmatpush2.msra.mxu0 0.0
        %1300 = vmatprep.subr.mxu0 0.0
        %1301 = vmatpush2.msra.mxu0 0.0
        %1302 = vmatprep.subr.mxu0 0.0
        %1303 = vmatpush2.msra.mxu0 0.0
        %1304 = vmatprep.subr.mxu0 0.0
        %1305 = vmatpush2.msra.mxu0 0.0
        %1306 = vmatprep.subr.mxu0 0.0
        %1307 = vmatpush2.msra.mxu0 0.0
        %1308 = vmatprep.subr.mxu0 0.0
        %1309 = vmatpush2.msra.mxu0 0.0
        %1310 = vmatprep.subr.mxu0 0.0
        %1311 = vmatpush2.msra.mxu0 0.0
        %1312 = vmatprep.subr.mxu0 0.0
        %1313 = vmatpush2.msra.mxu0 0.0
        %1314 = vmatprep.subr.mxu0 0.0
        %1315 = vmatpush2.msra.mxu0 0.0
        %1316 = vmatprep.subr.mxu0 0.0
        %1317 = vmatpush2.msra.mxu0 0.0
        %1318 = vmatprep.subr.mxu0 0.0
        %1319 = vmatpush2.msra.mxu0 0.0
        %1320 = vmatprep.subr.mxu0 0.0
        %1321 = vmatpush2.msra.mxu0 0.0
        %1322 = vmatprep.subr.mxu0 0.0
        %1323 = vmatpush2.msra.mxu0 0.0
        %1324 = vmatprep.subr.mxu0 0.0
        %1325 = vmatpush2.msra.mxu0 0.0
        %1326 = vmatprep.subr.mxu0 0.0
        %1327 = vmatpush2.msra.mxu0 0.0
        %1328 = vmatprep.subr.mxu0 0.0
        %1329 = vmatpush2.msra.mxu0 0.0
        %1330 = vmatprep.mubr.f32.mxu0 0.0
        %1331 = vmatmul.mubr.f32.gmra.mxu0 %v1264
        %v1332 = vpop.f32.mrf.mxu0
        %v1333 = vadd.f32 0.0, %v1332
        %v1334 = vpop.f32.mrf.mxu0
        %1335 = vdwg.mxu0
        %v1336 = vrcp.pop %v1256
        %v1337 = vmul.f32 %v1333, %v1336
        %v1338 = vld [vmem:[%s6 + $0x10] sm:$0xff]
        %v1340 = vsel %vm675, %v1337, 0
        %1342 = vmatprep.subr.mxu0 0.0
        %1343 = vmatpush1.msra.mxu0 0.0
        %1344 = vmatprep.subr.mxu0 0.0
        %1345 = vmatpush1.msra.mxu0 0.0
        %1346 = vmatprep.subr.mxu0 0.0
        %1347 = vmatpush1.msra.mxu0 0.0
        %1348 = vmatprep.subr.mxu0 0.0
        %1349 = vmatpush1.msra.mxu0 0.0
        %1350 = vmatprep.subr.mxu0 0.0
        %1351 = vmatpush1.msra.mxu0 0.0
        %1352 = vmatprep.subr.mxu0 0.0
        %1353 = vmatpush1.msra.mxu0 0.0
        %1354 = vmatprep.subr.mxu0 0.0
        %1355 = vmatpush1.msra.mxu0 0.0
        %1356 = vmatprep.subr.mxu0 0.0
        %1357 = vmatpush1.msra.mxu0 0.0
        %1358 = vmatprep.subr.mxu0 0.0
        %1359 = vmatpush1.msra.mxu0 0.0
        %1360 = vmatprep.subr.mxu0 0.0
        %1361 = vmatpush1.msra.mxu0 0.0
        %1362 = vmatprep.subr.mxu0 0.0
        %1363 = vmatpush1.msra.mxu0 0.0
        %1364 = vmatprep.subr.mxu0 0.0
        %1365 = vmatpush1.msra.mxu0 0.0
        %1366 = vmatprep.subr.mxu0 0.0
        %1367 = vmatpush1.msra.mxu0 0.0
        %1368 = vmatprep.subr.mxu0 0.0
        %1369 = vmatpush1.msra.mxu0 0.0
        %1370 = vmatprep.subr.mxu0 0.0
        %1371 = vmatpush1.msra.mxu0 0.0
        %1372 = vmatprep.subr.mxu0 0.0
        %1373 = vmatpush1.msra.mxu0 %v1338
        %1374 = vmatprep.subr.mxu0 0.0
        %1375 = vmatpush2.msra.mxu0 0.0
        %1376 = vmatprep.subr.mxu0 0.0
        %1377 = vmatpush2.msra.mxu0 0.0
        %1378 = vmatprep.subr.mxu0 0.0
        %1379 = vmatpush2.msra.mxu0 0.0
        %1380 = vmatprep.subr.mxu0 0.0
        %1381 = vmatpush2.msra.mxu0 0.0
        %1382 = vmatprep.subr.mxu0 0.0
        %1383 = vmatpush2.msra.mxu0 0.0
        %1384 = vmatprep.subr.mxu0 0.0
        %1385 = vmatpush2.msra.mxu0 0.0
        %1386 = vmatprep.subr.mxu0 0.0
        %1387 = vmatpush2.msra.mxu0 0.0
        %1388 = vmatprep.subr.mxu0 0.0
        %1389 = vmatpush2.msra.mxu0 0.0
        %1390 = vmatprep.subr.mxu0 0.0
        %1391 = vmatpush2.msra.mxu0 0.0
        %1392 = vmatprep.subr.mxu0 0.0
        %1393 = vmatpush2.msra.mxu0 0.0
        %1394 = vmatprep.subr.mxu0 0.0
        %1395 = vmatpush2.msra.mxu0 0.0
        %1396 = vmatprep.subr.mxu0 0.0
        %1397 = vmatpush2.msra.mxu0 0.0
        %1398 = vmatprep.subr.mxu0 0.0
        %1399 = vmatpush2.msra.mxu0 0.0
        %1400 = vmatprep.subr.mxu0 0.0
        %1401 = vmatpush2.msra.mxu0 0.0
        %1402 = vmatprep.subr.mxu0 0.0
        %1403 = vmatpush2.msra.mxu0 0.0
        %1404 = vmatprep.subr.mxu0 0.0
        %1405 = vmatpush2.msra.mxu0 0.0
        %1406 = vmatprep.mubr.f32.mxu0 0.0
        %1407 = vmatmul.mubr.f32.gmra.mxu0 %v1340
        %v1408 = vpop.f32.mrf.mxu0
        %v1409 = vadd.f32 0.0, %v1408
        %v1410 = vpop.f32.mrf.mxu0
        %1411 = vdwg.mxu0
        %v1412 = vadd.f32 %v1163, %v1409
        %1413 = vrot.lane.b32.xlu0 %v670, 104
        %v1414 = vpop.permute.xlu0 %1413
        %1415 = vrot.lane.b32.xlu0 %v671, 104
        %v1416 = vpop.permute.xlu0 %1415
        %1417 = vrot.lane.b32.xlu0 %v672, 104
        %v1418 = vpop.permute.xlu0 %1417
        %v1419 = vsel %vm675, %v1414, 0
        %v1421 = vsel %vm675, %v1416, 0
        %v1423 = vsel %vm675, %v1418, 0
        %1425 = vmatprep.subr.mxu0 0.0
        %1426 = vmatpush1.xpose.msra.mxu0 0.0
        %1427 = vmatprep.subr.mxu0 0.0
        %1428 = vmatpush1.xpose.msra.mxu0 0.0
        %1429 = vmatprep.subr.mxu0 0.0
        %1430 = vmatpush1.xpose.msra.mxu0 0.0
        %1431 = vmatprep.subr.mxu0 0.0
        %1432 = vmatpush1.xpose.msra.mxu0 0.0
        %1433 = vmatprep.subr.mxu0 0.0
        %1434 = vmatpush1.xpose.msra.mxu0 0.0
        %1435 = vmatprep.subr.mxu0 0.0
        %1436 = vmatpush1.xpose.msra.mxu0 0.0
        %1437 = vmatprep.subr.mxu0 0.0
        %1438 = vmatpush1.xpose.msra.mxu0 0.0
        %1439 = vmatprep.subr.mxu0 0.0
        %1440 = vmatpush1.xpose.msra.mxu0 0.0
        %1441 = vmatprep.subr.mxu0 0.0
        %1442 = vmatpush1.xpose.msra.mxu0 0.0
        %1443 = vmatprep.subr.mxu0 0.0
        %1444 = vmatpush1.xpose.msra.mxu0 0.0
        %1445 = vmatprep.subr.mxu0 0.0
        %1446 = vmatpush1.xpose.msra.mxu0 0.0
        %1447 = vmatprep.subr.mxu0 0.0
        %1448 = vmatpush1.xpose.msra.mxu0 0.0
        %1449 = vmatprep.subr.mxu0 0.0
        %1450 = vmatpush1.xpose.msra.mxu0 0.0
        %1451 = vmatprep.subr.mxu0 0.0
        %1452 = vmatpush1.xpose.msra.mxu0 0.0
        %1453 = vmatprep.subr.mxu0 0.0
        %1454 = vmatpush1.xpose.msra.mxu0 %v1423
        %1455 = vmatprep.subr.mxu0 0.0
        %1456 = vmatpush1.xpose.msra.mxu0 %v1421
        %1457 = vmatprep.subr.mxu0 0.0
        %1458 = vmatpush2.xpose.msra.mxu0 0.0
        %1459 = vmatprep.subr.mxu0 0.0
        %1460 = vmatpush2.xpose.msra.mxu0 0.0
        %1461 = vmatprep.subr.mxu0 0.0
        %1462 = vmatpush2.xpose.msra.mxu0 0.0
        %1463 = vmatprep.subr.mxu0 0.0
        %1464 = vmatpush2.xpose.msra.mxu0 0.0
        %1465 = vmatprep.subr.mxu0 0.0
        %1466 = vmatpush2.xpose.msra.mxu0 0.0
        %1467 = vmatprep.subr.mxu0 0.0
        %1468 = vmatpush2.xpose.msra.mxu0 0.0
        %1469 = vmatprep.subr.mxu0 0.0
        %1470 = vmatpush2.xpose.msra.mxu0 0.0
        %1471 = vmatprep.subr.mxu0 0.0
        %1472 = vmatpush2.xpose.msra.mxu0 0.0
        %1473 = vmatprep.subr.mxu0 0.0
        %1474 = vmatpush2.xpose.msra.mxu0 0.0
        %1475 = vmatprep.subr.mxu0 0.0
        %1476 = vmatpush2.xpose.msra.mxu0 0.0
        %1477 = vmatprep.subr.mxu0 0.0
        %1478 = vmatpush2.xpose.msra.mxu0 0.0
        %1479 = vmatprep.subr.mxu0 0.0
        %1480 = vmatpush2.xpose.msra.mxu0 0.0
        %1481 = vmatprep.subr.mxu0 0.0
        %1482 = vmatpush2.xpose.msra.mxu0 0.0
        %1483 = vmatprep.subr.mxu0 0.0
        %1484 = vmatpush2.xpose.msra.mxu0 0.0
        %1485 = vmatprep.subr.mxu0 0.0
        %1486 = vmatpush2.xpose.msra.mxu0 0.0
        %1487 = vmatprep.subr.mxu0 0.0
        %1488 = vmatpush2.xpose.msra.mxu0 0.0
        %1489 = vmatprep.mubr.f32.mxu0 0.0
        %1490 = vmatmul.mubr.f32.gmra.mxu0 %v1419
        %v1491 = vpop.f32.mrf.mxu0
        %v1492 = vadd.f32 0.0, %v1491
        %v1493 = vpop.f32.mrf.mxu0
        %1494 = vdwg.mxu0
        %v1495 = vsel %vm755, %v1492, -inf
        %1496 = vmax.xlane.f32.xlu0 %v1495
        %v1497 = vpop.xlane.xlu0 %1496
        %v1498 = vsub.f32 %v1492, %v1497
        %v1499 = vmul.f32 %v1498, 1.442695
        %v1500 = vpow.pop %v1499
        %v1501 = vsel %vm755, %v1500, 0.0
        %1502 = vadd.xlane.f32.xlu0 %v1501
        %v1503 = vpop.xlane.xlu0 %1502
        %1504 = vrot.lane.b32.xlu0 %v671, 72
        %v1505 = vpop.permute.xlu0 %1504
        %1506 = vrot.lane.b32.xlu0 %v672, 72
        %v1507 = vpop.permute.xlu0 %1506
        %v1511 = vsel %vm755, %v1500, 0
        %1513 = vmatprep.subr.mxu0 0.0
        %1514 = vmatpush1.msra.mxu0 0.0
        %1515 = vmatprep.subr.mxu0 0.0
        %1516 = vmatpush1.msra.mxu0 0.0
        %1517 = vmatprep.subr.mxu0 0.0
        %1518 = vmatpush1.msra.mxu0 0.0
        %1519 = vmatprep.subr.mxu0 0.0
        %1520 = vmatpush1.msra.mxu0 0.0
        %1521 = vmatprep.subr.mxu0 0.0
        %1522 = vmatpush1.msra.mxu0 0.0
        %1523 = vmatprep.subr.mxu0 0.0
        %1524 = vmatpush1.msra.mxu0 0.0
        %1525 = vmatprep.subr.mxu0 0.0
        %1526 = vmatpush1.msra.mxu0 0.0
        %1527 = vmatprep.subr.mxu0 0.0
        %1528 = vmatpush1.msra.mxu0 0.0
        %1529 = vmatprep.subr.mxu0 0.0
        %1530 = vmatpush1.msra.mxu0 0.0
        %1531 = vmatprep.subr.mxu0 0.0
        %1532 = vmatpush1.msra.mxu0 0.0
        %1533 = vmatprep.subr.mxu0 0.0
        %1534 = vmatpush1.msra.mxu0 0.0
        %1535 = vmatprep.subr.mxu0 0.0
        %1536 = vmatpush1.msra.mxu0 0.0
        %1537 = vmatprep.subr.mxu0 0.0
        %1538 = vmatpush1.msra.mxu0 0.0
        %1539 = vmatprep.subr.mxu0 0.0
        %1540 = vmatpush1.msra.mxu0 0.0
        %1541 = vmatprep.subr.mxu0 0.0
        %1542 = vmatpush1.msra.mxu0 %v1507
        %1543 = vmatprep.subr.mxu0 0.0
        %1544 = vmatpush1.msra.mxu0 %v1505
        %1545 = vmatprep.subr.mxu0 0.0
        %1546 = vmatpush2.msra.mxu0 0.0
        %1547 = vmatprep.subr.mxu0 0.0
        %1548 = vmatpush2.msra.mxu0 0.0
        %1549 = vmatprep.subr.mxu0 0.0
        %1550 = vmatpush2.msra.mxu0 0.0
        %1551 = vmatprep.subr.mxu0 0.0
        %1552 = vmatpush2.msra.mxu0 0.0
        %1553 = vmatprep.subr.mxu0 0.0
        %1554 = vmatpush2.msra.mxu0 0.0
        %1555 = vmatprep.subr.mxu0 0.0
        %1556 = vmatpush2.msra.mxu0 0.0
        %1557 = vmatprep.subr.mxu0 0.0
        %1558 = vmatpush2.msra.mxu0 0.0
        %1559 = vmatprep.subr.mxu0 0.0
        %1560 = vmatpush2.msra.mxu0 0.0
        %1561 = vmatprep.subr.mxu0 0.0
        %1562 = vmatpush2.msra.mxu0 0.0
        %1563 = vmatprep.subr.mxu0 0.0
        %1564 = vmatpush2.msra.mxu0 0.0
        %1565 = vmatprep.subr.mxu0 0.0
        %1566 = vmatpush2.msra.mxu0 0.0
        %1567 = vmatprep.subr.mxu0 0.0
        %1568 = vmatpush2.msra.mxu0 0.0
        %1569 = vmatprep.subr.mxu0 0.0
        %1570 = vmatpush2.msra.mxu0 0.0
        %1571 = vmatprep.subr.mxu0 0.0
        %1572 = vmatpush2.msra.mxu0 0.0
        %1573 = vmatprep.subr.mxu0 0.0
        %1574 = vmatpush2.msra.mxu0 0.0
        %1575 = vmatprep.subr.mxu0 0.0
        %1576 = vmatpush2.msra.mxu0 0.0
        %1577 = vmatprep.mubr.f32.mxu0 0.0
        %1578 = vmatmul.mubr.f32.gmra.mxu0 %v1511
        %v1579 = vpop.f32.mrf.mxu0
        %v1580 = vadd.f32 0.0, %v1579
        %v1581 = vpop.f32.mrf.mxu0
        %1582 = vdwg.mxu0
        %v1583 = vrcp.pop %v1503
        %v1584 = vmul.f32 %v1580, %v1583
        %v1585 = vld [vmem:[%s6 + $0x18] sm:$0xff]
        %v1587 = vsel %vm675, %v1584, 0
        %1589 = vmatprep.subr.mxu0 0.0
        %1590 = vmatpush1.msra.mxu0 0.0
        %1591 = vmatprep.subr.mxu0 0.0
        %1592 = vmatpush1.msra.mxu0 0.0
        %1593 = vmatprep.subr.mxu0 0.0
        %1594 = vmatpush1.msra.mxu0 0.0
        %1595 = vmatprep.subr.mxu0 0.0
        %1596 = vmatpush1.msra.mxu0 0.0
        %1597 = vmatprep.subr.mxu0 0.0
        %1598 = vmatpush1.msra.mxu0 0.0
        %1599 = vmatprep.subr.mxu0 0.0
        %1600 = vmatpush1.msra.mxu0 0.0
        %1601 = vmatprep.subr.mxu0 0.0
        %1602 = vmatpush1.msra.mxu0 0.0
        %1603 = vmatprep.subr.mxu0 0.0
        %1604 = vmatpush1.msra.mxu0 0.0
        %1605 = vmatprep.subr.mxu0 0.0
        %1606 = vmatpush1.msra.mxu0 0.0
        %1607 = vmatprep.subr.mxu0 0.0
        %1608 = vmatpush1.msra.mxu0 0.0
        %1609 = vmatprep.subr.mxu0 0.0
        %1610 = vmatpush1.msra.mxu0 0.0
        %1611 = vmatprep.subr.mxu0 0.0
        %1612 = vmatpush1.msra.mxu0 0.0
        %1613 = vmatprep.subr.mxu0 0.0
        %1614 = vmatpush1.msra.mxu0 0.0
        %1615 = vmatprep.subr.mxu0 0.0
        %1616 = vmatpush1.msra.mxu0 0.0
        %1617 = vmatprep.subr.mxu0 0.0
        %1618 = vmatpush1.msra.mxu0 0.0
        %1619 = vmatprep.subr.mxu0 0.0
        %1620 = vmatpush1.msra.mxu0 %v1585
        %1621 = vmatprep.subr.mxu0 0.0
        %1622 = vmatpush2.msra.mxu0 0.0
        %1623 = vmatprep.subr.mxu0 0.0
        %1624 = vmatpush2.msra.mxu0 0.0
        %1625 = vmatprep.subr.mxu0 0.0
        %1626 = vmatpush2.msra.mxu0 0.0
        %1627 = vmatprep.subr.mxu0 0.0
        %1628 = vmatpush2.msra.mxu0 0.0
        %1629 = vmatprep.subr.mxu0 0.0
        %1630 = vmatpush2.msra.mxu0 0.0
        %1631 = vmatprep.subr.mxu0 0.0
        %1632 = vmatpush2.msra.mxu0 0.0
        %1633 = vmatprep.subr.mxu0 0.0
        %1634 = vmatpush2.msra.mxu0 0.0
        %1635 = vmatprep.subr.mxu0 0.0
        %1636 = vmatpush2.msra.mxu0 0.0
        %1637 = vmatprep.subr.mxu0 0.0
        %1638 = vmatpush2.msra.mxu0 0.0
        %1639 = vmatprep.subr.mxu0 0.0
        %1640 = vmatpush2.msra.mxu0 0.0
        %1641 = vmatprep.subr.mxu0 0.0
        %1642 = vmatpush2.msra.mxu0 0.0
        %1643 = vmatprep.subr.mxu0 0.0
        %1644 = vmatpush2.msra.mxu0 0.0
        %1645 = vmatprep.subr.mxu0 0.0
        %1646 = vmatpush2.msra.mxu0 0.0
        %1647 = vmatprep.subr.mxu0 0.0
        %1648 = vmatpush2.msra.mxu0 0.0
        %1649 = vmatprep.subr.mxu0 0.0
        %1650 = vmatpush2.msra.mxu0 0.0
        %1651 = vmatprep.subr.mxu0 0.0
        %1652 = vmatpush2.msra.mxu0 0.0
        %1653 = vmatprep.mubr.f32.mxu0 0.0
        %1654 = vmatmul.mubr.f32.gmra.mxu0 %v1587
        %v1655 = vpop.f32.mrf.mxu0
        %v1656 = vadd.f32 0.0, %v1655
        %v1657 = vpop.f32.mrf.mxu0
        %1658 = vdwg.mxu0
        %v1659 = vadd.f32 %v1412, %v1656
        %1660 = vrot.lane.b32.xlu0 %v670, 96
        %v1661 = vpop.permute.xlu0 %1660
        %v1662 = vsel %vm675, %v1661, 0
        %v1665 = vsel %vm675, %v673, 0
        %v1668 = vsel %vm675, %v674, 0
        %1670 = vmatprep.subr.mxu0 0.0
        %1671 = vmatpush1.xpose.msra.mxu0 0.0
        %1672 = vmatprep.subr.mxu0 0.0
        %1673 = vmatpush1.xpose.msra.mxu0 0.0
        %1674 = vmatprep.subr.mxu0 0.0
        %1675 = vmatpush1.xpose.msra.mxu0 0.0
        %1676 = vmatprep.subr.mxu0 0.0
        %1677 = vmatpush1.xpose.msra.mxu0 0.0
        %1678 = vmatprep.subr.mxu0 0.0
        %1679 = vmatpush1.xpose.msra.mxu0 0.0
        %1680 = vmatprep.subr.mxu0 0.0
        %1681 = vmatpush1.xpose.msra.mxu0 0.0
        %1682 = vmatprep.subr.mxu0 0.0
        %1683 = vmatpush1.xpose.msra.mxu0 0.0
        %1684 = vmatprep.subr.mxu0 0.0
        %1685 = vmatpush1.xpose.msra.mxu0 0.0
        %1686 = vmatprep.subr.mxu0 0.0
        %1687 = vmatpush1.xpose.msra.mxu0 0.0
        %1688 = vmatprep.subr.mxu0 0.0
        %1689 = vmatpush1.xpose.msra.mxu0 0.0
        %1690 = vmatprep.subr.mxu0 0.0
        %1691 = vmatpush1.xpose.msra.mxu0 0.0
        %1692 = vmatprep.subr.mxu0 0.0
        %1693 = vmatpush1.xpose.msra.mxu0 0.0
        %1694 = vmatprep.subr.mxu0 0.0
        %1695 = vmatpush1.xpose.msra.mxu0 0.0
        %1696 = vmatprep.subr.mxu0 0.0
        %1697 = vmatpush1.xpose.msra.mxu0 0.0
        %1698 = vmatprep.subr.mxu0 0.0
        %1699 = vmatpush1.xpose.msra.mxu0 %v1668
        %1700 = vmatprep.subr.mxu0 0.0
        %1701 = vmatpush1.xpose.msra.mxu0 %v1665
        %1702 = vmatprep.subr.mxu0 0.0
        %1703 = vmatpush2.xpose.msra.mxu0 0.0
        %1704 = vmatprep.subr.mxu0 0.0
        %1705 = vmatpush2.xpose.msra.mxu0 0.0
        %1706 = vmatprep.subr.mxu0 0.0
        %1707 = vmatpush2.xpose.msra.mxu0 0.0
        %1708 = vmatprep.subr.mxu0 0.0
        %1709 = vmatpush2.xpose.msra.mxu0 0.0
        %1710 = vmatprep.subr.mxu0 0.0
        %1711 = vmatpush2.xpose.msra.mxu0 0.0
        %1712 = vmatprep.subr.mxu0 0.0
        %1713 = vmatpush2.xpose.msra.mxu0 0.0
        %1714 = vmatprep.subr.mxu0 0.0
        %1715 = vmatpush2.xpose.msra.mxu0 0.0
        %1716 = vmatprep.subr.mxu0 0.0
        %1717 = vmatpush2.xpose.msra.mxu0 0.0
        %1718 = vmatprep.subr.mxu0 0.0
        %1719 = vmatpush2.xpose.msra.mxu0 0.0
        %1720 = vmatprep.subr.mxu0 0.0
        %1721 = vmatpush2.xpose.msra.mxu0 0.0
        %1722 = vmatprep.subr.mxu0 0.0
        %1723 = vmatpush2.xpose.msra.mxu0 0.0
        %1724 = vmatprep.subr.mxu0 0.0
        %1725 = vmatpush2.xpose.msra.mxu0 0.0
        %1726 = vmatprep.subr.mxu0 0.0
        %1727 = vmatpush2.xpose.msra.mxu0 0.0
        %1728 = vmatprep.subr.mxu0 0.0
        %1729 = vmatpush2.xpose.msra.mxu0 0.0
        %1730 = vmatprep.subr.mxu0 0.0
        %1731 = vmatpush2.xpose.msra.mxu0 0.0
        %1732 = vmatprep.subr.mxu0 0.0
        %1733 = vmatpush2.xpose.msra.mxu0 0.0
        %1734 = vmatprep.mubr.f32.mxu0 0.0
        %1735 = vmatmul.mubr.f32.gmra.mxu0 %v1662
        %v1736 = vpop.f32.mrf.mxu0
        %v1737 = vadd.f32 0.0, %v1736
        %v1738 = vpop.f32.mrf.mxu0
        %1739 = vdwg.mxu0
        %v1740 = vsel %vm755, %v1737, -inf
        %1741 = vmax.xlane.f32.xlu0 %v1740
        %v1742 = vpop.xlane.xlu0 %1741
        %v1743 = vsub.f32 %v1737, %v1742
        %v1744 = vmul.f32 %v1743, 1.442695
        %v1745 = vpow.pop %v1744
        %v1746 = vsel %vm755, %v1745, 0.0
        %1747 = vadd.xlane.f32.xlu0 %v1746
        %v1748 = vpop.xlane.xlu0 %1747
        %1749 = vrot.lane.b32.xlu0 %v673, 96
        %v1750 = vpop.permute.xlu0 %1749
        %1751 = vrot.lane.b32.xlu0 %v674, 96
        %v1752 = vpop.permute.xlu0 %1751
        %v1756 = vsel %vm755, %v1745, 0
        %1758 = vmatprep.subr.mxu0 0.0
        %1759 = vmatpush1.msra.mxu0 0.0
        %1760 = vmatprep.subr.mxu0 0.0
        %1761 = vmatpush1.msra.mxu0 0.0
        %1762 = vmatprep.subr.mxu0 0.0
        %1763 = vmatpush1.msra.mxu0 0.0
        %1764 = vmatprep.subr.mxu0 0.0
        %1765 = vmatpush1.msra.mxu0 0.0
        %1766 = vmatprep.subr.mxu0 0.0
        %1767 = vmatpush1.msra.mxu0 0.0
        %1768 = vmatprep.subr.mxu0 0.0
        %1769 = vmatpush1.msra.mxu0 0.0
        %1770 = vmatprep.subr.mxu0 0.0
        %1771 = vmatpush1.msra.mxu0 0.0
        %1772 = vmatprep.subr.mxu0 0.0
        %1773 = vmatpush1.msra.mxu0 0.0
        %1774 = vmatprep.subr.mxu0 0.0
        %1775 = vmatpush1.msra.mxu0 0.0
        %1776 = vmatprep.subr.mxu0 0.0
        %1777 = vmatpush1.msra.mxu0 0.0
        %1778 = vmatprep.subr.mxu0 0.0
        %1779 = vmatpush1.msra.mxu0 0.0
        %1780 = vmatprep.subr.mxu0 0.0
        %1781 = vmatpush1.msra.mxu0 0.0
        %1782 = vmatprep.subr.mxu0 0.0
        %1783 = vmatpush1.msra.mxu0 0.0
        %1784 = vmatprep.subr.mxu0 0.0
        %1785 = vmatpush1.msra.mxu0 0.0
        %1786 = vmatprep.subr.mxu0 0.0
        %1787 = vmatpush1.msra.mxu0 %v1752
        %1788 = vmatprep.subr.mxu0 0.0
        %1789 = vmatpush1.msra.mxu0 %v1750
        %1790 = vmatprep.subr.mxu0 0.0
        %1791 = vmatpush2.msra.mxu0 0.0
        %1792 = vmatprep.subr.mxu0 0.0
        %1793 = vmatpush2.msra.mxu0 0.0
        %1794 = vmatprep.subr.mxu0 0.0
        %1795 = vmatpush2.msra.mxu0 0.0
        %1796 = vmatprep.subr.mxu0 0.0
        %1797 = vmatpush2.msra.mxu0 0.0
        %1798 = vmatprep.subr.mxu0 0.0
        %1799 = vmatpush2.msra.mxu0 0.0
        %1800 = vmatprep.subr.mxu0 0.0
        %1801 = vmatpush2.msra.mxu0 0.0
        %1802 = vmatprep.subr.mxu0 0.0
        %1803 = vmatpush2.msra.mxu0 0.0
        %1804 = vmatprep.subr.mxu0 0.0
        %1805 = vmatpush2.msra.mxu0 0.0
        %1806 = vmatprep.subr.mxu0 0.0
        %1807 = vmatpush2.msra.mxu0 0.0
        %1808 = vmatprep.subr.mxu0 0.0
        %1809 = vmatpush2.msra.mxu0 0.0
        %1810 = vmatprep.subr.mxu0 0.0
        %1811 = vmatpush2.msra.mxu0 0.0
        %1812 = vmatprep.subr.mxu0 0.0
        %1813 = vmatpush2.msra.mxu0 0.0
        %1814 = vmatprep.subr.mxu0 0.0
        %1815 = vmatpush2.msra.mxu0 0.0
        %1816 = vmatprep.subr.mxu0 0.0
        %1817 = vmatpush2.msra.mxu0 0.0
        %1818 = vmatprep.subr.mxu0 0.0
        %1819 = vmatpush2.msra.mxu0 0.0
        %1820 = vmatprep.subr.mxu0 0.0
        %1821 = vmatpush2.msra.mxu0 0.0
        %1822 = vmatprep.mubr.f32.mxu0 0.0
        %1823 = vmatmul.mubr.f32.gmra.mxu0 %v1756
        %v1824 = vpop.f32.mrf.mxu0
        %v1825 = vadd.f32 0.0, %v1824
        %v1826 = vpop.f32.mrf.mxu0
        %1827 = vdwg.mxu0
        %v1828 = vrcp.pop %v1748
        %v1829 = vmul.f32 %v1825, %v1828
        %v1830 = vld [vmem:[%s6 + $0x20] sm:$0xff]
        %v1832 = vsel %vm675, %v1829, 0
        %1834 = vmatprep.subr.mxu0 0.0
        %1835 = vmatpush1.msra.mxu0 0.0
        %1836 = vmatprep.subr.mxu0 0.0
        %1837 = vmatpush1.msra.mxu0 0.0
        %1838 = vmatprep.subr.mxu0 0.0
        %1839 = vmatpush1.msra.mxu0 0.0
        %1840 = vmatprep.subr.mxu0 0.0
        %1841 = vmatpush1.msra.mxu0 0.0
        %1842 = vmatprep.subr.mxu0 0.0
        %1843 = vmatpush1.msra.mxu0 0.0
        %1844 = vmatprep.subr.mxu0 0.0
        %1845 = vmatpush1.msra.mxu0 0.0
        %1846 = vmatprep.subr.mxu0 0.0
        %1847 = vmatpush1.msra.mxu0 0.0
        %1848 = vmatprep.subr.mxu0 0.0
        %1849 = vmatpush1.msra.mxu0 0.0
        %1850 = vmatprep.subr.mxu0 0.0
        %1851 = vmatpush1.msra.mxu0 0.0
        %1852 = vmatprep.subr.mxu0 0.0
        %1853 = vmatpush1.msra.mxu0 0.0
        %1854 = vmatprep.subr.mxu0 0.0
        %1855 = vmatpush1.msra.mxu0 0.0
        %1856 = vmatprep.subr.mxu0 0.0
        %1857 = vmatpush1.msra.mxu0 0.0
        %1858 = vmatprep.subr.mxu0 0.0
        %1859 = vmatpush1.msra.mxu0 0.0
        %1860 = vmatprep.subr.mxu0 0.0
        %1861 = vmatpush1.msra.mxu0 0.0
        %1862 = vmatprep.subr.mxu0 0.0
        %1863 = vmatpush1.msra.mxu0 0.0
        %1864 = vmatprep.subr.mxu0 0.0
        %1865 = vmatpush1.msra.mxu0 %v1830
        %1866 = vmatprep.subr.mxu0 0.0
        %1867 = vmatpush2.msra.mxu0 0.0
        %1868 = vmatprep.subr.mxu0 0.0
        %1869 = vmatpush2.msra.mxu0 0.0
        %1870 = vmatprep.subr.mxu0 0.0
        %1871 = vmatpush2.msra.mxu0 0.0
        %1872 = vmatprep.subr.mxu0 0.0
        %1873 = vmatpush2.msra.mxu0 0.0
        %1874 = vmatprep.subr.mxu0 0.0
        %1875 = vmatpush2.msra.mxu0 0.0
        %1876 = vmatprep.subr.mxu0 0.0
        %1877 = vmatpush2.msra.mxu0 0.0
        %1878 = vmatprep.subr.mxu0 0.0
        %1879 = vmatpush2.msra.mxu0 0.0
        %1880 = vmatprep.subr.mxu0 0.0
        %1881 = vmatpush2.msra.mxu0 0.0
        %1882 = vmatprep.subr.mxu0 0.0
        %1883 = vmatpush2.msra.mxu0 0.0
        %1884 = vmatprep.subr.mxu0 0.0
        %1885 = vmatpush2.msra.mxu0 0.0
        %1886 = vmatprep.subr.mxu0 0.0
        %1887 = vmatpush2.msra.mxu0 0.0
        %1888 = vmatprep.subr.mxu0 0.0
        %1889 = vmatpush2.msra.mxu0 0.0
        %1890 = vmatprep.subr.mxu0 0.0
        %1891 = vmatpush2.msra.mxu0 0.0
        %1892 = vmatprep.subr.mxu0 0.0
        %1893 = vmatpush2.msra.mxu0 0.0
        %1894 = vmatprep.subr.mxu0 0.0
        %1895 = vmatpush2.msra.mxu0 0.0
        %1896 = vmatprep.subr.mxu0 0.0
        %1897 = vmatpush2.msra.mxu0 0.0
        %1898 = vmatprep.mubr.f32.mxu0 0.0
        %1899 = vmatmul.mubr.f32.gmra.mxu0 %v1832
        %v1900 = vpop.f32.mrf.mxu0
        %v1901 = vadd.f32 0.0, %v1900
        %v1902 = vpop.f32.mrf.mxu0
        %1903 = vdwg.mxu0
        %v1904 = vadd.f32 %v1659, %v1901
        %1905 = vrot.lane.b32.xlu0 %v670, 88
        %v1906 = vpop.permute.xlu0 %1905
        %1907 = vrot.lane.b32.xlu0 %v673, 120
        %v1908 = vpop.permute.xlu0 %1907
        %1909 = vrot.lane.b32.xlu0 %v674, 120
        %v1910 = vpop.permute.xlu0 %1909
        %v1911 = vsel %vm675, %v1906, 0
        %v1913 = vsel %vm675, %v1908, 0
        %v1915 = vsel %vm675, %v1910, 0
        %1917 = vmatprep.subr.mxu0 0.0
        %1918 = vmatpush1.xpose.msra.mxu0 0.0
        %1919 = vmatprep.subr.mxu0 0.0
        %1920 = vmatpush1.xpose.msra.mxu0 0.0
        %1921 = vmatprep.subr.mxu0 0.0
        %1922 = vmatpush1.xpose.msra.mxu0 0.0
        %1923 = vmatprep.subr.mxu0 0.0
        %1924 = vmatpush1.xpose.msra.mxu0 0.0
        %1925 = vmatprep.subr.mxu0 0.0
        %1926 = vmatpush1.xpose.msra.mxu0 0.0
        %1927 = vmatprep.subr.mxu0 0.0
        %1928 = vmatpush1.xpose.msra.mxu0 0.0
        %1929 = vmatprep.subr.mxu0 0.0
        %1930 = vmatpush1.xpose.msra.mxu0 0.0
        %1931 = vmatprep.subr.mxu0 0.0
        %1932 = vmatpush1.xpose.msra.mxu0 0.0
        %1933 = vmatprep.subr.mxu0 0.0
        %1934 = vmatpush1.xpose.msra.mxu0 0.0
        %1935 = vmatprep.subr.mxu0 0.0
        %1936 = vmatpush1.xpose.msra.mxu0 0.0
        %1937 = vmatprep.subr.mxu0 0.0
        %1938 = vmatpush1.xpose.msra.mxu0 0.0
        %1939 = vmatprep.subr.mxu0 0.0
        %1940 = vmatpush1.xpose.msra.mxu0 0.0
        %1941 = vmatprep.subr.mxu0 0.0
        %1942 = vmatpush1.xpose.msra.mxu0 0.0
        %1943 = vmatprep.subr.mxu0 0.0
        %1944 = vmatpush1.xpose.msra.mxu0 0.0
        %1945 = vmatprep.subr.mxu0 0.0
        %1946 = vmatpush1.xpose.msra.mxu0 %v1915
        %1947 = vmatprep.subr.mxu0 0.0
        %1948 = vmatpush1.xpose.msra.mxu0 %v1913
        %1949 = vmatprep.subr.mxu0 0.0
        %1950 = vmatpush2.xpose.msra.mxu0 0.0
        %1951 = vmatprep.subr.mxu0 0.0
        %1952 = vmatpush2.xpose.msra.mxu0 0.0
        %1953 = vmatprep.subr.mxu0 0.0
        %1954 = vmatpush2.xpose.msra.mxu0 0.0
        %1955 = vmatprep.subr.mxu0 0.0
        %1956 = vmatpush2.xpose.msra.mxu0 0.0
        %1957 = vmatprep.subr.mxu0 0.0
        %1958 = vmatpush2.xpose.msra.mxu0 0.0
        %1959 = vmatprep.subr.mxu0 0.0
        %1960 = vmatpush2.xpose.msra.mxu0 0.0
        %1961 = vmatprep.subr.mxu0 0.0
        %1962 = vmatpush2.xpose.msra.mxu0 0.0
        %1963 = vmatprep.subr.mxu0 0.0
        %1964 = vmatpush2.xpose.msra.mxu0 0.0
        %1965 = vmatprep.subr.mxu0 0.0
        %1966 = vmatpush2.xpose.msra.mxu0 0.0
        %1967 = vmatprep.subr.mxu0 0.0
        %1968 = vmatpush2.xpose.msra.mxu0 0.0
        %1969 = vmatprep.subr.mxu0 0.0
        %1970 = vmatpush2.xpose.msra.mxu0 0.0
        %1971 = vmatprep.subr.mxu0 0.0
        %1972 = vmatpush2.xpose.msra.mxu0 0.0
        %1973 = vmatprep.subr.mxu0 0.0
        %1974 = vmatpush2.xpose.msra.mxu0 0.0
        %1975 = vmatprep.subr.mxu0 0.0
        %1976 = vmatpush2.xpose.msra.mxu0 0.0
        %1977 = vmatprep.subr.mxu0 0.0
        %1978 = vmatpush2.xpose.msra.mxu0 0.0
        %1979 = vmatprep.subr.mxu0 0.0
        %1980 = vmatpush2.xpose.msra.mxu0 0.0
        %1981 = vmatprep.mubr.f32.mxu0 0.0
        %1982 = vmatmul.mubr.f32.gmra.mxu0 %v1911
        %v1983 = vpop.f32.mrf.mxu0
        %v1984 = vadd.f32 0.0, %v1983
        %v1985 = vpop.f32.mrf.mxu0
        %1986 = vdwg.mxu0
        %v1987 = vsel %vm755, %v1984, -inf
        %1988 = vmax.xlane.f32.xlu0 %v1987
        %v1989 = vpop.xlane.xlu0 %1988
        %v1990 = vsub.f32 %v1984, %v1989
        %v1991 = vmul.f32 %v1990, 1.442695
        %v1992 = vpow.pop %v1991
        %v1993 = vsel %vm755, %v1992, 0.0
        %1994 = vadd.xlane.f32.xlu0 %v1993
        %v1995 = vpop.xlane.xlu0 %1994
        %1996 = vrot.lane.b32.xlu0 %v673, 88
        %v1997 = vpop.permute.xlu0 %1996
        %1998 = vrot.lane.b32.xlu0 %v674, 88
        %v1999 = vpop.permute.xlu0 %1998
        %v2003 = vsel %vm755, %v1992, 0
        %2005 = vmatprep.subr.mxu0 0.0
        %2006 = vmatpush1.msra.mxu0 0.0
        %2007 = vmatprep.subr.mxu0 0.0
        %2008 = vmatpush1.msra.mxu0 0.0
        %2009 = vmatprep.subr.mxu0 0.0
        %2010 = vmatpush1.msra.mxu0 0.0
        %2011 = vmatprep.subr.mxu0 0.0
        %2012 = vmatpush1.msra.mxu0 0.0
        %2013 = vmatprep.subr.mxu0 0.0
        %2014 = vmatpush1.msra.mxu0 0.0
        %2015 = vmatprep.subr.mxu0 0.0
        %2016 = vmatpush1.msra.mxu0 0.0
        %2017 = vmatprep.subr.mxu0 0.0
        %2018 = vmatpush1.msra.mxu0 0.0
        %2019 = vmatprep.subr.mxu0 0.0
        %2020 = vmatpush1.msra.mxu0 0.0
        %2021 = vmatprep.subr.mxu0 0.0
        %2022 = vmatpush1.msra.mxu0 0.0
        %2023 = vmatprep.subr.mxu0 0.0
        %2024 = vmatpush1.msra.mxu0 0.0
        %2025 = vmatprep.subr.mxu0 0.0
        %2026 = vmatpush1.msra.mxu0 0.0
        %2027 = vmatprep.subr.mxu0 0.0
        %2028 = vmatpush1.msra.mxu0 0.0
        %2029 = vmatprep.subr.mxu0 0.0
        %2030 = vmatpush1.msra.mxu0 0.0
        %2031 = vmatprep.subr.mxu0 0.0
        %2032 = vmatpush1.msra.mxu0 0.0
        %2033 = vmatprep.subr.mxu0 0.0
        %2034 = vmatpush1.msra.mxu0 %v1999
        %2035 = vmatprep.subr.mxu0 0.0
        %2036 = vmatpush1.msra.mxu0 %v1997
        %2037 = vmatprep.subr.mxu0 0.0
        %2038 = vmatpush2.msra.mxu0 0.0
        %2039 = vmatprep.subr.mxu0 0.0
        %2040 = vmatpush2.msra.mxu0 0.0
        %2041 = vmatprep.subr.mxu0 0.0
        %2042 = vmatpush2.msra.mxu0 0.0
        %2043 = vmatprep.subr.mxu0 0.0
        %2044 = vmatpush2.msra.mxu0 0.0
        %2045 = vmatprep.subr.mxu0 0.0
        %2046 = vmatpush2.msra.mxu0 0.0
        %2047 = vmatprep.subr.mxu0 0.0
        %2048 = vmatpush2.msra.mxu0 0.0
        %2049 = vmatprep.subr.mxu0 0.0
        %2050 = vmatpush2.msra.mxu0 0.0
        %2051 = vmatprep.subr.mxu0 0.0
        %2052 = vmatpush2.msra.mxu0 0.0
        %2053 = vmatprep.subr.mxu0 0.0
        %2054 = vmatpush2.msra.mxu0 0.0
        %2055 = vmatprep.subr.mxu0 0.0
        %2056 = vmatpush2.msra.mxu0 0.0
        %2057 = vmatprep.subr.mxu0 0.0
        %2058 = vmatpush2.msra.mxu0 0.0
        %2059 = vmatprep.subr.mxu0 0.0
        %2060 = vmatpush2.msra.mxu0 0.0
        %2061 = vmatprep.subr.mxu0 0.0
        %2062 = vmatpush2.msra.mxu0 0.0
        %2063 = vmatprep.subr.mxu0 0.0
        %2064 = vmatpush2.msra.mxu0 0.0
        %2065 = vmatprep.subr.mxu0 0.0
        %2066 = vmatpush2.msra.mxu0 0.0
        %2067 = vmatprep.subr.mxu0 0.0
        %2068 = vmatpush2.msra.mxu0 0.0
        %2069 = vmatprep.mubr.f32.mxu0 0.0
        %2070 = vmatmul.mubr.f32.gmra.mxu0 %v2003
        %v2071 = vpop.f32.mrf.mxu0
        %v2072 = vadd.f32 0.0, %v2071
        %v2073 = vpop.f32.mrf.mxu0
        %2074 = vdwg.mxu0
        %v2075 = vrcp.pop %v1995
        %v2076 = vmul.f32 %v2072, %v2075
        %v2077 = vld [vmem:[%s6 + $0x28] sm:$0xff]
        %v2079 = vsel %vm675, %v2076, 0
        %2081 = vmatprep.subr.mxu0 0.0
        %2082 = vmatpush1.msra.mxu0 0.0
        %2083 = vmatprep.subr.mxu0 0.0
        %2084 = vmatpush1.msra.mxu0 0.0
        %2085 = vmatprep.subr.mxu0 0.0
        %2086 = vmatpush1.msra.mxu0 0.0
        %2087 = vmatprep.subr.mxu0 0.0
        %2088 = vmatpush1.msra.mxu0 0.0
        %2089 = vmatprep.subr.mxu0 0.0
        %2090 = vmatpush1.msra.mxu0 0.0
        %2091 = vmatprep.subr.mxu0 0.0
        %2092 = vmatpush1.msra.mxu0 0.0
        %2093 = vmatprep.subr.mxu0 0.0
        %2094 = vmatpush1.msra.mxu0 0.0
        %2095 = vmatprep.subr.mxu0 0.0
        %2096 = vmatpush1.msra.mxu0 0.0
        %2097 = vmatprep.subr.mxu0 0.0
        %2098 = vmatpush1.msra.mxu0 0.0
        %2099 = vmatprep.subr.mxu0 0.0
        %2100 = vmatpush1.msra.mxu0 0.0
        %2101 = vmatprep.subr.mxu0 0.0
        %2102 = vmatpush1.msra.mxu0 0.0
        %2103 = vmatprep.subr.mxu0 0.0
        %2104 = vmatpush1.msra.mxu0 0.0
        %2105 = vmatprep.subr.mxu0 0.0
        %2106 = vmatpush1.msra.mxu0 0.0
        %2107 = vmatprep.subr.mxu0 0.0
        %2108 = vmatpush1.msra.mxu0 0.0
        %2109 = vmatprep.subr.mxu0 0.0
        %2110 = vmatpush1.msra.mxu0 0.0
        %2111 = vmatprep.subr.mxu0 0.0
        %2112 = vmatpush1.msra.mxu0 %v2077
        %2113 = vmatprep.subr.mxu0 0.0
        %2114 = vmatpush2.msra.mxu0 0.0
        %2115 = vmatprep.subr.mxu0 0.0
        %2116 = vmatpush2.msra.mxu0 0.0
        %2117 = vmatprep.subr.mxu0 0.0
        %2118 = vmatpush2.msra.mxu0 0.0
        %2119 = vmatprep.subr.mxu0 0.0
        %2120 = vmatpush2.msra.mxu0 0.0
        %2121 = vmatprep.subr.mxu0 0.0
        %2122 = vmatpush2.msra.mxu0 0.0
        %2123 = vmatprep.subr.mxu0 0.0
        %2124 = vmatpush2.msra.mxu0 0.0
        %2125 = vmatprep.subr.mxu0 0.0
        %2126 = vmatpush2.msra.mxu0 0.0
        %2127 = vmatprep.subr.mxu0 0.0
        %2128 = vmatpush2.msra.mxu0 0.0
        %2129 = vmatprep.subr.mxu0 0.0
        %2130 = vmatpush2.msra.mxu0 0.0
        %2131 = vmatprep.subr.mxu0 0.0
        %2132 = vmatpush2.msra.mxu0 0.0
        %2133 = vmatprep.subr.mxu0 0.0
        %2134 = vmatpush2.msra.mxu0 0.0
        %2135 = vmatprep.subr.mxu0 0.0
        %2136 = vmatpush2.msra.mxu0 0.0
        %2137 = vmatprep.subr.mxu0 0.0
        %2138 = vmatpush2.msra.mxu0 0.0
        %2139 = vmatprep.subr.mxu0 0.0
        %2140 = vmatpush2.msra.mxu0 0.0
        %2141 = vmatprep.subr.mxu0 0.0
        %2142 = vmatpush2.msra.mxu0 0.0
        %2143 = vmatprep.subr.mxu0 0.0
        %2144 = vmatpush2.msra.mxu0 0.0
        %2145 = vmatprep.mubr.f32.mxu0 0.0
        %2146 = vmatmul.mubr.f32.gmra.mxu0 %v2079
        %v2147 = vpop.f32.mrf.mxu0
        %v2148 = vadd.f32 0.0, %v2147
        %v2149 = vpop.f32.mrf.mxu0
        %2150 = vdwg.mxu0
        %v2151 = vadd.f32 %v1904, %v2148
        %2152 = vrot.lane.b32.xlu0 %v670, 80
        %v2153 = vpop.permute.xlu0 %2152
        %2154 = vrot.lane.b32.xlu0 %v673, 112
        %v2155 = vpop.permute.xlu0 %2154
        %2156 = vrot.lane.b32.xlu0 %v674, 112
        %v2157 = vpop.permute.xlu0 %2156
        %v2158 = vsel %vm675, %v2153, 0
        %v2160 = vsel %vm675, %v2155, 0
        %v2162 = vsel %vm675, %v2157, 0
        %2164 = vmatprep.subr.mxu0 0.0
        %2165 = vmatpush1.xpose.msra.mxu0 0.0
        %2166 = vmatprep.subr.mxu0 0.0
        %2167 = vmatpush1.xpose.msra.mxu0 0.0
        %2168 = vmatprep.subr.mxu0 0.0
        %2169 = vmatpush1.xpose.msra.mxu0 0.0
        %2170 = vmatprep.subr.mxu0 0.0
        %2171 = vmatpush1.xpose.msra.mxu0 0.0
        %2172 = vmatprep.subr.mxu0 0.0
        %2173 = vmatpush1.xpose.msra.mxu0 0.0
        %2174 = vmatprep.subr.mxu0 0.0
        %2175 = vmatpush1.xpose.msra.mxu0 0.0
        %2176 = vmatprep.subr.mxu0 0.0
        %2177 = vmatpush1.xpose.msra.mxu0 0.0
        %2178 = vmatprep.subr.mxu0 0.0
        %2179 = vmatpush1.xpose.msra.mxu0 0.0
        %2180 = vmatprep.subr.mxu0 0.0
        %2181 = vmatpush1.xpose.msra.mxu0 0.0
        %2182 = vmatprep.subr.mxu0 0.0
        %2183 = vmatpush1.xpose.msra.mxu0 0.0
        %2184 = vmatprep.subr.mxu0 0.0
        %2185 = vmatpush1.xpose.msra.mxu0 0.0
        %2186 = vmatprep.subr.mxu0 0.0
        %2187 = vmatpush1.xpose.msra.mxu0 0.0
        %2188 = vmatprep.subr.mxu0 0.0
        %2189 = vmatpush1.xpose.msra.mxu0 0.0
        %2190 = vmatprep.subr.mxu0 0.0
        %2191 = vmatpush1.xpose.msra.mxu0 0.0
        %2192 = vmatprep.subr.mxu0 0.0
        %2193 = vmatpush1.xpose.msra.mxu0 %v2162
        %2194 = vmatprep.subr.mxu0 0.0
        %2195 = vmatpush1.xpose.msra.mxu0 %v2160
        %2196 = vmatprep.subr.mxu0 0.0
        %2197 = vmatpush2.xpose.msra.mxu0 0.0
        %2198 = vmatprep.subr.mxu0 0.0
        %2199 = vmatpush2.xpose.msra.mxu0 0.0
        %2200 = vmatprep.subr.mxu0 0.0
        %2201 = vmatpush2.xpose.msra.mxu0 0.0
        %2202 = vmatprep.subr.mxu0 0.0
        %2203 = vmatpush2.xpose.msra.mxu0 0.0
        %2204 = vmatprep.subr.mxu0 0.0
        %2205 = vmatpush2.xpose.msra.mxu0 0.0
        %2206 = vmatprep.subr.mxu0 0.0
        %2207 = vmatpush2.xpose.msra.mxu0 0.0
        %2208 = vmatprep.subr.mxu0 0.0
        %2209 = vmatpush2.xpose.msra.mxu0 0.0
        %2210 = vmatprep.subr.mxu0 0.0
        %2211 = vmatpush2.xpose.msra.mxu0 0.0
        %2212 = vmatprep.subr.mxu0 0.0
        %2213 = vmatpush2.xpose.msra.mxu0 0.0
        %2214 = vmatprep.subr.mxu0 0.0
        %2215 = vmatpush2.xpose.msra.mxu0 0.0
        %2216 = vmatprep.subr.mxu0 0.0
        %2217 = vmatpush2.xpose.msra.mxu0 0.0
        %2218 = vmatprep.subr.mxu0 0.0
        %2219 = vmatpush2.xpose.msra.mxu0 0.0
        %2220 = vmatprep.subr.mxu0 0.0
        %2221 = vmatpush2.xpose.msra.mxu0 0.0
        %2222 = vmatprep.subr.mxu0 0.0
        %2223 = vmatpush2.xpose.msra.mxu0 0.0
        %2224 = vmatprep.subr.mxu0 0.0
        %2225 = vmatpush2.xpose.msra.mxu0 0.0
        %2226 = vmatprep.subr.mxu0 0.0
        %2227 = vmatpush2.xpose.msra.mxu0 0.0
        %2228 = vmatprep.mubr.f32.mxu0 0.0
        %2229 = vmatmul.mubr.f32.gmra.mxu0 %v2158
        %v2230 = vpop.f32.mrf.mxu0
        %v2231 = vadd.f32 0.0, %v2230
        %v2232 = vpop.f32.mrf.mxu0
        %2233 = vdwg.mxu0
        %v2234 = vsel %vm755, %v2231, -inf
        %2235 = vmax.xlane.f32.xlu0 %v2234
        %v2236 = vpop.xlane.xlu0 %2235
        %v2237 = vsub.f32 %v2231, %v2236
        %v2238 = vmul.f32 %v2237, 1.442695
        %v2239 = vpow.pop %v2238
        %v2240 = vsel %vm755, %v2239, 0.0
        %2241 = vadd.xlane.f32.xlu0 %v2240
        %v2242 = vpop.xlane.xlu0 %2241
        %2243 = vrot.lane.b32.xlu0 %v673, 80
        %v2244 = vpop.permute.xlu0 %2243
        %2245 = vrot.lane.b32.xlu0 %v674, 80
        %v2246 = vpop.permute.xlu0 %2245
        %v2250 = vsel %vm755, %v2239, 0
        %2252 = vmatprep.subr.mxu0 0.0
        %2253 = vmatpush1.msra.mxu0 0.0
        %2254 = vmatprep.subr.mxu0 0.0
        %2255 = vmatpush1.msra.mxu0 0.0
        %2256 = vmatprep.subr.mxu0 0.0
        %2257 = vmatpush1.msra.mxu0 0.0
        %2258 = vmatprep.subr.mxu0 0.0
        %2259 = vmatpush1.msra.mxu0 0.0
        %2260 = vmatprep.subr.mxu0 0.0
        %2261 = vmatpush1.msra.mxu0 0.0
        %2262 = vmatprep.subr.mxu0 0.0
        %2263 = vmatpush1.msra.mxu0 0.0
        %2264 = vmatprep.subr.mxu0 0.0
        %2265 = vmatpush1.msra.mxu0 0.0
        %2266 = vmatprep.subr.mxu0 0.0
        %2267 = vmatpush1.msra.mxu0 0.0
        %2268 = vmatprep.subr.mxu0 0.0
        %2269 = vmatpush1.msra.mxu0 0.0
        %2270 = vmatprep.subr.mxu0 0.0
        %2271 = vmatpush1.msra.mxu0 0.0
        %2272 = vmatprep.subr.mxu0 0.0
        %2273 = vmatpush1.msra.mxu0 0.0
        %2274 = vmatprep.subr.mxu0 0.0
        %2275 = vmatpush1.msra.mxu0 0.0
        %2276 = vmatprep.subr.mxu0 0.0
        %2277 = vmatpush1.msra.mxu0 0.0
        %2278 = vmatprep.subr.mxu0 0.0
        %2279 = vmatpush1.msra.mxu0 0.0
        %2280 = vmatprep.subr.mxu0 0.0
        %2281 = vmatpush1.msra.mxu0 %v2246
        %2282 = vmatprep.subr.mxu0 0.0
        %2283 = vmatpush1.msra.mxu0 %v2244
        %2284 = vmatprep.subr.mxu0 0.0
        %2285 = vmatpush2.msra.mxu0 0.0
        %2286 = vmatprep.subr.mxu0 0.0
        %2287 = vmatpush2.msra.mxu0 0.0
        %2288 = vmatprep.subr.mxu0 0.0
        %2289 = vmatpush2.msra.mxu0 0.0
        %2290 = vmatprep.subr.mxu0 0.0
        %2291 = vmatpush2.msra.mxu0 0.0
        %2292 = vmatprep.subr.mxu0 0.0
        %2293 = vmatpush2.msra.mxu0 0.0
        %2294 = vmatprep.subr.mxu0 0.0
        %2295 = vmatpush2.msra.mxu0 0.0
        %2296 = vmatprep.subr.mxu0 0.0
        %2297 = vmatpush2.msra.mxu0 0.0
        %2298 = vmatprep.subr.mxu0 0.0
        %2299 = vmatpush2.msra.mxu0 0.0
        %2300 = vmatprep.subr.mxu0 0.0
        %2301 = vmatpush2.msra.mxu0 0.0
        %2302 = vmatprep.subr.mxu0 0.0
        %2303 = vmatpush2.msra.mxu0 0.0
        %2304 = vmatprep.subr.mxu0 0.0
        %2305 = vmatpush2.msra.mxu0 0.0
        %2306 = vmatprep.subr.mxu0 0.0
        %2307 = vmatpush2.msra.mxu0 0.0
        %2308 = vmatprep.subr.mxu0 0.0
        %2309 = vmatpush2.msra.mxu0 0.0
        %2310 = vmatprep.subr.mxu0 0.0
        %2311 = vmatpush2.msra.mxu0 0.0
        %2312 = vmatprep.subr.mxu0 0.0
        %2313 = vmatpush2.msra.mxu0 0.0
        %2314 = vmatprep.subr.mxu0 0.0
        %2315 = vmatpush2.msra.mxu0 0.0
        %2316 = vmatprep.mubr.f32.mxu0 0.0
        %2317 = vmatmul.mubr.f32.gmra.mxu0 %v2250
        %v2318 = vpop.f32.mrf.mxu0
        %v2319 = vadd.f32 0.0, %v2318
        %v2320 = vpop.f32.mrf.mxu0
        %2321 = vdwg.mxu0
        %v2322 = vrcp.pop %v2242
        %v2323 = vmul.f32 %v2319, %v2322
        %v2324 = vld [vmem:[%s6 + $0x30] sm:$0xff]
        %v2326 = vsel %vm675, %v2323, 0
        %2328 = vmatprep.subr.mxu0 0.0
        %2329 = vmatpush1.msra.mxu0 0.0
        %2330 = vmatprep.subr.mxu0 0.0
        %2331 = vmatpush1.msra.mxu0 0.0
        %2332 = vmatprep.subr.mxu0 0.0
        %2333 = vmatpush1.msra.mxu0 0.0
        %2334 = vmatprep.subr.mxu0 0.0
        %2335 = vmatpush1.msra.mxu0 0.0
        %2336 = vmatprep.subr.mxu0 0.0
        %2337 = vmatpush1.msra.mxu0 0.0
        %2338 = vmatprep.subr.mxu0 0.0
        %2339 = vmatpush1.msra.mxu0 0.0
        %2340 = vmatprep.subr.mxu0 0.0
        %2341 = vmatpush1.msra.mxu0 0.0
        %2342 = vmatprep.subr.mxu0 0.0
        %2343 = vmatpush1.msra.mxu0 0.0
        %2344 = vmatprep.subr.mxu0 0.0
        %2345 = vmatpush1.msra.mxu0 0.0
        %2346 = vmatprep.subr.mxu0 0.0
        %2347 = vmatpush1.msra.mxu0 0.0
        %2348 = vmatprep.subr.mxu0 0.0
        %2349 = vmatpush1.msra.mxu0 0.0
        %2350 = vmatprep.subr.mxu0 0.0
        %2351 = vmatpush1.msra.mxu0 0.0
        %2352 = vmatprep.subr.mxu0 0.0
        %2353 = vmatpush1.msra.mxu0 0.0
        %2354 = vmatprep.subr.mxu0 0.0
        %2355 = vmatpush1.msra.mxu0 0.0
        %2356 = vmatprep.subr.mxu0 0.0
        %2357 = vmatpush1.msra.mxu0 0.0
        %2358 = vmatprep.subr.mxu0 0.0
        %2359 = vmatpush1.msra.mxu0 %v2324
        %2360 = vmatprep.subr.mxu0 0.0
        %2361 = vmatpush2.msra.mxu0 0.0
        %2362 = vmatprep.subr.mxu0 0.0
        %2363 = vmatpush2.msra.mxu0 0.0
        %2364 = vmatprep.subr.mxu0 0.0
        %2365 = vmatpush2.msra.mxu0 0.0
        %2366 = vmatprep.subr.mxu0 0.0
        %2367 = vmatpush2.msra.mxu0 0.0
        %2368 = vmatprep.subr.mxu0 0.0
        %2369 = vmatpush2.msra.mxu0 0.0
        %2370 = vmatprep.subr.mxu0 0.0
        %2371 = vmatpush2.msra.mxu0 0.0
        %2372 = vmatprep.subr.mxu0 0.0
        %2373 = vmatpush2.msra.mxu0 0.0
        %2374 = vmatprep.subr.mxu0 0.0
        %2375 = vmatpush2.msra.mxu0 0.0
        %2376 = vmatprep.subr.mxu0 0.0
        %2377 = vmatpush2.msra.mxu0 0.0
        %2378 = vmatprep.subr.mxu0 0.0
        %2379 = vmatpush2.msra.mxu0 0.0
        %2380 = vmatprep.subr.mxu0 0.0
        %2381 = vmatpush2.msra.mxu0 0.0
        %2382 = vmatprep.subr.mxu0 0.0
        %2383 = vmatpush2.msra.mxu0 0.0
        %2384 = vmatprep.subr.mxu0 0.0
        %2385 = vmatpush2.msra.mxu0 0.0
        %2386 = vmatprep.subr.mxu0 0.0
        %2387 = vmatpush2.msra.mxu0 0.0
        %2388 = vmatprep.subr.mxu0 0.0
        %2389 = vmatpush2.msra.mxu0 0.0
        %2390 = vmatprep.subr.mxu0 0.0
        %2391 = vmatpush2.msra.mxu0 0.0
        %2392 = vmatprep.mubr.f32.mxu0 0.0
        %2393 = vmatmul.mubr.f32.gmra.mxu0 %v2326
        %v2394 = vpop.f32.mrf.mxu0
        %v2395 = vadd.f32 0.0, %v2394
        %v2396 = vpop.f32.mrf.mxu0
        %2397 = vdwg.mxu0
        %v2398 = vadd.f32 %v2151, %v2395
        %2399 = vrot.lane.b32.xlu0 %v670, 72
        %v2400 = vpop.permute.xlu0 %2399
        %2401 = vrot.lane.b32.xlu0 %v673, 104
        %v2402 = vpop.permute.xlu0 %2401
        %2403 = vrot.lane.b32.xlu0 %v674, 104
        %v2404 = vpop.permute.xlu0 %2403
        %v2405 = vsel %vm675, %v2400, 0
        %v2407 = vsel %vm675, %v2402, 0
        %v2409 = vsel %vm675, %v2404, 0
        %2411 = vmatprep.subr.mxu0 0.0
        %2412 = vmatpush1.xpose.msra.mxu0 0.0
        %2413 = vmatprep.subr.mxu0 0.0
        %2414 = vmatpush1.xpose.msra.mxu0 0.0
        %2415 = vmatprep.subr.mxu0 0.0
        %2416 = vmatpush1.xpose.msra.mxu0 0.0
        %2417 = vmatprep.subr.mxu0 0.0
        %2418 = vmatpush1.xpose.msra.mxu0 0.0
        %2419 = vmatprep.subr.mxu0 0.0
        %2420 = vmatpush1.xpose.msra.mxu0 0.0
        %2421 = vmatprep.subr.mxu0 0.0
        %2422 = vmatpush1.xpose.msra.mxu0 0.0
        %2423 = vmatprep.subr.mxu0 0.0
        %2424 = vmatpush1.xpose.msra.mxu0 0.0
        %2425 = vmatprep.subr.mxu0 0.0
        %2426 = vmatpush1.xpose.msra.mxu0 0.0
        %2427 = vmatprep.subr.mxu0 0.0
        %2428 = vmatpush1.xpose.msra.mxu0 0.0
        %2429 = vmatprep.subr.mxu0 0.0
        %2430 = vmatpush1.xpose.msra.mxu0 0.0
        %2431 = vmatprep.subr.mxu0 0.0
        %2432 = vmatpush1.xpose.msra.mxu0 0.0
        %2433 = vmatprep.subr.mxu0 0.0
        %2434 = vmatpush1.xpose.msra.mxu0 0.0
        %2435 = vmatprep.subr.mxu0 0.0
        %2436 = vmatpush1.xpose.msra.mxu0 0.0
        %2437 = vmatprep.subr.mxu0 0.0
        %2438 = vmatpush1.xpose.msra.mxu0 0.0
        %2439 = vmatprep.subr.mxu0 0.0
        %2440 = vmatpush1.xpose.msra.mxu0 %v2409
        %2441 = vmatprep.subr.mxu0 0.0
        %2442 = vmatpush1.xpose.msra.mxu0 %v2407
        %2443 = vmatprep.subr.mxu0 0.0
        %2444 = vmatpush2.xpose.msra.mxu0 0.0
        %2445 = vmatprep.subr.mxu0 0.0
        %2446 = vmatpush2.xpose.msra.mxu0 0.0
        %2447 = vmatprep.subr.mxu0 0.0
        %2448 = vmatpush2.xpose.msra.mxu0 0.0
        %2449 = vmatprep.subr.mxu0 0.0
        %2450 = vmatpush2.xpose.msra.mxu0 0.0
        %2451 = vmatprep.subr.mxu0 0.0
        %2452 = vmatpush2.xpose.msra.mxu0 0.0
        %2453 = vmatprep.subr.mxu0 0.0
        %2454 = vmatpush2.xpose.msra.mxu0 0.0
        %2455 = vmatprep.subr.mxu0 0.0
        %2456 = vmatpush2.xpose.msra.mxu0 0.0
        %2457 = vmatprep.subr.mxu0 0.0
        %2458 = vmatpush2.xpose.msra.mxu0 0.0
        %2459 = vmatprep.subr.mxu0 0.0
        %2460 = vmatpush2.xpose.msra.mxu0 0.0
        %2461 = vmatprep.subr.mxu0 0.0
        %2462 = vmatpush2.xpose.msra.mxu0 0.0
        %2463 = vmatprep.subr.mxu0 0.0
        %2464 = vmatpush2.xpose.msra.mxu0 0.0
        %2465 = vmatprep.subr.mxu0 0.0
        %2466 = vmatpush2.xpose.msra.mxu0 0.0
        %2467 = vmatprep.subr.mxu0 0.0
        %2468 = vmatpush2.xpose.msra.mxu0 0.0
        %2469 = vmatprep.subr.mxu0 0.0
        %2470 = vmatpush2.xpose.msra.mxu0 0.0
        %2471 = vmatprep.subr.mxu0 0.0
        %2472 = vmatpush2.xpose.msra.mxu0 0.0
        %2473 = vmatprep.subr.mxu0 0.0
        %2474 = vmatpush2.xpose.msra.mxu0 0.0
        %2475 = vmatprep.mubr.f32.mxu0 0.0
        %2476 = vmatmul.mubr.f32.gmra.mxu0 %v2405
        %v2477 = vpop.f32.mrf.mxu0
        %v2478 = vadd.f32 0.0, %v2477
        %v2479 = vpop.f32.mrf.mxu0
        %2480 = vdwg.mxu0
        %v2481 = vsel %vm755, %v2478, -inf
        %2482 = vmax.xlane.f32.xlu0 %v2481
        %v2483 = vpop.xlane.xlu0 %2482
        %v2484 = vsub.f32 %v2478, %v2483
        %v2485 = vmul.f32 %v2484, 1.442695
        %v2486 = vpow.pop %v2485
        %v2487 = vsel %vm755, %v2486, 0.0
        %2488 = vadd.xlane.f32.xlu0 %v2487
        %v2489 = vpop.xlane.xlu0 %2488
        %2490 = vrot.lane.b32.xlu0 %v673, 72
        %v2491 = vpop.permute.xlu0 %2490
        %2492 = vrot.lane.b32.xlu0 %v674, 72
        %v2493 = vpop.permute.xlu0 %2492
        %v2497 = vsel %vm755, %v2486, 0
        %2499 = vmatprep.subr.mxu0 0.0
        %2500 = vmatpush1.msra.mxu0 0.0
        %2501 = vmatprep.subr.mxu0 0.0
        %2502 = vmatpush1.msra.mxu0 0.0
        %2503 = vmatprep.subr.mxu0 0.0
        %2504 = vmatpush1.msra.mxu0 0.0
        %2505 = vmatprep.subr.mxu0 0.0
        %2506 = vmatpush1.msra.mxu0 0.0
        %2507 = vmatprep.subr.mxu0 0.0
        %2508 = vmatpush1.msra.mxu0 0.0
        %2509 = vmatprep.subr.mxu0 0.0
        %2510 = vmatpush1.msra.mxu0 0.0
        %2511 = vmatprep.subr.mxu0 0.0
        %2512 = vmatpush1.msra.mxu0 0.0
        %2513 = vmatprep.subr.mxu0 0.0
        %2514 = vmatpush1.msra.mxu0 0.0
        %2515 = vmatprep.subr.mxu0 0.0
        %2516 = vmatpush1.msra.mxu0 0.0
        %2517 = vmatprep.subr.mxu0 0.0
        %2518 = vmatpush1.msra.mxu0 0.0
        %2519 = vmatprep.subr.mxu0 0.0
        %2520 = vmatpush1.msra.mxu0 0.0
        %2521 = vmatprep.subr.mxu0 0.0
        %2522 = vmatpush1.msra.mxu0 0.0
        %2523 = vmatprep.subr.mxu0 0.0
        %2524 = vmatpush1.msra.mxu0 0.0
        %2525 = vmatprep.subr.mxu0 0.0
        %2526 = vmatpush1.msra.mxu0 0.0
        %2527 = vmatprep.subr.mxu0 0.0
        %2528 = vmatpush1.msra.mxu0 %v2493
        %2529 = vmatprep.subr.mxu0 0.0
        %2530 = vmatpush1.msra.mxu0 %v2491
        %2531 = vmatprep.subr.mxu0 0.0
        %2532 = vmatpush2.msra.mxu0 0.0
        %2533 = vmatprep.subr.mxu0 0.0
        %2534 = vmatpush2.msra.mxu0 0.0
        %2535 = vmatprep.subr.mxu0 0.0
        %2536 = vmatpush2.msra.mxu0 0.0
        %2537 = vmatprep.subr.mxu0 0.0
        %2538 = vmatpush2.msra.mxu0 0.0
        %2539 = vmatprep.subr.mxu0 0.0
        %2540 = vmatpush2.msra.mxu0 0.0
        %2541 = vmatprep.subr.mxu0 0.0
        %2542 = vmatpush2.msra.mxu0 0.0
        %2543 = vmatprep.subr.mxu0 0.0
        %2544 = vmatpush2.msra.mxu0 0.0
        %2545 = vmatprep.subr.mxu0 0.0
        %2546 = vmatpush2.msra.mxu0 0.0
        %2547 = vmatprep.subr.mxu0 0.0
        %2548 = vmatpush2.msra.mxu0 0.0
        %2549 = vmatprep.subr.mxu0 0.0
        %2550 = vmatpush2.msra.mxu0 0.0
        %2551 = vmatprep.subr.mxu0 0.0
        %2552 = vmatpush2.msra.mxu0 0.0
        %2553 = vmatprep.subr.mxu0 0.0
        %2554 = vmatpush2.msra.mxu0 0.0
        %2555 = vmatprep.subr.mxu0 0.0
        %2556 = vmatpush2.msra.mxu0 0.0
        %2557 = vmatprep.subr.mxu0 0.0
        %2558 = vmatpush2.msra.mxu0 0.0
        %2559 = vmatprep.subr.mxu0 0.0
        %2560 = vmatpush2.msra.mxu0 0.0
        %2561 = vmatprep.subr.mxu0 0.0
        %2562 = vmatpush2.msra.mxu0 0.0
        %2563 = vmatprep.mubr.f32.mxu0 0.0
        %2564 = vmatmul.mubr.f32.gmra.mxu0 %v2497
        %v2565 = vpop.f32.mrf.mxu0
        %v2566 = vadd.f32 0.0, %v2565
        %v2567 = vpop.f32.mrf.mxu0
        %2568 = vdwg.mxu0
        %v2569 = vrcp.pop %v2489
        %v2570 = vmul.f32 %v2566, %v2569
        %v2571 = vld [vmem:[%s6 + $0x38] sm:$0xff]
        %v2573 = vsel %vm675, %v2570, 0
        %2575 = vmatprep.subr.mxu0 0.0
        %2576 = vmatpush1.msra.mxu0 0.0
        %2577 = vmatprep.subr.mxu0 0.0
        %2578 = vmatpush1.msra.mxu0 0.0
        %2579 = vmatprep.subr.mxu0 0.0
        %2580 = vmatpush1.msra.mxu0 0.0
        %2581 = vmatprep.subr.mxu0 0.0
        %2582 = vmatpush1.msra.mxu0 0.0
        %2583 = vmatprep.subr.mxu0 0.0
        %2584 = vmatpush1.msra.mxu0 0.0
        %2585 = vmatprep.subr.mxu0 0.0
        %2586 = vmatpush1.msra.mxu0 0.0
        %2587 = vmatprep.subr.mxu0 0.0
        %2588 = vmatpush1.msra.mxu0 0.0
        %2589 = vmatprep.subr.mxu0 0.0
        %2590 = vmatpush1.msra.mxu0 0.0
        %2591 = vmatprep.subr.mxu0 0.0
        %2592 = vmatpush1.msra.mxu0 0.0
        %2593 = vmatprep.subr.mxu0 0.0
        %2594 = vmatpush1.msra.mxu0 0.0
        %2595 = vmatprep.subr.mxu0 0.0
        %2596 = vmatpush1.msra.mxu0 0.0
        %2597 = vmatprep.subr.mxu0 0.0
        %2598 = vmatpush1.msra.mxu0 0.0
        %2599 = vmatprep.subr.mxu0 0.0
        %2600 = vmatpush1.msra.mxu0 0.0
        %2601 = vmatprep.subr.mxu0 0.0
        %2602 = vmatpush1.msra.mxu0 0.0
        %2603 = vmatprep.subr.mxu0 0.0
        %2604 = vmatpush1.msra.mxu0 0.0
        %2605 = vmatprep.subr.mxu0 0.0
        %2606 = vmatpush1.msra.mxu0 %v2571
        %2607 = vmatprep.subr.mxu0 0.0
        %2608 = vmatpush2.msra.mxu0 0.0
        %2609 = vmatprep.subr.mxu0 0.0
        %2610 = vmatpush2.msra.mxu0 0.0
        %2611 = vmatprep.subr.mxu0 0.0
        %2612 = vmatpush2.msra.mxu0 0.0
        %2613 = vmatprep.subr.mxu0 0.0
        %2614 = vmatpush2.msra.mxu0 0.0
        %2615 = vmatprep.subr.mxu0 0.0
        %2616 = vmatpush2.msra.mxu0 0.0
        %2617 = vmatprep.subr.mxu0 0.0
        %2618 = vmatpush2.msra.mxu0 0.0
        %2619 = vmatprep.subr.mxu0 0.0
        %2620 = vmatpush2.msra.mxu0 0.0
        %2621 = vmatprep.subr.mxu0 0.0
        %2622 = vmatpush2.msra.mxu0 0.0
        %2623 = vmatprep.subr.mxu0 0.0
        %2624 = vmatpush2.msra.mxu0 0.0
        %2625 = vmatprep.subr.mxu0 0.0
        %2626 = vmatpush2.msra.mxu0 0.0
        %2627 = vmatprep.subr.mxu0 0.0
        %2628 = vmatpush2.msra.mxu0 0.0
        %2629 = vmatprep.subr.mxu0 0.0
        %2630 = vmatpush2.msra.mxu0 0.0
        %2631 = vmatprep.subr.mxu0 0.0
        %2632 = vmatpush2.msra.mxu0 0.0
        %2633 = vmatprep.subr.mxu0 0.0
        %2634 = vmatpush2.msra.mxu0 0.0
        %2635 = vmatprep.subr.mxu0 0.0
        %2636 = vmatpush2.msra.mxu0 0.0
        %2637 = vmatprep.subr.mxu0 0.0
        %2638 = vmatpush2.msra.mxu0 0.0
        %2639 = vmatprep.mubr.f32.mxu0 0.0
        %2640 = vmatmul.mubr.f32.gmra.mxu0 %v2573
        %v2641 = vpop.f32.mrf.mxu0
        %v2642 = vadd.f32 0.0, %v2641
        %v2643 = vpop.f32.mrf.mxu0
        %2644 = vdwg.mxu0
        %v2645 = vadd.f32 %v2398, %v2642
        %v2646 = vld [vmem:[%s7] sm:$0x1]
        %v2648 = vlaneseq
        %v2649 = vshrl.u32 %v2648, 7
        %v2650 = vsub.s32 0, %v2649
        %v2651 = vrot.slane %v2646, %v2650
        %v2653 = vadd.f32 %v2645, %v2651
        %2654 = vst.msk [vmem:[%s396] sm:$0xff] %vm596, %v2653
        %s2655 = sand.u32 %s233, 1
        %s2656 = scalar_lea.sflag [#allocation6], %s2655
        %s2657 = sand.u32 %s233, 1
        %s2658 = smul.addr %s2657, 8
        %s2659 = scalar_lea.vmem [#allocation10], %s2658
        // Predicated region
        $region69: #{attention_global_forward.1} parent=51 // pred_check
          %p2660 = pneg %p243
        $region70: #{attention_global_forward.1} parent=51 // pred_check_branch
          %2662 = sbr.rel (%p2660) target = $region72
        $region71: #{attention_global_forward.1} parent=51 // pred_region
          %s2664 = ssub.s32 128, 128
          %2665 = vsyncadd %s2656, %s2664
          %s2666 = sadd.s32 %s31, %s30
          %s2667 = smul.addr %s2666, 128
          %s2668 = scalar_lea.hbm %s8, %s2667
          %s2670 = sshll.u32 %s2659, 4
          %s2671 = int_to_ptr.vmem [resolvable:$true] %s2670
          %2673 = dma.vmem_to_hbm [thread:$0]  %s2671, 128, %s2668, %s2656
        $region72: #{attention_global_forward.1} parent=51 // pred_fallthru
          _
      $region52: #{attention_global_forward.1} parent=5 // pred_fallthru
        _
      %p2674 = scmp.le.s32.totalorder 2, %s21
      // Predicated region
      $region73: #{attention_global_forward.1} parent=5 // pred_check
        %p2675 = pneg %p2674
      $region74: #{attention_global_forward.1} parent=5 // pred_check_branch
        %2677 = sbr.rel (%p2675) target = $region76
      $region75: #{attention_global_forward.1} parent=5 // pred_region
        %s2678 = ssub.s32 %s21, 2
        // Predicated region
        $region77: #{attention_global_forward.1} parent=75 // pred_check
          %p2679 = pneg %p249
        $region78: #{attention_global_forward.1} parent=75 // pred_check_branch
          %2681 = sbr.rel (%p2679) target = $region80
        $region79: #{attention_global_forward.1} parent=75 // pred_region
          %s2682 = sand.u32 %s234, 1
          %s2683 = scalar_lea.sflag [#allocation6], %s2682
          %s2684 = sand.u32 %s234, 1
          %s2685 = smul.addr %s2684, 8
          %s2686 = scalar_lea.vmem [#allocation10], %s2685
          %2687 = dma.done %s2683, 128
        $region80: #{attention_global_forward.1} parent=75 // pred_fallthru
          _
      $region76: #{attention_global_forward.1} parent=5 // pred_fallthru
        _
    $region6: #{attention_global_forward.1} parent=1 // loop_footer
      %s25 = sadd.s32 1, %s21
    $region7: #{attention_global_forward.1} parent=1 // loop_footer_branch
      %20 = sbr.rel target = $region3
    $region8: #{attention_global_forward.1} parent=1 // loop_exit
      _
    %2688 = vsyncpa [#allocation5], 1
    %s2689 = scalar_lea.sflag [#allocation5], 1
    %2690 = vsyncpa %s2689, 1
    %2691 = vsyncpa [#allocation8], 1
    %2692 = vsyncpa [#allocation6], 1
    %s2693 = scalar_lea.sflag [#allocation6], 1
    %2694 = vsyncpa %s2693, 1

</llo_original>
